<compile_context>
chip_gen: v6e
topology: v6e:2x2x1
jax: 0.10.0
libtpu: 0.0.40
codegen_flags: <defaults>
</compile_context>

<pallas_src>
import math
import functools

import jax
import jax.numpy as jnp
from jax.experimental import pallas as pl
from jax.experimental.pallas import tpu as pltpu

EPS = float(jnp.finfo(jnp.float32).eps)   # torch.nn.RMSNorm(eps=None) on fp32

# rows of the packed per-layer (L, 8, max(D,F)) "small tensors" block
_ANW, _BQ, _BK, _BV, _BO, _FNW, _B1, _B2 = range(8)


def _rmsnorm(x, w):
    # x: (N, D) f32, w: (1, D) f32
    return x * jax.lax.rsqrt(jnp.mean(x * x, axis=-1, keepdims=True) + EPS) * w


# ---------------------------------------------------------------------------
# Fused encoder kernel: grid = (b_chunks, num_layers), activation in VMEM.
# ---------------------------------------------------------------------------
def encoder_kernel(
    x_hbm, cos_ref, sin_ref,
    small_ref, wq_ref, wk_ref, wv_ref, wo_ref, w1_ref, wglu_ref, w2_ref,
    final_nw_ref, wc_ref, bcls_ref,
    out_ref,
    act_ref, dma_sem,
    *, num_heads, seq):
    chunk = pl.program_id(0)
    layer = pl.program_id(1)
    num_layers = pl.num_programs(1)

    N, D = act_ref.shape               # N = (batch / b_chunks) * S rows in VMEM
    S, H = seq, num_heads
    Bc = N // S
    hd = D // H
    half = hd // 2
    F = w1_ref.shape[2]

    # -------- one-time per batch-chunk: DMA embedded tokens HBM -> VMEM ------
    @pl.when(layer == 0)
    def _init():
        cp = pltpu.make_async_copy(
            x_hbm.at[pl.ds(chunk * N, N), :], act_ref, dma_sem)
        cp.start()
        cp.wait()

    x = act_ref[...]                   # (N, D) f32 carried activation
    cos = cos_ref[...][None]           # (1, S, hd)
    sin = sin_ref[...][None]

    sm = small_ref[0]                  # (8, max(D, F)) packed per-layer tensors
    anw = sm[_ANW:_ANW + 1, :D]
    bq = sm[_BQ:_BQ + 1, :D]
    bk = sm[_BK:_BK + 1, :D]
    bv = sm[_BV:_BV + 1, :D]
    bo = sm[_BO:_BO + 1, :D]
    fnw = sm[_FNW:_FNW + 1, :D]
    b1 = sm[_B1:_B1 + 1, :F]
    b2 = sm[_B2:_B2 + 1, :D]

    # ---------------- attention sublayer: attn(attention_norm(src)) ----------
    xn = _rmsnorm(x, anw).astype(jnp.bfloat16)
    q = jnp.dot(xn, wq_ref[0], preferred_element_type=jnp.float32) + bq
    k = jnp.dot(xn, wk_ref[0], preferred_element_type=jnp.float32) + bk
    v = jnp.dot(xn, wv_ref[0], preferred_element_type=jnp.float32) + bv

    # Head split: H lane-tile-aligned column slices (hd multiple of 128 in the
    # demo) + free leading-dim reshapes.  Batch handled purely by reshape.
    def split_heads(t):                # (N, D) -> (H*Bc, S, hd); n = h*Bc + b
        th = jnp.stack([t[:, h * hd:(h + 1) * hd] for h in range(H)], axis=0)
        return th.reshape(H * Bc, S, hd)

    def merge_heads(t):                # (H*Bc, S, hd) -> (N, D)
        th = t.reshape(H, N, hd)
        return jnp.concatenate([th[h] for h in range(H)], axis=-1)

    def rope(t):                       # xformers rotate_half (NeoX/LLaMA layout)
        t1 = t[..., :half]
        t2 = t[..., half:]
        rot = jnp.concatenate([-t2, t1], axis=-1)
        return t * cos + rot * sin

    scale = 1.0 / math.sqrt(hd)
    qh = (rope(split_heads(q)) * scale).astype(jnp.bfloat16)
    kh = rope(split_heads(k)).astype(jnp.bfloat16)
    vh = split_heads(v).astype(jnp.bfloat16)

    # head-batched non-causal attention, f32 accumulation on the MXU
    # TODO(synk): flash-style online softmax over KV tiles for S >= ~256.
    s = jnp.einsum('nqd,nkd->nqk', qh, kh, preferred_element_type=jnp.float32)
    s = s - jnp.max(s, axis=-1, keepdims=True)
    p = jnp.exp(s)
    p = p * pl.reciprocal(jnp.sum(p, axis=-1, keepdims=True), approx=True)
    ctx = jnp.einsum('nqk,nkd->nqd', p.astype(jnp.bfloat16), vh,
                     preferred_element_type=jnp.float32)          # (H*Bc, S, hd)

    attn = jnp.dot(merge_heads(ctx).astype(jnp.bfloat16), wo_ref[0],
                   preferred_element_type=jnp.float32) + bo       # (N, D)

    # ---------------- ffn sublayer: y = ffn_norm(src+attn); out = y + ffn(y) --
    y = _rmsnorm(x + attn, fnw)
    yb = y.astype(jnp.bfloat16)
    h1 = (jnp.dot(yb, w1_ref[0], preferred_element_type=jnp.float32)
          + b1).astype(jnp.bfloat16)                              # (N, F)
    glu = jnp.dot(h1, wglu_ref[0], preferred_element_type=jnp.float32)  # (N, 2F)
    inp, gate = glu[:, :F], glu[:, F:]                            # 128-aligned split
    swiglu = (inp * gate * jax.nn.sigmoid(gate)).astype(jnp.bfloat16)
    ff = jnp.dot(swiglu, w2_ref[0], preferred_element_type=jnp.float32) + b2
    act_ref[...] = y + ff

    # ------------- final RMSNorm + sequence-mean + classifier ----------------
    @pl.when(layer == num_layers - 1)
    def _final():
        hid = _rmsnorm(act_ref[...], final_nw_ref[...])           # (N, D)
        hmean = jnp.mean(hid.reshape(Bc, S, D), axis=1)           # (Bc, D)
        out_ref[0] = (jnp.dot(hmean.astype(jnp.bfloat16), wc_ref[...],
                              preferred_element_type=jnp.float32)
                      + bcls_ref[...])                            # (Bc, ACp)


# ---------------------------------------------------------------------------
# Wrapper
# ---------------------------------------------------------------------------
def _vmem_limit_bytes():
    try:
        cap = int(pltpu.get_tpu_info().vmem_capacity_bytes)
    except Exception:
        cap = 128 * 1024 * 1024
    # ~80% of the physical per-core VMEM, capped at 100 MiB (v5e/v6e 128 MiB,
    # v7x 64 MiB per core).
    return int(min(max(cap * 0.8, 32 * 1024 * 1024), 100 * 1024 * 1024))


def _default_b_chunks(batch):
    # One chunk per TensorCore (v7x has 2 TCs; v5e/v6e have 1).  Weights are
    # re-streamed once per chunk, so keep chunks == cores.
    try:
        cores = int(getattr(jax.devices()[0], "num_cores", 1) or 1)
    except Exception:
        cores = 1
    cores = max(1, min(cores, batch))
    while batch % cores:
        cores -= 1
    return cores


def encoder_pallas(x2d, cos, sin, params, final_nw, wc, bcls, *,
                   num_heads, batch, seq, b_chunks):
    assert batch % b_chunks == 0
    _, D = x2d.shape
    L = params["wq"].shape[0]
    F = params["w1"].shape[2]
    ACp = wc.shape[1]
    bsub = batch // b_chunks           # batches per chunk
    rows = bsub * seq                  # activation rows resident in VMEM

    const = lambda c, l: (0, 0)
    per_layer = lambda c, l: (l, 0, 0)

    in_specs = [
        pl.BlockSpec(memory_space=pl.ANY),                 # x2d stays in HBM
        pl.BlockSpec(cos.shape, const),
        pl.BlockSpec(sin.shape, const),
        pl.BlockSpec((1,) + tuple(params["small"].shape[1:]), per_layer),
        pl.BlockSpec((1, D, D), per_layer),                # wq
        pl.BlockSpec((1, D, D), per_layer),                # wk
        pl.BlockSpec((1, D, D), per_layer),                # wv
        pl.BlockSpec((1, D, D), per_layer),                # wo
        pl.BlockSpec((1, D, F), per_layer),                # w1
        pl.BlockSpec((1, F, 2 * F), per_layer),            # fused SwiGLU weight
        pl.BlockSpec((1, F, D), per_layer),                # w2
        pl.BlockSpec(final_nw.shape, const),
        pl.BlockSpec(wc.shape, const),
        pl.BlockSpec(bcls.shape, const),
    ]

    kernel = functools.partial(encoder_kernel, num_heads=num_heads, seq=seq)
    out = pl.pallas_call(
        kernel,
        out_shape=jax.ShapeDtypeStruct((b_chunks, bsub, ACp), jnp.float32),
        grid=(b_chunks, L),
        in_specs=in_specs,
        out_specs=pl.BlockSpec((1, bsub, ACp), lambda c, l: (c, 0, 0)),
        scratch_shapes=[pltpu.VMEM((rows, D), jnp.float32),
                        pltpu.SemaphoreType.DMA(())],
        compiler_params=pltpu.CompilerParams(
            dimension_semantics=("parallel", "arbitrary"),
            vmem_limit_bytes=_vmem_limit_bytes()),
    )(x2d, cos, sin, params["small"], params["wq"], params["wk"], params["wv"],
      params["wo"], params["w1"], params["wglu"], params["w2"],
      final_nw, wc, bcls)
    return out.reshape(batch, ACp)


def rope_tables(seq_len, head_dim):
    inv_freq = 1.0 / (10000.0 ** (jnp.arange(0, head_dim, 2, dtype=jnp.float32)
                                  / head_dim))
    t = jnp.arange(seq_len, dtype=jnp.float32)
    freqs = jnp.outer(t, inv_freq)                       # (S, hd/2)
    emb = jnp.concatenate([freqs, freqs], axis=-1)       # (S, hd)
    return jnp.cos(emb), jnp.sin(emb)


def init_params(key, vocab, d_model, ffn, n_layers, n_actions, n_classes):
    D, F, L = d_model, ffn, n_layers
    DF = max(D, F)
    ks = jax.random.split(key, 16)

    def w(k, shape):                                      # bf16 weight storage
        return (jax.random.normal(k, shape, jnp.float32) * 0.02).astype(jnp.bfloat16)

    def b(k, shape):
        return jax.random.normal(k, shape, jnp.float32) * 0.02

    embed = jax.random.normal(ks[0], (vocab, D), jnp.float32) * 0.02

    # packed per-layer small tensors: [anw, bq, bk, bv, bo, fnw, b1, b2]
    small = jnp.zeros((L, 8, DF), jnp.float32)
    small = small.at[:, _ANW, :D].set(1.0)               # attention_norm weight
    small = small.at[:, _FNW, :D].set(1.0)               # ffn_norm weight
    small = small.at[:, _BQ, :D].set(b(ks[1], (L, D)))
    small = small.at[:, _BK, :D].set(b(ks[2], (L, D)))
    small = small.at[:, _BV, :D].set(b(ks[3], (L, D)))
    small = small.at[:, _BO, :D].set(b(ks[4], (L, D)))
    small = small.at[:, _B1, :F].set(b(ks[5], (L, F)))
    small = small.at[:, _B2, :D].set(b(ks[6], (L, D)))

    params = dict(
        small=small,
        wq=w(ks[7], (L, D, D)),
        wk=w(ks[8], (L, D, D)),
        wv=w(ks[9], (L, D, D)),
        wo=w(ks[10], (L, D, D)),
        w1=w(ks[11], (L, D, F)),
        wglu=w(ks[12], (L, F, 2 * F)),    # [:, :, :F] = "input", [:, :, F:] = "gate"
        w2=w(ks[13], (L, F, D)),
    )
    final_nw = jnp.ones((1, D), jnp.float32)

    ac = n_actions * n_classes
    acp = ((ac + 127) // 128) * 128                       # lane-dense classifier out
    wc = jnp.zeros((D, acp), jnp.float32)
    wc = wc.at[:, :ac].set(jax.random.normal(ks[14], (D, ac), jnp.float32) * 0.02)
    wc = wc.astype(jnp.bfloat16)
    bcls = jnp.zeros((1, acp), jnp.float32)
    bcls = bcls.at[:, :ac].set(b(ks[15], (1, ac)))
    return embed, params, final_nw, wc, bcls


def action_value_forward(tokens, embed, params, final_nw, wc, bcls, *,
                         num_heads, num_actions, num_classes, b_chunks=None):
    B, S = tokens.shape
    D = embed.shape[1]
    if b_chunks is None:
        b_chunks = _default_b_chunks(B)
    # glue outside the kernel: embedding gather + 1/sqrt(d_model) scale
    # (embedding / attention / ffn dropouts are identity in eval mode)
    x2d = jnp.take(embed, tokens.reshape(-1), axis=0) / math.sqrt(D)   # (B*S, D)
    cos, sin = rope_tables(S, D // num_heads)
    logits = encoder_pallas(x2d, cos, sin, params, final_nw, wc, bcls,
                            num_heads=num_heads, batch=B, seq=S,
                            b_chunks=b_chunks)                         # (B, ACp)
    ac = num_actions * num_classes
    return logits[:, :ac].reshape(B, num_actions, num_classes)


if __name__ == "__main__":
    # small demo shapes consistent with the module; head_dim = D // H = 128 keeps
    # the attention contraction lane-dense on the MXU (per the perf review).
    B, S, D, H, FFN = 2, 16, 256, 2, 256
    VOCAB, LAYERS, A, C = 50, 2, 3, 5

    key = jax.random.PRNGKey(0)
    pkey, tkey = jax.random.split(key)
    embed, params, final_nw, wc, bcls = init_params(pkey, VOCAB, D, FFN, LAYERS, A, C)
    tokens = jax.random.randint(tkey, (B, S), 0, VOCAB, dtype=jnp.int32)

    # b_chunks=2 exercises the chunked/"parallel" batch axis (maps to v7x's 2 TCs;
    # on single-core parts the chunks simply run back-to-back).
    out = action_value_forward(tokens, embed, params, final_nw, wc, bcls,
                               num_heads=H, num_actions=A, num_classes=C,
                               b_chunks=2)
    out = jax.block_until_ready(out)
    assert out.shape == (B, A, C) and out.dtype == jnp.float32
    assert bool(jnp.all(jnp.isfinite(out)))
    print("KERNEL_OK")
</pallas_src>

<mosaic_0001>
module attributes {stable_mosaic.version = 11 : i64} {
  func.func @encoder_kernel(%arg0: i32, %arg1: i32, %arg2: memref<32x256xf32, #tpu.memory_space<any>>, %arg3: memref<16x128xf32, #tpu.memory_space<vmem>>, %arg4: memref<16x128xf32, #tpu.memory_space<vmem>>, %arg5: memref<1x8x256xf32, #tpu.memory_space<vmem>>, %arg6: memref<1x256x256xbf16, #tpu.memory_space<vmem>>, %arg7: memref<1x256x256xbf16, #tpu.memory_space<vmem>>, %arg8: memref<1x256x256xbf16, #tpu.memory_space<vmem>>, %arg9: memref<1x256x256xbf16, #tpu.memory_space<vmem>>, %arg10: memref<1x256x256xbf16, #tpu.memory_space<vmem>>, %arg11: memref<1x256x512xbf16, #tpu.memory_space<vmem>>, %arg12: memref<1x256x256xbf16, #tpu.memory_space<vmem>>, %arg13: memref<1x256xf32, #tpu.memory_space<vmem>>, %arg14: memref<256x128xbf16, #tpu.memory_space<vmem>>, %arg15: memref<1x128xf32, #tpu.memory_space<vmem>>, %arg16: memref<1x1x128xf32, #tpu.memory_space<vmem>>, %arg17: memref<16x256xf32, #tpu.memory_space<vmem>>, %arg18: memref<!tpu.dma_semaphore, #tpu.memory_space<semaphore_mem>>) attributes {dimension_semantics = [#tpu.dimension_semantics<parallel>, #tpu.dimension_semantics<arbitrary>], iteration_bounds = array<i64: 2, 2>, scalar_prefetch = 0 : i64, scratch_operands = 2 : i64, tpu.core_type = #tpu.core_type<tc>, window_params = [{}, {pipeline_mode = #tpu.pipeline_mode<synchronous>, transform_indices = @transform_1, window_bounds = array<i64: 16, 128>}, {pipeline_mode = #tpu.pipeline_mode<synchronous>, transform_indices = @transform_2, window_bounds = array<i64: 16, 128>}, {transform_indices = @transform_3, window_bounds = array<i64: 1, 8, 256>}, {transform_indices = @transform_4, window_bounds = array<i64: 1, 256, 256>}, {transform_indices = @transform_5, window_bounds = array<i64: 1, 256, 256>}, {transform_indices = @transform_6, window_bounds = array<i64: 1, 256, 256>}, {transform_indices = @transform_7, window_bounds = array<i64: 1, 256, 256>}, {transform_indices = @transform_8, window_bounds = array<i64: 1, 256, 256>}, {transform_indices = @transform_9, window_bounds = array<i64: 1, 256, 512>}, {transform_indices = @transform_10, window_bounds = array<i64: 1, 256, 256>}, {pipeline_mode = #tpu.pipeline_mode<synchronous>, transform_indices = @transform_11, window_bounds = array<i64: 1, 256>}, {pipeline_mode = #tpu.pipeline_mode<synchronous>, transform_indices = @transform_12, window_bounds = array<i64: 256, 128>}, {pipeline_mode = #tpu.pipeline_mode<synchronous>, transform_indices = @transform_13, window_bounds = array<i64: 1, 128>}, {transform_indices = @transform_14, window_bounds = array<i64: 1, 1, 128>}]} {
    %c0_i32 = arith.constant 0 : i32
    %0 = arith.cmpi eq, %arg1, %c0_i32 : i32
    %1 = arith.extui %0 : i1 to i32
    %c0_i32_0 = arith.constant 0 : i32
    %2 = arith.cmpi ne, %1, %c0_i32_0 : i32
    scf.if %2 {
      %c16_i32 = arith.constant 16 : i32
      %153 = arith.muli %arg0, %c16_i32 : i32
      %c0_i32_53 = arith.constant 0 : i32
      %154 = tpu.memref_slice %arg2[%153, %c0_i32_53] : memref<32x256xf32, #tpu.memory_space<any>> -> memref<16x256xf32, #tpu.memory_space<any>>
      tpu.enqueue_dma source(%154 : memref<16x256xf32, #tpu.memory_space<any>>) target(%arg17 : memref<16x256xf32, #tpu.memory_space<vmem>>) target_semaphore(%arg18 : memref<!tpu.dma_semaphore, #tpu.memory_space<semaphore_mem>>)
      %c0_i32_54 = arith.constant 0 : i32
      %155 = tpu.memref_slice %arg2[%153, %c0_i32_54] : memref<32x256xf32, #tpu.memory_space<any>> -> memref<16x256xf32, #tpu.memory_space<any>>
      tpu.wait_dma2 semaphore(%arg18 : memref<!tpu.dma_semaphore, #tpu.memory_space<semaphore_mem>>) src(%155 : memref<16x256xf32, #tpu.memory_space<any>>) dst(%arg17 : memref<16x256xf32, #tpu.memory_space<vmem>>)
    } else {
    }
    %c0 = arith.constant 0 : index
    %c0_1 = arith.constant 0 : index
    %3 = vector.load %arg17[%c0, %c0_1] : memref<16x256xf32, #tpu.memory_space<vmem>>, vector<16x256xf32>
    %c0_2 = arith.constant 0 : index
    %c0_3 = arith.constant 0 : index
    %4 = vector.load %arg3[%c0_2, %c0_3] : memref<16x128xf32, #tpu.memory_space<vmem>>, vector<16x128xf32>
    %5 = vector.shape_cast %4 : vector<16x128xf32> to vector<1x16x128xf32>
    %c0_4 = arith.constant 0 : index
    %c0_5 = arith.constant 0 : index
    %6 = vector.load %arg4[%c0_4, %c0_5] : memref<16x128xf32, #tpu.memory_space<vmem>>, vector<16x128xf32>
    %7 = vector.shape_cast %6 : vector<16x128xf32> to vector<1x16x128xf32>
    %c0_6 = arith.constant 0 : index
    %c0_7 = arith.constant 0 : index
    %c0_8 = arith.constant 0 : index
    %8 = vector.load %arg5[%c0_6, %c0_7, %c0_8] : memref<1x8x256xf32, #tpu.memory_space<vmem>>, vector<1x8x256xf32>
    %9 = vector.shape_cast %8 : vector<1x8x256xf32> to vector<8x256xf32>
    %10 = vector.extract_strided_slice %9 {offsets = [0, 0], sizes = [1, 256], strides = [1, 1]} : vector<8x256xf32> to vector<1x256xf32>
    %11 = vector.extract_strided_slice %9 {offsets = [1, 0], sizes = [1, 256], strides = [1, 1]} : vector<8x256xf32> to vector<1x256xf32>
    %12 = vector.extract_strided_slice %9 {offsets = [2, 0], sizes = [1, 256], strides = [1, 1]} : vector<8x256xf32> to vector<1x256xf32>
    %13 = vector.extract_strided_slice %9 {offsets = [3, 0], sizes = [1, 256], strides = [1, 1]} : vector<8x256xf32> to vector<1x256xf32>
    %14 = vector.extract_strided_slice %9 {offsets = [4, 0], sizes = [1, 256], strides = [1, 1]} : vector<8x256xf32> to vector<1x256xf32>
    %15 = vector.extract_strided_slice %9 {offsets = [5, 0], sizes = [1, 256], strides = [1, 1]} : vector<8x256xf32> to vector<1x256xf32>
    %16 = vector.extract_strided_slice %9 {offsets = [6, 0], sizes = [1, 256], strides = [1, 1]} : vector<8x256xf32> to vector<1x256xf32>
    %17 = vector.extract_strided_slice %9 {offsets = [7, 0], sizes = [1, 256], strides = [1, 1]} : vector<8x256xf32> to vector<1x256xf32>
    %18 = arith.mulf %3, %3 : vector<16x256xf32>
    %cst = arith.constant dense<0.000000e+00> : vector<16xf32>
    %19 = vector.multi_reduction <add>, %18, %cst [1] : vector<16x256xf32> to vector<16xf32>
    %20 = vector.shape_cast %19 : vector<16xf32> to vector<16x1xf32>
    %cst_9 = arith.constant 2.560000e+02 : f32
    %21 = vector.broadcast %cst_9 : f32 to vector<16x1xf32>
    %22 = arith.divf %20, %21 : vector<16x1xf32>
    %cst_10 = arith.constant 1.1920929E-7 : f32
    %23 = vector.broadcast %cst_10 : f32 to vector<16x1xf32>
    %24 = arith.addf %22, %23 : vector<16x1xf32>
    %25 = math.rsqrt %24 : vector<16x1xf32>
    %26 = vector.broadcast %25 : vector<16x1xf32> to vector<16x256xf32>
    %27 = arith.mulf %3, %26 : vector<16x256xf32>
    %28 = vector.broadcast %10 : vector<1x256xf32> to vector<16x256xf32>
    %29 = arith.mulf %27, %28 : vector<16x256xf32>
    %30 = arith.truncf %29 : vector<16x256xf32> to vector<16x256xbf16>
    %c0_11 = arith.constant 0 : index
    %c0_12 = arith.constant 0 : index
    %c0_13 = arith.constant 0 : index
    %31 = vector.load %arg6[%c0_11, %c0_12, %c0_13] : memref<1x256x256xbf16, #tpu.memory_space<vmem>>, vector<1x256x256xbf16>
    %32 = vector.shape_cast %31 : vector<1x256x256xbf16> to vector<256x256xbf16>
    %cst_14 = arith.constant dense<0.000000e+00> : vector<16x256xf32>
    %33 = tpu.matmul %30, %32, %cst_14 {dimension_numbers = #tpu.dot_dimension_numbers<[1], [0], [0], [1], [0, 0, 1, 1], [], []>} : vector<16x256xbf16>, vector<256x256xbf16>, vector<16x256xf32> -> vector<16x256xf32>
    %34 = vector.broadcast %11 : vector<1x256xf32> to vector<16x256xf32>
    %35 = arith.addf %33, %34 : vector<16x256xf32>
    %c0_15 = arith.constant 0 : index
    %c0_16 = arith.constant 0 : index
    %c0_17 = arith.constant 0 : index
    %36 = vector.load %arg7[%c0_15, %c0_16, %c0_17] : memref<1x256x256xbf16, #tpu.memory_space<vmem>>, vector<1x256x256xbf16>
    %37 = vector.shape_cast %36 : vector<1x256x256xbf16> to vector<256x256xbf16>
    %cst_18 = arith.constant dense<0.000000e+00> : vector<16x256xf32>
    %38 = tpu.matmul %30, %37, %cst_18 {dimension_numbers = #tpu.dot_dimension_numbers<[1], [0], [0], [1], [0, 0, 1, 1], [], []>} : vector<16x256xbf16>, vector<256x256xbf16>, vector<16x256xf32> -> vector<16x256xf32>
    %39 = vector.broadcast %12 : vector<1x256xf32> to vector<16x256xf32>
    %40 = arith.addf %38, %39 : vector<16x256xf32>
    %c0_19 = arith.constant 0 : index
    %c0_20 = arith.constant 0 : index
    %c0_21 = arith.constant 0 : index
    %41 = vector.load %arg8[%c0_19, %c0_20, %c0_21] : memref<1x256x256xbf16, #tpu.memory_space<vmem>>, vector<1x256x256xbf16>
    %42 = vector.shape_cast %41 : vector<1x256x256xbf16> to vector<256x256xbf16>
    %cst_22 = arith.constant dense<0.000000e+00> : vector<16x256xf32>
    %43 = tpu.matmul %30, %42, %cst_22 {dimension_numbers = #tpu.dot_dimension_numbers<[1], [0], [0], [1], [0, 0, 1, 1], [], []>} : vector<16x256xbf16>, vector<256x256xbf16>, vector<16x256xf32> -> vector<16x256xf32>
    %44 = vector.broadcast %13 : vector<1x256xf32> to vector<16x256xf32>
    %45 = arith.addf %43, %44 : vector<16x256xf32>
    %46 = vector.extract_strided_slice %35 {offsets = [0, 0], sizes = [16, 128], strides = [1, 1]} : vector<16x256xf32> to vector<16x128xf32>
    %47 = vector.extract_strided_slice %35 {offsets = [0, 128], sizes = [16, 128], strides = [1, 1]} : vector<16x256xf32> to vector<16x128xf32>
    %48 = vector.shape_cast %46 : vector<16x128xf32> to vector<1x16x128xf32>
    %49 = vector.shape_cast %47 : vector<16x128xf32> to vector<1x16x128xf32>
    %50 = tpu.concatenate %48, %49 in 0 : vector<1x16x128xf32>, vector<1x16x128xf32> -> vector<2x16x128xf32>
    %51 = vector.extract_strided_slice %50 {offsets = [0, 0, 0], sizes = [2, 16, 64], strides = [1, 1, 1]} : vector<2x16x128xf32> to vector<2x16x64xf32>
    %52 = vector.extract_strided_slice %50 {offsets = [0, 0, 64], sizes = [2, 16, 64], strides = [1, 1, 1]} : vector<2x16x128xf32> to vector<2x16x64xf32>
    %cst_23 = arith.constant 0.000000e+00 : f32
    %53 = vector.broadcast %cst_23 : f32 to vector<2x16x64xf32>
    %54 = arith.subf %53, %52 : vector<2x16x64xf32>
    %55 = tpu.concatenate %54, %51 in 2 : vector<2x16x64xf32>, vector<2x16x64xf32> -> vector<2x16x128xf32>
    %56 = vector.broadcast %5 : vector<1x16x128xf32> to vector<2x16x128xf32>
    %57 = arith.mulf %50, %56 : vector<2x16x128xf32>
    %58 = vector.broadcast %7 : vector<1x16x128xf32> to vector<2x16x128xf32>
    %59 = arith.mulf %55, %58 : vector<2x16x128xf32>
    %60 = arith.addf %57, %59 : vector<2x16x128xf32>
    %cst_24 = arith.constant 0.0883883461 : f32
    %61 = vector.broadcast %cst_24 : f32 to vector<2x16x128xf32>
    %62 = arith.mulf %60, %61 : vector<2x16x128xf32>
    %63 = arith.truncf %62 : vector<2x16x128xf32> to vector<2x16x128xbf16>
    %64 = vector.extract_strided_slice %40 {offsets = [0, 0], sizes = [16, 128], strides = [1, 1]} : vector<16x256xf32> to vector<16x128xf32>
    %65 = vector.extract_strided_slice %40 {offsets = [0, 128], sizes = [16, 128], strides = [1, 1]} : vector<16x256xf32> to vector<16x128xf32>
    %66 = vector.shape_cast %64 : vector<16x128xf32> to vector<1x16x128xf32>
    %67 = vector.shape_cast %65 : vector<16x128xf32> to vector<1x16x128xf32>
    %68 = tpu.concatenate %66, %67 in 0 : vector<1x16x128xf32>, vector<1x16x128xf32> -> vector<2x16x128xf32>
    %69 = vector.extract_strided_slice %68 {offsets = [0, 0, 0], sizes = [2, 16, 64], strides = [1, 1, 1]} : vector<2x16x128xf32> to vector<2x16x64xf32>
    %70 = vector.extract_strided_slice %68 {offsets = [0, 0, 64], sizes = [2, 16, 64], strides = [1, 1, 1]} : vector<2x16x128xf32> to vector<2x16x64xf32>
    %cst_25 = arith.constant 0.000000e+00 : f32
    %71 = vector.broadcast %cst_25 : f32 to vector<2x16x64xf32>
    %72 = arith.subf %71, %70 : vector<2x16x64xf32>
    %73 = tpu.concatenate %72, %69 in 2 : vector<2x16x64xf32>, vector<2x16x64xf32> -> vector<2x16x128xf32>
    %74 = vector.broadcast %5 : vector<1x16x128xf32> to vector<2x16x128xf32>
    %75 = arith.mulf %68, %74 : vector<2x16x128xf32>
    %76 = vector.broadcast %7 : vector<1x16x128xf32> to vector<2x16x128xf32>
    %77 = arith.mulf %73, %76 : vector<2x16x128xf32>
    %78 = arith.addf %75, %77 : vector<2x16x128xf32>
    %79 = arith.truncf %78 : vector<2x16x128xf32> to vector<2x16x128xbf16>
    %80 = vector.extract_strided_slice %45 {offsets = [0, 0], sizes = [16, 128], strides = [1, 1]} : vector<16x256xf32> to vector<16x128xf32>
    %81 = vector.extract_strided_slice %45 {offsets = [0, 128], sizes = [16, 128], strides = [1, 1]} : vector<16x256xf32> to vector<16x128xf32>
    %82 = vector.shape_cast %80 : vector<16x128xf32> to vector<1x16x128xf32>
    %83 = vector.shape_cast %81 : vector<16x128xf32> to vector<1x16x128xf32>
    %84 = tpu.concatenate %82, %83 in 0 : vector<1x16x128xf32>, vector<1x16x128xf32> -> vector<2x16x128xf32>
    %85 = arith.truncf %84 : vector<2x16x128xf32> to vector<2x16x128xbf16>
    "tpu.trace_start"() <{level = 10 : i32, message = "nqd,nkd->nqk"}> : () -> ()
    %cst_26 = arith.constant dense<0.000000e+00> : vector<2x16x16xf32>
    %86 = tpu.matmul %63, %79, %cst_26 {dimension_numbers = #tpu.dot_dimension_numbers<[2], [2], [1], [1], [0, 0, 0, 1, 1, 1], [0], [0]>} : vector<2x16x128xbf16>, vector<2x16x128xbf16>, vector<2x16x16xf32> -> vector<2x16x16xf32>
    "tpu.trace_stop"() : () -> ()
    %cst_27 = arith.constant dense<0xFF800000> : vector<2x16xf32>
    %87 = vector.multi_reduction <maximumf>, %86, %cst_27 [2] : vector<2x16x16xf32> to vector<2x16xf32>
    %88 = vector.shape_cast %87 : vector<2x16xf32> to vector<2x16x1xf32>
    %89 = vector.broadcast %88 : vector<2x16x1xf32> to vector<2x16x16xf32>
    %90 = arith.subf %86, %89 : vector<2x16x16xf32>
    %91 = math.exp %90 : vector<2x16x16xf32>
    %cst_28 = arith.constant dense<0.000000e+00> : vector<2x16xf32>
    %92 = vector.multi_reduction <add>, %91, %cst_28 [2] : vector<2x16x16xf32> to vector<2x16xf32>
    %93 = vector.shape_cast %92 : vector<2x16xf32> to vector<2x16x1xf32>
    %94 = tpu.reciprocal %93 {approx = true} : vector<2x16x1xf32> -> vector<2x16x1xf32>
    %95 = vector.broadcast %94 : vector<2x16x1xf32> to vector<2x16x16xf32>
    %96 = arith.mulf %91, %95 : vector<2x16x16xf32>
    %97 = arith.truncf %96 : vector<2x16x16xf32> to vector<2x16x16xbf16>
    "tpu.trace_start"() <{level = 10 : i32, message = "nqk,nkd->nqd"}> : () -> ()
    %cst_29 = arith.constant dense<0.000000e+00> : vector<2x16x128xf32>
    %98 = tpu.matmul %97, %85, %cst_29 {dimension_numbers = #tpu.dot_dimension_numbers<[2], [1], [1], [2], [0, 0, 0, 1, 1, 2], [0], [0]>} : vector<2x16x16xbf16>, vector<2x16x128xbf16>, vector<2x16x128xf32> -> vector<2x16x128xf32>
    "tpu.trace_stop"() : () -> ()
    %99 = vector.extract_strided_slice %98 {offsets = [0, 0, 0], sizes = [1, 16, 128], strides = [1, 1, 1]} : vector<2x16x128xf32> to vector<1x16x128xf32>
    %100 = vector.shape_cast %99 : vector<1x16x128xf32> to vector<16x128xf32>
    %101 = vector.extract_strided_slice %98 {offsets = [1, 0, 0], sizes = [1, 16, 128], strides = [1, 1, 1]} : vector<2x16x128xf32> to vector<1x16x128xf32>
    %102 = vector.shape_cast %101 : vector<1x16x128xf32> to vector<16x128xf32>
    %103 = tpu.concatenate %100, %102 in 1 : vector<16x128xf32>, vector<16x128xf32> -> vector<16x256xf32>
    %104 = arith.truncf %103 : vector<16x256xf32> to vector<16x256xbf16>
    %c0_30 = arith.constant 0 : index
    %c0_31 = arith.constant 0 : index
    %c0_32 = arith.constant 0 : index
    %105 = vector.load %arg9[%c0_30, %c0_31, %c0_32] : memref<1x256x256xbf16, #tpu.memory_space<vmem>>, vector<1x256x256xbf16>
    %106 = vector.shape_cast %105 : vector<1x256x256xbf16> to vector<256x256xbf16>
    %cst_33 = arith.constant dense<0.000000e+00> : vector<16x256xf32>
    %107 = tpu.matmul %104, %106, %cst_33 {dimension_numbers = #tpu.dot_dimension_numbers<[1], [0], [0], [1], [0, 0, 1, 1], [], []>} : vector<16x256xbf16>, vector<256x256xbf16>, vector<16x256xf32> -> vector<16x256xf32>
    %108 = vector.broadcast %14 : vector<1x256xf32> to vector<16x256xf32>
    %109 = arith.addf %107, %108 : vector<16x256xf32>
    %110 = arith.addf %3, %109 : vector<16x256xf32>
    %111 = arith.mulf %110, %110 : vector<16x256xf32>
    %cst_34 = arith.constant dense<0.000000e+00> : vector<16xf32>
    %112 = vector.multi_reduction <add>, %111, %cst_34 [1] : vector<16x256xf32> to vector<16xf32>
    %113 = vector.shape_cast %112 : vector<16xf32> to vector<16x1xf32>
    %cst_35 = arith.constant 2.560000e+02 : f32
    %114 = vector.broadcast %cst_35 : f32 to vector<16x1xf32>
    %115 = arith.divf %113, %114 : vector<16x1xf32>
    %cst_36 = arith.constant 1.1920929E-7 : f32
    %116 = vector.broadcast %cst_36 : f32 to vector<16x1xf32>
    %117 = arith.addf %115, %116 : vector<16x1xf32>
    %118 = math.rsqrt %117 : vector<16x1xf32>
    %119 = vector.broadcast %118 : vector<16x1xf32> to vector<16x256xf32>
    %120 = arith.mulf %110, %119 : vector<16x256xf32>
    %121 = vector.broadcast %15 : vector<1x256xf32> to vector<16x256xf32>
    %122 = arith.mulf %120, %121 : vector<16x256xf32>
    %123 = arith.truncf %122 : vector<16x256xf32> to vector<16x256xbf16>
    %c0_37 = arith.constant 0 : index
    %c0_38 = arith.constant 0 : index
    %c0_39 = arith.constant 0 : index
    %124 = vector.load %arg10[%c0_37, %c0_38, %c0_39] : memref<1x256x256xbf16, #tpu.memory_space<vmem>>, vector<1x256x256xbf16>
    %125 = vector.shape_cast %124 : vector<1x256x256xbf16> to vector<256x256xbf16>
    %cst_40 = arith.constant dense<0.000000e+00> : vector<16x256xf32>
    %126 = tpu.matmul %123, %125, %cst_40 {dimension_numbers = #tpu.dot_dimension_numbers<[1], [0], [0], [1], [0, 0, 1, 1], [], []>} : vector<16x256xbf16>, vector<256x256xbf16>, vector<16x256xf32> -> vector<16x256xf32>
    %127 = vector.broadcast %16 : vector<1x256xf32> to vector<16x256xf32>
    %128 = arith.addf %126, %127 : vector<16x256xf32>
    %129 = arith.truncf %128 : vector<16x256xf32> to vector<16x256xbf16>
    %c0_41 = arith.constant 0 : index
    %c0_42 = arith.constant 0 : index
    %c0_43 = arith.constant 0 : index
    %130 = vector.load %arg11[%c0_41, %c0_42, %c0_43] : memref<1x256x512xbf16, #tpu.memory_space<vmem>>, vector<1x256x512xbf16>
    %131 = vector.shape_cast %130 : vector<1x256x512xbf16> to vector<256x512xbf16>
    %cst_44 = arith.constant dense<0.000000e+00> : vector<16x512xf32>
    %132 = tpu.matmul %129, %131, %cst_44 {dimension_numbers = #tpu.dot_dimension_numbers<[1], [0], [0], [1], [0, 0, 1, 1], [], []>} : vector<16x256xbf16>, vector<256x512xbf16>, vector<16x512xf32> -> vector<16x512xf32>
    %133 = vector.extract_strided_slice %132 {offsets = [0, 0], sizes = [16, 256], strides = [1, 1]} : vector<16x512xf32> to vector<16x256xf32>
    %134 = vector.extract_strided_slice %132 {offsets = [0, 256], sizes = [16, 256], strides = [1, 1]} : vector<16x512xf32> to vector<16x256xf32>
    %135 = arith.mulf %133, %134 : vector<16x256xf32>
    %136 = arith.negf %134 : vector<16x256xf32>
    %137 = math.exp %136 : vector<16x256xf32>
    %cst_45 = arith.constant 1.000000e+00 : f32
    %138 = vector.broadcast %cst_45 : f32 to vector<16x256xf32>
    %139 = arith.addf %138, %137 : vector<16x256xf32>
    %140 = arith.divf %138, %139 : vector<16x256xf32>
    %141 = arith.mulf %135, %140 : vector<16x256xf32>
    %142 = arith.truncf %141 : vector<16x256xf32> to vector<16x256xbf16>
    %c0_46 = arith.constant 0 : index
    %c0_47 = arith.constant 0 : index
    %c0_48 = arith.constant 0 : index
    %143 = vector.load %arg12[%c0_46, %c0_47, %c0_48] : memref<1x256x256xbf16, #tpu.memory_space<vmem>>, vector<1x256x256xbf16>
    %144 = vector.shape_cast %143 : vector<1x256x256xbf16> to vector<256x256xbf16>
    %cst_49 = arith.constant dense<0.000000e+00> : vector<16x256xf32>
    %145 = tpu.matmul %142, %144, %cst_49 {dimension_numbers = #tpu.dot_dimension_numbers<[1], [0], [0], [1], [0, 0, 1, 1], [], []>} : vector<16x256xbf16>, vector<256x256xbf16>, vector<16x256xf32> -> vector<16x256xf32>
    %146 = vector.broadcast %17 : vector<1x256xf32> to vector<16x256xf32>
    %147 = arith.addf %145, %146 : vector<16x256xf32>
    %148 = arith.addf %122, %147 : vector<16x256xf32>
    %c0_50 = arith.constant 0 : index
    %c0_51 = arith.constant 0 : index
    %149 = vector.load %arg17[%c0_50, %c0_51] : memref<16x256xf32, #tpu.memory_space<vmem>>, vector<16x256xf32>
    tpu.vector_store %arg17[%c0_50, %c0_51], %148 {strides = array<i32>} : memref<16x256xf32, #tpu.memory_space<vmem>>, vector<16x256xf32>,
    %c1_i32 = arith.constant 1 : i32
    %150 = arith.cmpi eq, %arg1, %c1_i32 : i32
    %151 = arith.extui %150 : i1 to i32
    %c0_i32_52 = arith.constant 0 : i32
    %152 = arith.cmpi ne, %151, %c0_i32_52 : i32
    scf.if %152 {
      %c0_53 = arith.constant 0 : index
      %c0_54 = arith.constant 0 : index
      %153 = vector.load %arg17[%c0_53, %c0_54] : memref<16x256xf32, #tpu.memory_space<vmem>>, vector<16x256xf32>
      %c0_55 = arith.constant 0 : index
      %c0_56 = arith.constant 0 : index
      %154 = vector.load %arg13[%c0_55, %c0_56] : memref<1x256xf32, #tpu.memory_space<vmem>>, vector<1x256xf32>
      %155 = arith.mulf %153, %153 : vector<16x256xf32>
      %cst_57 = arith.constant dense<0.000000e+00> : vector<16xf32>
      %156 = vector.multi_reduction <add>, %155, %cst_57 [1] : vector<16x256xf32> to vector<16xf32>
      %157 = vector.shape_cast %156 : vector<16xf32> to vector<16x1xf32>
      %cst_58 = arith.constant 2.560000e+02 : f32
      %158 = vector.broadcast %cst_58 : f32 to vector<16x1xf32>
      %159 = arith.divf %157, %158 : vector<16x1xf32>
      %cst_59 = arith.constant 1.1920929E-7 : f32
      %160 = vector.broadcast %cst_59 : f32 to vector<16x1xf32>
      %161 = arith.addf %159, %160 : vector<16x1xf32>
      %162 = math.rsqrt %161 : vector<16x1xf32>
      %163 = vector.broadcast %162 : vector<16x1xf32> to vector<16x256xf32>
      %164 = arith.mulf %153, %163 : vector<16x256xf32>
      %165 = vector.broadcast %154 : vector<1x256xf32> to vector<16x256xf32>
      %166 = arith.mulf %164, %165 : vector<16x256xf32>
      %167 = vector.shape_cast %166 : vector<16x256xf32> to vector<1x16x256xf32>
      %cst_60 = arith.constant dense<0.000000e+00> : vector<1x256xf32>
      %168 = vector.multi_reduction <add>, %167, %cst_60 [1] : vector<1x16x256xf32> to vector<1x256xf32>
      %cst_61 = arith.constant 1.600000e+01 : f32
      %169 = vector.broadcast %cst_61 : f32 to vector<1x256xf32>
      %170 = arith.divf %168, %169 : vector<1x256xf32>
      %171 = arith.truncf %170 : vector<1x256xf32> to vector<1x256xbf16>
      %c0_62 = arith.constant 0 : index
      %c0_63 = arith.constant 0 : index
      %172 = vector.load %arg14[%c0_62, %c0_63] : memref<256x128xbf16, #tpu.memory_space<vmem>>, vector<256x128xbf16>
      %cst_64 = arith.constant dense<0.000000e+00> : vector<1x128xf32>
      %173 = tpu.matmul %171, %172, %cst_64 {dimension_numbers = #tpu.dot_dimension_numbers<[1], [0], [0], [1], [0, 0, 1, 1], [], []>} : vector<1x256xbf16>, vector<256x128xbf16>, vector<1x128xf32> -> vector<1x128xf32>
      %c0_65 = arith.constant 0 : index
      %c0_66 = arith.constant 0 : index
      %174 = vector.load %arg15[%c0_65, %c0_66] : memref<1x128xf32, #tpu.memory_space<vmem>>, vector<1x128xf32>
      %175 = arith.addf %173, %174 : vector<1x128xf32>
      %c0_67 = arith.constant 0 : index
      %c0_68 = arith.constant 0 : index
      %c0_69 = arith.constant 0 : index
      %176 = vector.load %arg16[%c0_67, %c0_68, %c0_69] : memref<1x1x128xf32, #tpu.memory_space<vmem>>, vector<1x1x128xf32>
      %177 = vector.shape_cast %176 : vector<1x1x128xf32> to vector<1x128xf32>
      %178 = vector.shape_cast %175 : vector<1x128xf32> to vector<1x1x128xf32>
      tpu.vector_store %arg16[%c0_67, %c0_68, %c0_69], %178 {strides = array<i32>} : memref<1x1x128xf32, #tpu.memory_space<vmem>>, vector<1x1x128xf32>,
    } else {
    }
    return
  }
  func.func @transform_1(%arg0: i32, %arg1: i32) -> (i32, i32) {
    %c0_i32 = arith.constant 0 : i32
    %c0_i32_0 = arith.constant 0 : i32
    %c0_i32_1 = arith.constant 0 : i32
    return %c0_i32, %c0_i32_0 : i32, i32
  }
  func.func @transform_2(%arg0: i32, %arg1: i32) -> (i32, i32) {
    %c0_i32 = arith.constant 0 : i32
    %c0_i32_0 = arith.constant 0 : i32
    %c0_i32_1 = arith.constant 0 : i32
    return %c0_i32, %c0_i32_0 : i32, i32
  }
  func.func @transform_3(%arg0: i32, %arg1: i32) -> (i32, i32, i32) {
    %c0_i32 = arith.constant 0 : i32
    %c0_i32_0 = arith.constant 0 : i32
    %c0_i32_1 = arith.constant 0 : i32
    return %arg1, %c0_i32, %c0_i32_0 : i32, i32, i32
  }
  func.func @transform_4(%arg0: i32, %arg1: i32) -> (i32, i32, i32) {
    %c0_i32 = arith.constant 0 : i32
    %c0_i32_0 = arith.constant 0 : i32
    %c0_i32_1 = arith.constant 0 : i32
    return %arg1, %c0_i32, %c0_i32_0 : i32, i32, i32
  }
  func.func @transform_5(%arg0: i32, %arg1: i32) -> (i32, i32, i32) {
    %c0_i32 = arith.constant 0 : i32
    %c0_i32_0 = arith.constant 0 : i32
    %c0_i32_1 = arith.constant 0 : i32
    return %arg1, %c0_i32, %c0_i32_0 : i32, i32, i32
  }
  func.func @transform_6(%arg0: i32, %arg1: i32) -> (i32, i32, i32) {
    %c0_i32 = arith.constant 0 : i32
    %c0_i32_0 = arith.constant 0 : i32
    %c0_i32_1 = arith.constant 0 : i32
    return %arg1, %c0_i32, %c0_i32_0 : i32, i32, i32
  }
  func.func @transform_7(%arg0: i32, %arg1: i32) -> (i32, i32, i32) {
    %c0_i32 = arith.constant 0 : i32
    %c0_i32_0 = arith.constant 0 : i32
    %c0_i32_1 = arith.constant 0 : i32
    return %arg1, %c0_i32, %c0_i32_0 : i32, i32, i32
  }
  func.func @transform_8(%arg0: i32, %arg1: i32) -> (i32, i32, i32) {
    %c0_i32 = arith.constant 0 : i32
    %c0_i32_0 = arith.constant 0 : i32
    %c0_i32_1 = arith.constant 0 : i32
    return %arg1, %c0_i32, %c0_i32_0 : i32, i32, i32
  }
  func.func @transform_9(%arg0: i32, %arg1: i32) -> (i32, i32, i32) {
    %c0_i32 = arith.constant 0 : i32
    %c0_i32_0 = arith.constant 0 : i32
    %c0_i32_1 = arith.constant 0 : i32
    return %arg1, %c0_i32, %c0_i32_0 : i32, i32, i32
  }
  func.func @transform_10(%arg0: i32, %arg1: i32) -> (i32, i32, i32) {
    %c0_i32 = arith.constant 0 : i32
    %c0_i32_0 = arith.constant 0 : i32
    %c0_i32_1 = arith.constant 0 : i32
    return %arg1, %c0_i32, %c0_i32_0 : i32, i32, i32
  }
  func.func @transform_11(%arg0: i32, %arg1: i32) -> (i32, i32) {
    %c0_i32 = arith.constant 0 : i32
    %c0_i32_0 = arith.constant 0 : i32
    %c0_i32_1 = arith.constant 0 : i32
    return %c0_i32, %c0_i32_0 : i32, i32
  }
  func.func @transform_12(%arg0: i32, %arg1: i32) -> (i32, i32) {
    %c0_i32 = arith.constant 0 : i32
    %c0_i32_0 = arith.constant 0 : i32
    %c0_i32_1 = arith.constant 0 : i32
    return %c0_i32, %c0_i32_0 : i32, i32
  }
  func.func @transform_13(%arg0: i32, %arg1: i32) -> (i32, i32) {
    %c0_i32 = arith.constant 0 : i32
    %c0_i32_0 = arith.constant 0 : i32
    %c0_i32_1 = arith.constant 0 : i32
    return %c0_i32, %c0_i32_0 : i32, i32
  }
  func.func @transform_14(%arg0: i32, %arg1: i32) -> (i32, i32, i32) {
    %c0_i32 = arith.constant 0 : i32
    %c0_i32_0 = arith.constant 0 : i32
    %c0_i32_1 = arith.constant 0 : i32
    return %arg0, %c0_i32, %c0_i32_0 : i32, i32, i32
  }
}

</mosaic_0001>

<llo_original>
// kernel: tpu_custom_call.1
$region0: #{tpu_custom_call.1}
  #allocation0 [shape = 'u32[]', space=smem, size = 0x4, offset = 0x4, fixed_abs, tag = 'smem constant byte address 0x4 - core index']
  #allocation1 [shape = 'u32[144,128]{1,0:T(1,128)}', space=vmem, size = 0x12000, scoped, tag = 'internal scratch']
  #allocation2 [shape = 'f32[16,256]{1,0:T(8,128)}', space=vmem, size = 0x4000, scoped, tag = 'scratch operand']
  #allocation3 [shape = 's32[1]{0}', space=sflag, size = 0x4, scoped, tag = 'scratch operand']
  #allocation19 [shape = 's32[]', space=sflag, size = 0x4, offset = 0, fixed_abs, tag = 'sflag constant byte address 0x0 - dummy sync flag']
  #allocation20 [shape = 's32[]', space=sflag, size = 0x4, offset = 0, fixed_abs, tag = 'sflag constant byte address 0x0 - dummy sync flag']
  #allocation21 [shape = 'u32[]', space=smem, size = 0x4, offset = 0x44, fixed_abs, tag = 'smem constant byte address 0x44 - assertion arg 0']
  #allocation22 [shape = 'u32[]', space=smem, size = 0x4, offset = 0x48, fixed_abs, tag = 'smem constant byte address 0x48 - assertion arg 1']
  %s0 = inlined_call_operand.hbm [shape: f32[32,256], index: 0, kind: input, shape index: {}]
  %s1 = inlined_call_operand.hbm [shape: f32[16,128], index: 1, kind: input, shape index: {}]
  %s2 = inlined_call_operand.hbm [shape: f32[16,128], index: 2, kind: input, shape index: {}]
  %s3 = inlined_call_operand.hbm [shape: f32[2,8,256], index: 3, kind: input, shape index: {}]
  %s4 = inlined_call_operand.hbm [shape: bf16[2,256,256], index: 4, kind: input, shape index: {}]
  %s5 = inlined_call_operand.hbm [shape: bf16[2,256,256], index: 5, kind: input, shape index: {}]
  %s6 = inlined_call_operand.hbm [shape: bf16[2,256,256], index: 6, kind: input, shape index: {}]
  %s7 = inlined_call_operand.hbm [shape: bf16[2,256,256], index: 7, kind: input, shape index: {}]
  %s8 = inlined_call_operand.hbm [shape: bf16[2,256,256], index: 8, kind: input, shape index: {}]
  %s9 = inlined_call_operand.hbm [shape: bf16[2,256,512], index: 9, kind: input, shape index: {}]
  %s10 = inlined_call_operand.hbm [shape: bf16[2,256,256], index: 10, kind: input, shape index: {}]
  %s11 = inlined_call_operand.vmem [shape: f32[1,256], index: 11, kind: input, shape index: {}]
  %s12 = inlined_call_operand.hbm [shape: bf16[256,128], index: 12, kind: input, shape index: {}]
  %s13 = inlined_call_operand.vmem [shape: f32[1,128], index: 13, kind: input, shape index: {}]
  %s14 = inlined_call_operand.hbm [shape: f32[2,1,128], index: 14, kind: output, shape index: {}]
  %s15 = sld [smem:[#allocation0]]
  $region141: #{tpu_custom_call.1} parent=0
    _
  %s17 = ssub.s32 1, %s15
  %s18 = scalar_select 0, %s17, %s15
  $region1: #{tpu_custom_call.1} parent=0
    #allocation4 [shape = 'u8[8192]{0}', space=vmem, size = 0x2000, scoped, tag = 'input window, operand 1, single buffered']
    #allocation5 [shape = 's32[2]{0}', space=sflag, size = 0x8, scoped, tag = 'scoped memory for tpu_custom_call.1']
    #allocation6 [shape = 's32[2]{0}', space=sflag, size = 0x8, scoped, tag = 'scoped memory for tpu_custom_call.1']
    #allocation7 [shape = 'u8[8192]{0}', space=vmem, size = 0x2000, scoped, tag = 'input window, operand 2, single buffered']
    #allocation8 [shape = 's32[1]{0}', space=sflag, size = 0x4, scoped, tag = 'scoped memory for tpu_custom_call.1']
    #allocation9 [shape = 'u8[16384]{0}', space=vmem, size = 0x4000, scoped, tag = 'input window, operand 3']
    #allocation10 [shape = 'u8[262144]{0}', space=vmem, size = 0x40000, scoped, tag = 'input window, operand 4']
    #allocation11 [shape = 'u8[262144]{0}', space=vmem, size = 0x40000, scoped, tag = 'input window, operand 5']
    #allocation12 [shape = 'u8[262144]{0}', space=vmem, size = 0x40000, scoped, tag = 'input window, operand 6']
    #allocation13 [shape = 'u8[262144]{0}', space=vmem, size = 0x40000, scoped, tag = 'input window, operand 7']
    #allocation14 [shape = 'u8[262144]{0}', space=vmem, size = 0x40000, scoped, tag = 'input window, operand 8']
    #allocation15 [shape = 'u8[524288]{0}', space=vmem, size = 0x80000, scoped, tag = 'input window, operand 9']
    #allocation16 [shape = 'u8[262144]{0}', space=vmem, size = 0x40000, scoped, tag = 'input window, operand 10']
    #allocation17 [shape = 'u8[65536]{0}', space=vmem, size = 0x10000, scoped, tag = 'input window, operand 12, single buffered']
    #allocation18 [shape = 'u8[1024]{0}', space=vmem, size = 0x400, scoped, tag = 'output window, operand 0']
    %19 = vsyncpa [#allocation5], 0
    %20 = vsyncpa [#allocation8], 0
    %21 = vsyncpa [#allocation6], 0
    %s22 = scalar_lea.sflag [#allocation6], 1
    %23 = vsyncpa %s22, 0
    loop: start=0, step=1, limit=6
    $region2: #{tpu_custom_call.1} parent=1 // loop_pre_header
      _
    $region3: #{tpu_custom_call.1} parent=1 // loop_header
      %s25 = sphi 0, %s29
      %p26 = scmp.ge.s32.totalorder %s25, 6
      %s32 = sphi 0, %s44
      %s33 = sphi 0, %s40
      %s34 = sphi 0, %s32
      %s35 = sphi 0, %s33
      %s36 = sphi 0, %s34
      %s37 = sphi 0, %s35
      %s45 = sphi 0, %s45
      %s47 = sphi 0, %s45
      %s48 = sphi 0, %s47
      %s62 = sphi 0, %s48
      %s66 = sphi 0, %s66
      %s68 = sphi 0, %s66
      %s69 = sphi 0, %s68
      %s83 = sphi 0, %s69
      %s89 = sphi 0, %s91
      %s92 = sphi 0, %s89
      %s93 = sphi 0, %s92
      %s109 = sphi 0, %s93
      %s115 = sphi 0, %s117
      %s118 = sphi 0, %s115
      %s119 = sphi 0, %s118
      %s135 = sphi 0, %s119
      %s141 = sphi 0, %s143
      %s144 = sphi 0, %s141
      %s145 = sphi 0, %s144
      %s161 = sphi 0, %s145
      %s167 = sphi 0, %s169
      %s170 = sphi 0, %s167
      %s171 = sphi 0, %s170
      %s187 = sphi 0, %s171
      %s193 = sphi 0, %s195
      %s196 = sphi 0, %s193
      %s197 = sphi 0, %s196
      %s213 = sphi 0, %s197
      %s219 = sphi 0, %s221
      %s222 = sphi 0, %s219
      %s223 = sphi 0, %s222
      %s239 = sphi 0, %s223
      %s245 = sphi 0, %s247
      %s248 = sphi 0, %s245
      %s249 = sphi 0, %s248
      %s265 = sphi 0, %s249
      %s271 = sphi 0, %s273
      %s274 = sphi 0, %s271
      %s275 = sphi 0, %s274
      %s291 = sphi 0, %s275
      %s295 = sphi 0, %s295
      %s297 = sphi 0, %s295
      %s298 = sphi 0, %s297
      %s312 = sphi 0, %s298
      %s316 = sphi 0, %s316
      %s318 = sphi 0, %s316
      %s319 = sphi 0, %s318
      %s333 = sphi 0, %s319
      %s337 = sphi 0, %s337
      %s339 = sphi 0, %s337
      %s340 = sphi 0, %s339
      %s354 = sphi 0, %s340
      %s360 = sphi 0, %s362
      %s363 = sphi 0, %s360
      %s364 = sphi 0, %s363
      %s380 = sphi 0, %s364
    $region4: #{tpu_custom_call.1} parent=1 // loop_header_branch
      %28 = sbr.rel (%p26) target = $region8
    $region5: #{tpu_custom_call.1} parent=1 // loop_body
      %s30 = ssub.s32 %s25, 1
      %s31 = ssub.s32 %s25, 2
      %s38 = sadd.s32 1, %s33
      %p39 = scmp.ge.s32.totalorder %s38, 2
      %s40 = scalar_select %p39, 0, %s38
      %s41 = sadd.s32 1, %s32
      %s42 = scalar_select %p39, %s41, %s32
      %p43 = scmp.ge.s32.totalorder %s42, 2
      %s44 = scalar_select %p43, 0, %s42
      %s46 = sadd.s32 %s45, 1
      %p49 = scmp.eq.s32.totalorder %s25, 3
      %p50 = scmp.ne.s32.totalorder %s45, %s47
      %p51 = scmp.eq.s32.totalorder %s25, 0
      %p52 = por %p50, %p51
      %p53 = scmp.ne.s32.totalorder %s45, %s47
      %p54 = scmp.eq.s32.totalorder %s30, 3
      %p55 = por %p53, %p54
      %p56 = scmp.ne.s32.totalorder %s47, %s48
      %p57 = scmp.eq.s32.totalorder %s30, 0
      %p58 = por %p56, %p57
      %p59 = scmp.ne.s32.totalorder %s47, %s48
      %p60 = scmp.eq.s32.totalorder %s31, 3
      %p61 = por %p59, %p60
      %p63 = scmp.ne.s32.totalorder %s48, %s62
      %p64 = scmp.eq.s32.totalorder %s31, 0
      %p65 = por %p63, %p64
      %s67 = sadd.s32 %s66, 1
      %p70 = scmp.eq.s32.totalorder %s25, 3
      %p71 = scmp.ne.s32.totalorder %s66, %s68
      %p72 = scmp.eq.s32.totalorder %s25, 0
      %p73 = por %p71, %p72
      %p74 = scmp.ne.s32.totalorder %s66, %s68
      %p75 = scmp.eq.s32.totalorder %s30, 3
      %p76 = por %p74, %p75
      %p77 = scmp.ne.s32.totalorder %s68, %s69
      %p78 = scmp.eq.s32.totalorder %s30, 0
      %p79 = por %p77, %p78
      %p80 = scmp.ne.s32.totalorder %s68, %s69
      %p81 = scmp.eq.s32.totalorder %s31, 3
      %p82 = por %p80, %p81
      %p84 = scmp.ne.s32.totalorder %s69, %s83
      %p85 = scmp.eq.s32.totalorder %s31, 0
      %p86 = por %p84, %p85
      %s87 = ssub.s32 %s33, %s40
      %p88 = scmp.eq.s32.totalorder %s87, 0
      %s90 = sadd.s32 %s89, 1
      %s91 = scalar_select %p88, %s89, %s90
      %p94 = pneg %p88
      %p95 = scmp.eq.s32.totalorder %s25, 3
      %p96 = por %p94, %p95
      %p97 = scmp.ne.s32.totalorder %s89, %s92
      %p98 = scmp.eq.s32.totalorder %s25, 0
      %p99 = por %p97, %p98
      %p100 = scmp.ne.s32.totalorder %s89, %s92
      %p101 = scmp.eq.s32.totalorder %s30, 3
      %p102 = por %p100, %p101
      %p103 = scmp.ne.s32.totalorder %s92, %s93
      %p104 = scmp.eq.s32.totalorder %s30, 0
      %p105 = por %p103, %p104
      %p106 = scmp.ne.s32.totalorder %s92, %s93
      %p107 = scmp.eq.s32.totalorder %s31, 3
      %p108 = por %p106, %p107
      %p110 = scmp.ne.s32.totalorder %s93, %s109
      %p111 = scmp.eq.s32.totalorder %s31, 0
      %p112 = por %p110, %p111
      %s113 = ssub.s32 %s33, %s40
      %p114 = scmp.eq.s32.totalorder %s113, 0
      %s116 = sadd.s32 %s115, 1
      %s117 = scalar_select %p114, %s115, %s116
      %p120 = pneg %p114
      %p121 = scmp.eq.s32.totalorder %s25, 3
      %p122 = por %p120, %p121
      %p123 = scmp.ne.s32.totalorder %s115, %s118
      %p124 = scmp.eq.s32.totalorder %s25, 0
      %p125 = por %p123, %p124
      %p126 = scmp.ne.s32.totalorder %s115, %s118
      %p127 = scmp.eq.s32.totalorder %s30, 3
      %p128 = por %p126, %p127
      %p129 = scmp.ne.s32.totalorder %s118, %s119
      %p130 = scmp.eq.s32.totalorder %s30, 0
      %p131 = por %p129, %p130
      %p132 = scmp.ne.s32.totalorder %s118, %s119
      %p133 = scmp.eq.s32.totalorder %s31, 3
      %p134 = por %p132, %p133
      %p136 = scmp.ne.s32.totalorder %s119, %s135
      %p137 = scmp.eq.s32.totalorder %s31, 0
      %p138 = por %p136, %p137
      %s139 = ssub.s32 %s33, %s40
      %p140 = scmp.eq.s32.totalorder %s139, 0
      %s142 = sadd.s32 %s141, 1
      %s143 = scalar_select %p140, %s141, %s142
      %p146 = pneg %p140
      %p147 = scmp.eq.s32.totalorder %s25, 3
      %p148 = por %p146, %p147
      %p149 = scmp.ne.s32.totalorder %s141, %s144
      %p150 = scmp.eq.s32.totalorder %s25, 0
      %p151 = por %p149, %p150
      %p152 = scmp.ne.s32.totalorder %s141, %s144
      %p153 = scmp.eq.s32.totalorder %s30, 3
      %p154 = por %p152, %p153
      %p155 = scmp.ne.s32.totalorder %s144, %s145
      %p156 = scmp.eq.s32.totalorder %s30, 0
      %p157 = por %p155, %p156
      %p158 = scmp.ne.s32.totalorder %s144, %s145
      %p159 = scmp.eq.s32.totalorder %s31, 3
      %p160 = por %p158, %p159
      %p162 = scmp.ne.s32.totalorder %s145, %s161
      %p163 = scmp.eq.s32.totalorder %s31, 0
      %p164 = por %p162, %p163
      %s165 = ssub.s32 %s33, %s40
      %p166 = scmp.eq.s32.totalorder %s165, 0
      %s168 = sadd.s32 %s167, 1
      %s169 = scalar_select %p166, %s167, %s168
      %p172 = pneg %p166
      %p173 = scmp.eq.s32.totalorder %s25, 3
      %p174 = por %p172, %p173
      %p175 = scmp.ne.s32.totalorder %s167, %s170
      %p176 = scmp.eq.s32.totalorder %s25, 0
      %p177 = por %p175, %p176
      %p178 = scmp.ne.s32.totalorder %s167, %s170
      %p179 = scmp.eq.s32.totalorder %s30, 3
      %p180 = por %p178, %p179
      %p181 = scmp.ne.s32.totalorder %s170, %s171
      %p182 = scmp.eq.s32.totalorder %s30, 0
      %p183 = por %p181, %p182
      %p184 = scmp.ne.s32.totalorder %s170, %s171
      %p185 = scmp.eq.s32.totalorder %s31, 3
      %p186 = por %p184, %p185
      %p188 = scmp.ne.s32.totalorder %s171, %s187
      %p189 = scmp.eq.s32.totalorder %s31, 0
      %p190 = por %p188, %p189
      %s191 = ssub.s32 %s33, %s40
      %p192 = scmp.eq.s32.totalorder %s191, 0
      %s194 = sadd.s32 %s193, 1
      %s195 = scalar_select %p192, %s193, %s194
      %p198 = pneg %p192
      %p199 = scmp.eq.s32.totalorder %s25, 3
      %p200 = por %p198, %p199
      %p201 = scmp.ne.s32.totalorder %s193, %s196
      %p202 = scmp.eq.s32.totalorder %s25, 0
      %p203 = por %p201, %p202
      %p204 = scmp.ne.s32.totalorder %s193, %s196
      %p205 = scmp.eq.s32.totalorder %s30, 3
      %p206 = por %p204, %p205
      %p207 = scmp.ne.s32.totalorder %s196, %s197
      %p208 = scmp.eq.s32.totalorder %s30, 0
      %p209 = por %p207, %p208
      %p210 = scmp.ne.s32.totalorder %s196, %s197
      %p211 = scmp.eq.s32.totalorder %s31, 3
      %p212 = por %p210, %p211
      %p214 = scmp.ne.s32.totalorder %s197, %s213
      %p215 = scmp.eq.s32.totalorder %s31, 0
      %p216 = por %p214, %p215
      %s217 = ssub.s32 %s33, %s40
      %p218 = scmp.eq.s32.totalorder %s217, 0
      %s220 = sadd.s32 %s219, 1
      %s221 = scalar_select %p218, %s219, %s220
      %p224 = pneg %p218
      %p225 = scmp.eq.s32.totalorder %s25, 3
      %p226 = por %p224, %p225
      %p227 = scmp.ne.s32.totalorder %s219, %s222
      %p228 = scmp.eq.s32.totalorder %s25, 0
      %p229 = por %p227, %p228
      %p230 = scmp.ne.s32.totalorder %s219, %s222
      %p231 = scmp.eq.s32.totalorder %s30, 3
      %p232 = por %p230, %p231
      %p233 = scmp.ne.s32.totalorder %s222, %s223
      %p234 = scmp.eq.s32.totalorder %s30, 0
      %p235 = por %p233, %p234
      %p236 = scmp.ne.s32.totalorder %s222, %s223
      %p237 = scmp.eq.s32.totalorder %s31, 3
      %p238 = por %p236, %p237
      %p240 = scmp.ne.s32.totalorder %s223, %s239
      %p241 = scmp.eq.s32.totalorder %s31, 0
      %p242 = por %p240, %p241
      %s243 = ssub.s32 %s33, %s40
      %p244 = scmp.eq.s32.totalorder %s243, 0
      %s246 = sadd.s32 %s245, 1
      %s247 = scalar_select %p244, %s245, %s246
      %p250 = pneg %p244
      %p251 = scmp.eq.s32.totalorder %s25, 3
      %p252 = por %p250, %p251
      %p253 = scmp.ne.s32.totalorder %s245, %s248
      %p254 = scmp.eq.s32.totalorder %s25, 0
      %p255 = por %p253, %p254
      %p256 = scmp.ne.s32.totalorder %s245, %s248
      %p257 = scmp.eq.s32.totalorder %s30, 3
      %p258 = por %p256, %p257
      %p259 = scmp.ne.s32.totalorder %s248, %s249
      %p260 = scmp.eq.s32.totalorder %s30, 0
      %p261 = por %p259, %p260
      %p262 = scmp.ne.s32.totalorder %s248, %s249
      %p263 = scmp.eq.s32.totalorder %s31, 3
      %p264 = por %p262, %p263
      %p266 = scmp.ne.s32.totalorder %s249, %s265
      %p267 = scmp.eq.s32.totalorder %s31, 0
      %p268 = por %p266, %p267
      %s269 = ssub.s32 %s33, %s40
      %p270 = scmp.eq.s32.totalorder %s269, 0
      %s272 = sadd.s32 %s271, 1
      %s273 = scalar_select %p270, %s271, %s272
      %p276 = pneg %p270
      %p277 = scmp.eq.s32.totalorder %s25, 3
      %p278 = por %p276, %p277
      %p279 = scmp.ne.s32.totalorder %s271, %s274
      %p280 = scmp.eq.s32.totalorder %s25, 0
      %p281 = por %p279, %p280
      %p282 = scmp.ne.s32.totalorder %s271, %s274
      %p283 = scmp.eq.s32.totalorder %s30, 3
      %p284 = por %p282, %p283
      %p285 = scmp.ne.s32.totalorder %s274, %s275
      %p286 = scmp.eq.s32.totalorder %s30, 0
      %p287 = por %p285, %p286
      %p288 = scmp.ne.s32.totalorder %s274, %s275
      %p289 = scmp.eq.s32.totalorder %s31, 3
      %p290 = por %p288, %p289
      %p292 = scmp.ne.s32.totalorder %s275, %s291
      %p293 = scmp.eq.s32.totalorder %s31, 0
      %p294 = por %p292, %p293
      %s296 = sadd.s32 %s295, 1
      %p299 = scmp.eq.s32.totalorder %s25, 3
      %p300 = scmp.ne.s32.totalorder %s295, %s297
      %p301 = scmp.eq.s32.totalorder %s25, 0
      %p302 = por %p300, %p301
      %p303 = scmp.ne.s32.totalorder %s295, %s297
      %p304 = scmp.eq.s32.totalorder %s30, 3
      %p305 = por %p303, %p304
      %p306 = scmp.ne.s32.totalorder %s297, %s298
      %p307 = scmp.eq.s32.totalorder %s30, 0
      %p308 = por %p306, %p307
      %p309 = scmp.ne.s32.totalorder %s297, %s298
      %p310 = scmp.eq.s32.totalorder %s31, 3
      %p311 = por %p309, %p310
      %p313 = scmp.ne.s32.totalorder %s298, %s312
      %p314 = scmp.eq.s32.totalorder %s31, 0
      %p315 = por %p313, %p314
      %s317 = sadd.s32 %s316, 1
      %p320 = scmp.eq.s32.totalorder %s25, 3
      %p321 = scmp.ne.s32.totalorder %s316, %s318
      %p322 = scmp.eq.s32.totalorder %s25, 0
      %p323 = por %p321, %p322
      %p324 = scmp.ne.s32.totalorder %s316, %s318
      %p325 = scmp.eq.s32.totalorder %s30, 3
      %p326 = por %p324, %p325
      %p327 = scmp.ne.s32.totalorder %s318, %s319
      %p328 = scmp.eq.s32.totalorder %s30, 0
      %p329 = por %p327, %p328
      %p330 = scmp.ne.s32.totalorder %s318, %s319
      %p331 = scmp.eq.s32.totalorder %s31, 3
      %p332 = por %p330, %p331
      %p334 = scmp.ne.s32.totalorder %s319, %s333
      %p335 = scmp.eq.s32.totalorder %s31, 0
      %p336 = por %p334, %p335
      %s338 = sadd.s32 %s337, 1
      %p341 = scmp.eq.s32.totalorder %s25, 3
      %p342 = scmp.ne.s32.totalorder %s337, %s339
      %p343 = scmp.eq.s32.totalorder %s25, 0
      %p344 = por %p342, %p343
      %p345 = scmp.ne.s32.totalorder %s337, %s339
      %p346 = scmp.eq.s32.totalorder %s30, 3
      %p347 = por %p345, %p346
      %p348 = scmp.ne.s32.totalorder %s339, %s340
      %p349 = scmp.eq.s32.totalorder %s30, 0
      %p350 = por %p348, %p349
      %p351 = scmp.ne.s32.totalorder %s339, %s340
      %p352 = scmp.eq.s32.totalorder %s31, 3
      %p353 = por %p351, %p352
      %p355 = scmp.ne.s32.totalorder %s340, %s354
      %p356 = scmp.eq.s32.totalorder %s31, 0
      %p357 = por %p355, %p356
      %s358 = ssub.s32 %s32, %s44
      %p359 = scmp.eq.s32.totalorder %s358, 0
      %s361 = sadd.s32 %s360, 1
      %s362 = scalar_select %p359, %s360, %s361
      %p365 = pneg %p359
      %p366 = scmp.eq.s32.totalorder %s25, 3
      %p367 = por %p365, %p366
      %p368 = scmp.ne.s32.totalorder %s360, %s363
      %p369 = scmp.eq.s32.totalorder %s25, 0
      %p370 = por %p368, %p369
      %p371 = scmp.ne.s32.totalorder %s360, %s363
      %p372 = scmp.eq.s32.totalorder %s30, 3
      %p373 = por %p371, %p372
      %p374 = scmp.ne.s32.totalorder %s363, %s364
      %p375 = scmp.eq.s32.totalorder %s30, 0
      %p376 = por %p374, %p375
      %p377 = scmp.ne.s32.totalorder %s363, %s364
      %p378 = scmp.eq.s32.totalorder %s31, 3
      %p379 = por %p377, %p378
      %p381 = scmp.ne.s32.totalorder %s364, %s380
      %p382 = scmp.eq.s32.totalorder %s31, 0
      %p383 = por %p381, %p382
      %p384 = scmp.le.s32.totalorder 1, %s25
      %p385 = scmp.lt.s32.totalorder %s25, 5
      %p386 = pnand %p384, %p385
      %p387 = pneg %p386
      // Predicated region
      $region9: #{tpu_custom_call.1} parent=5 // pred_check
        _
      $region10: #{tpu_custom_call.1} parent=5 // pred_check_branch
        %389 = sbr.rel (%p386) target = $region12
      $region11: #{tpu_custom_call.1} parent=5 // pred_region
        %s390 = ssub.s32 %s25, 1
        // Predicated region
        $region13: #{tpu_custom_call.1} parent=11 // pred_check
          %p391 = pneg %p58
        $region14: #{tpu_custom_call.1} parent=11 // pred_check_branch
          %393 = sbr.rel (%p391) target = $region16
        $region15: #{tpu_custom_call.1} parent=11 // pred_region
          %s395 = ssub.s32 256, 256
          %396 = vsyncadd [#allocation5], %s395
          %s397 = sshll.u32 [#allocation4], 4
          %s398 = int_to_ptr.vmem [resolvable:$true] %s397
          %403 = dma.hbm_to_vmem [thread:$0]  %s1, 256, %s398, [#allocation5], 128, 128, 8
        $region16: #{tpu_custom_call.1} parent=11 // pred_fallthru
          _
        // Predicated region
        $region17: #{tpu_custom_call.1} parent=11 // pred_check
          %p404 = pneg %p79
        $region18: #{tpu_custom_call.1} parent=11 // pred_check_branch
          %406 = sbr.rel (%p404) target = $region20
        $region19: #{tpu_custom_call.1} parent=11 // pred_region
          %s408 = ssub.s32 256, 256
          %409 = vsyncadd [#allocation8], %s408
          %s410 = sshll.u32 [#allocation7], 4
          %s411 = int_to_ptr.vmem [resolvable:$true] %s410
          %416 = dma.hbm_to_vmem [thread:$0]  %s2, 256, %s411, [#allocation8], 128, 128, 8
        $region20: #{tpu_custom_call.1} parent=11 // pred_fallthru
          _
        // Predicated region
        $region21: #{tpu_custom_call.1} parent=11 // pred_check
          %p417 = pneg %p308
        $region22: #{tpu_custom_call.1} parent=11 // pred_check_branch
          %419 = sbr.rel (%p417) target = $region24
        $region23: #{tpu_custom_call.1} parent=11 // pred_region
          _
        $region24: #{tpu_custom_call.1} parent=11 // pred_fallthru
          _
        // Predicated region
        $region25: #{tpu_custom_call.1} parent=11 // pred_check
          %p420 = pneg %p329
        $region26: #{tpu_custom_call.1} parent=11 // pred_check_branch
          %422 = sbr.rel (%p420) target = $region28
        $region27: #{tpu_custom_call.1} parent=11 // pred_region
          %s424 = ssub.s32 2048, 2048
          %425 = vsyncadd [#allocation8], %s424
          %s426 = sshll.u32 [#allocation17], 4
          %s427 = int_to_ptr.vmem [resolvable:$true] %s426
          %432 = dma.hbm_to_vmem [thread:$0]  %s12, 2048, %s427, [#allocation8], 64, 64, 4
        $region28: #{tpu_custom_call.1} parent=11 // pred_fallthru
          _
        // Predicated region
        $region29: #{tpu_custom_call.1} parent=11 // pred_check
          %p433 = pneg %p350
        $region30: #{tpu_custom_call.1} parent=11 // pred_check_branch
          %435 = sbr.rel (%p433) target = $region32
        $region31: #{tpu_custom_call.1} parent=11 // pred_region
          _
        $region32: #{tpu_custom_call.1} parent=11 // pred_fallthru
          _
      $region12: #{tpu_custom_call.1} parent=5 // pred_fallthru
        _
      %p436 = scmp.lt.s32.totalorder %s25, 4
      // Predicated region
      $region33: #{tpu_custom_call.1} parent=5 // pred_check
        %p437 = pneg %p436
      $region34: #{tpu_custom_call.1} parent=5 // pred_check_branch
        %439 = sbr.rel (%p437) target = $region36
      $region35: #{tpu_custom_call.1} parent=5 // pred_region
        // Predicated region
        $region37: #{tpu_custom_call.1} parent=35 // pred_check
          %p440 = pneg %p99
        $region38: #{tpu_custom_call.1} parent=35 // pred_check_branch
          %442 = sbr.rel (%p440) target = $region40
        $region39: #{tpu_custom_call.1} parent=35 // pred_region
          %s443 = sand.u32 %s25, 1
          %s444 = scalar_lea.sflag [#allocation5], %s443
          %s445 = sand.u32 %s89, 1
          %s446 = smul.addr %s445, 16
          %s447 = scalar_lea.vmem [#allocation9], %s446
          %s449 = ssub.s32 256, 256
          %450 = vsyncadd %s444, %s449
          %s451 = smul.addr %s33, 2
          %s452 = smul.addr %s451, 128
          %s453 = scalar_lea.hbm %s3, %s452
          %s455 = sshll.u32 %s447, 4
          %s456 = int_to_ptr.vmem [resolvable:$true] %s455
          %458 = dma.hbm_to_vmem [thread:$0]  %s453, 256, %s456, %s444
        $region40: #{tpu_custom_call.1} parent=35 // pred_fallthru
          _
        // Predicated region
        $region41: #{tpu_custom_call.1} parent=35 // pred_check
          %p459 = pneg %p125
        $region42: #{tpu_custom_call.1} parent=35 // pred_check_branch
          %461 = sbr.rel (%p459) target = $region44
        $region43: #{tpu_custom_call.1} parent=35 // pred_region
          %s462 = sand.u32 %s25, 1
          %s463 = scalar_lea.sflag [#allocation5], %s462
          %s464 = sand.u32 %s115, 1
          %s465 = smul.addr %s464, 256
          %s466 = scalar_lea.vmem [#allocation10], %s465
          %s468 = ssub.s32 4096, 4096
          %469 = vsyncadd %s463, %s468
          %s470 = smul.addr %s33, 64
          %s471 = smul.addr %s470, 64
          %s472 = scalar_lea.hbm %s4, %s471
          %s473 = sshll.u32 %s466, 4
          %s474 = int_to_ptr.vmem [resolvable:$true] %s473
          %479 = dma.hbm_to_vmem [thread:$0]  %s472, 4096, %s474, %s463, 128, 128, 8
        $region44: #{tpu_custom_call.1} parent=35 // pred_fallthru
          _
        // Predicated region
        $region45: #{tpu_custom_call.1} parent=35 // pred_check
          %p480 = pneg %p151
        $region46: #{tpu_custom_call.1} parent=35 // pred_check_branch
          %482 = sbr.rel (%p480) target = $region48
        $region47: #{tpu_custom_call.1} parent=35 // pred_region
          %s483 = sand.u32 %s25, 1
          %s484 = scalar_lea.sflag [#allocation5], %s483
          %s485 = sand.u32 %s141, 1
          %s486 = smul.addr %s485, 256
          %s487 = scalar_lea.vmem [#allocation11], %s486
          %s489 = ssub.s32 4096, 4096
          %490 = vsyncadd %s484, %s489
          %s491 = smul.addr %s33, 64
          %s492 = smul.addr %s491, 64
          %s493 = scalar_lea.hbm %s5, %s492
          %s494 = sshll.u32 %s487, 4
          %s495 = int_to_ptr.vmem [resolvable:$true] %s494
          %500 = dma.hbm_to_vmem [thread:$0]  %s493, 4096, %s495, %s484, 128, 128, 8
        $region48: #{tpu_custom_call.1} parent=35 // pred_fallthru
          _
        // Predicated region
        $region49: #{tpu_custom_call.1} parent=35 // pred_check
          %p501 = pneg %p177
        $region50: #{tpu_custom_call.1} parent=35 // pred_check_branch
          %503 = sbr.rel (%p501) target = $region52
        $region51: #{tpu_custom_call.1} parent=35 // pred_region
          %s504 = sand.u32 %s25, 1
          %s505 = scalar_lea.sflag [#allocation5], %s504
          %s506 = sand.u32 %s167, 1
          %s507 = smul.addr %s506, 256
          %s508 = scalar_lea.vmem [#allocation12], %s507
          %s510 = ssub.s32 4096, 4096
          %511 = vsyncadd %s505, %s510
          %s512 = smul.addr %s33, 64
          %s513 = smul.addr %s512, 64
          %s514 = scalar_lea.hbm %s6, %s513
          %s515 = sshll.u32 %s508, 4
          %s516 = int_to_ptr.vmem [resolvable:$true] %s515
          %521 = dma.hbm_to_vmem [thread:$0]  %s514, 4096, %s516, %s505, 128, 128, 8
        $region52: #{tpu_custom_call.1} parent=35 // pred_fallthru
          _
        // Predicated region
        $region53: #{tpu_custom_call.1} parent=35 // pred_check
          %p522 = pneg %p203
        $region54: #{tpu_custom_call.1} parent=35 // pred_check_branch
          %524 = sbr.rel (%p522) target = $region56
        $region55: #{tpu_custom_call.1} parent=35 // pred_region
          %s525 = sand.u32 %s25, 1
          %s526 = scalar_lea.sflag [#allocation5], %s525
          %s527 = sand.u32 %s193, 1
          %s528 = smul.addr %s527, 256
          %s529 = scalar_lea.vmem [#allocation13], %s528
          %s531 = ssub.s32 4096, 4096
          %532 = vsyncadd %s526, %s531
          %s533 = smul.addr %s33, 64
          %s534 = smul.addr %s533, 64
          %s535 = scalar_lea.hbm %s7, %s534
          %s536 = sshll.u32 %s529, 4
          %s537 = int_to_ptr.vmem [resolvable:$true] %s536
          %542 = dma.hbm_to_vmem [thread:$0]  %s535, 4096, %s537, %s526, 128, 128, 8
        $region56: #{tpu_custom_call.1} parent=35 // pred_fallthru
          _
        // Predicated region
        $region57: #{tpu_custom_call.1} parent=35 // pred_check
          %p543 = pneg %p229
        $region58: #{tpu_custom_call.1} parent=35 // pred_check_branch
          %545 = sbr.rel (%p543) target = $region60
        $region59: #{tpu_custom_call.1} parent=35 // pred_region
          %s546 = sand.u32 %s25, 1
          %s547 = scalar_lea.sflag [#allocation5], %s546
          %s548 = sand.u32 %s219, 1
          %s549 = smul.addr %s548, 256
          %s550 = scalar_lea.vmem [#allocation14], %s549
          %s552 = ssub.s32 4096, 4096
          %553 = vsyncadd %s547, %s552
          %s554 = smul.addr %s33, 64
          %s555 = smul.addr %s554, 64
          %s556 = scalar_lea.hbm %s8, %s555
          %s557 = sshll.u32 %s550, 4
          %s558 = int_to_ptr.vmem [resolvable:$true] %s557
          %563 = dma.hbm_to_vmem [thread:$0]  %s556, 4096, %s558, %s547, 128, 128, 8
        $region60: #{tpu_custom_call.1} parent=35 // pred_fallthru
          _
        // Predicated region
        $region61: #{tpu_custom_call.1} parent=35 // pred_check
          %p564 = pneg %p255
        $region62: #{tpu_custom_call.1} parent=35 // pred_check_branch
          %566 = sbr.rel (%p564) target = $region64
        $region63: #{tpu_custom_call.1} parent=35 // pred_region
          %s567 = sand.u32 %s25, 1
          %s568 = scalar_lea.sflag [#allocation5], %s567
          %s569 = sand.u32 %s245, 1
          %s570 = smul.addr %s569, 512
          %s571 = scalar_lea.vmem [#allocation15], %s570
          %s573 = ssub.s32 8192, 8192
          %574 = vsyncadd %s568, %s573
          %s575 = smul.addr %s33, 128
          %s576 = smul.addr %s575, 64
          %s577 = scalar_lea.hbm %s9, %s576
          %s578 = sshll.u32 %s571, 4
          %s579 = int_to_ptr.vmem [resolvable:$true] %s578
          %584 = dma.hbm_to_vmem [thread:$0]  %s577, 8192, %s579, %s568, 256, 256, 16
        $region64: #{tpu_custom_call.1} parent=35 // pred_fallthru
          _
        // Predicated region
        $region65: #{tpu_custom_call.1} parent=35 // pred_check
          %p585 = pneg %p281
        $region66: #{tpu_custom_call.1} parent=35 // pred_check_branch
          %587 = sbr.rel (%p585) target = $region68
        $region67: #{tpu_custom_call.1} parent=35 // pred_region
          %s588 = sand.u32 %s25, 1
          %s589 = scalar_lea.sflag [#allocation5], %s588
          %s590 = sand.u32 %s271, 1
          %s591 = smul.addr %s590, 256
          %s592 = scalar_lea.vmem [#allocation16], %s591
          %s594 = ssub.s32 4096, 4096
          %595 = vsyncadd %s589, %s594
          %s596 = smul.addr %s33, 64
          %s597 = smul.addr %s596, 64
          %s598 = scalar_lea.hbm %s10, %s597
          %s599 = sshll.u32 %s592, 4
          %s600 = int_to_ptr.vmem [resolvable:$true] %s599
          %605 = dma.hbm_to_vmem [thread:$0]  %s598, 4096, %s600, %s589, 128, 128, 8
        $region68: #{tpu_custom_call.1} parent=35 // pred_fallthru
          _
      $region36: #{tpu_custom_call.1} parent=5 // pred_fallthru
        _
      %p606 = scmp.le.s32.totalorder 1, %s25
      %p607 = scmp.lt.s32.totalorder %s25, 5
      %p608 = pnand %p606, %p607
      %p609 = pneg %p608
      // Predicated region
      $region69: #{tpu_custom_call.1} parent=5 // pred_check
        _
      $region70: #{tpu_custom_call.1} parent=5 // pred_check_branch
        %611 = sbr.rel (%p608) target = $region72
      $region71: #{tpu_custom_call.1} parent=5 // pred_region
        %s612 = ssub.s32 %s25, 1
        // Predicated region
        $region73: #{tpu_custom_call.1} parent=71 // pred_check
          %p613 = pneg %p58
        $region74: #{tpu_custom_call.1} parent=71 // pred_check_branch
          %615 = sbr.rel (%p613) target = $region76
        $region75: #{tpu_custom_call.1} parent=71 // pred_region
          %616 = dma.done [#allocation5], 256
        $region76: #{tpu_custom_call.1} parent=71 // pred_fallthru
          _
        // Predicated region
        $region77: #{tpu_custom_call.1} parent=71 // pred_check
          %p617 = pneg %p79
        $region78: #{tpu_custom_call.1} parent=71 // pred_check_branch
          %619 = sbr.rel (%p617) target = $region80
        $region79: #{tpu_custom_call.1} parent=71 // pred_region
          %620 = dma.done [#allocation8], 256
        $region80: #{tpu_custom_call.1} parent=71 // pred_fallthru
          _
        %s621 = sand.u32 %s30, 1
        %s622 = scalar_lea.sflag [#allocation5], %s621
        %s623 = sand.u32 %s92, 1
        %s624 = smul.addr %s623, 16
        %s625 = scalar_lea.vmem [#allocation9], %s624
        // Predicated region
        $region81: #{tpu_custom_call.1} parent=71 // pred_check
          %p626 = pneg %p105
        $region82: #{tpu_custom_call.1} parent=71 // pred_check_branch
          %628 = sbr.rel (%p626) target = $region84
        $region83: #{tpu_custom_call.1} parent=71 // pred_region
          %629 = dma.done %s622, 256
        $region84: #{tpu_custom_call.1} parent=71 // pred_fallthru
          _
        %s630 = sand.u32 %s30, 1
        %s631 = scalar_lea.sflag [#allocation5], %s630
        %s632 = sand.u32 %s118, 1
        %s633 = smul.addr %s632, 256
        %s634 = scalar_lea.vmem [#allocation10], %s633
        // Predicated region
        $region85: #{tpu_custom_call.1} parent=71 // pred_check
          %p635 = pneg %p131
        $region86: #{tpu_custom_call.1} parent=71 // pred_check_branch
          %637 = sbr.rel (%p635) target = $region88
        $region87: #{tpu_custom_call.1} parent=71 // pred_region
          %638 = dma.done %s631, 4096
        $region88: #{tpu_custom_call.1} parent=71 // pred_fallthru
          _
        %s639 = sand.u32 %s30, 1
        %s640 = scalar_lea.sflag [#allocation5], %s639
        %s641 = sand.u32 %s144, 1
        %s642 = smul.addr %s641, 256
        %s643 = scalar_lea.vmem [#allocation11], %s642
        // Predicated region
        $region89: #{tpu_custom_call.1} parent=71 // pred_check
          %p644 = pneg %p157
        $region90: #{tpu_custom_call.1} parent=71 // pred_check_branch
          %646 = sbr.rel (%p644) target = $region92
        $region91: #{tpu_custom_call.1} parent=71 // pred_region
          %647 = dma.done %s640, 4096
        $region92: #{tpu_custom_call.1} parent=71 // pred_fallthru
          _
        %s648 = sand.u32 %s30, 1
        %s649 = scalar_lea.sflag [#allocation5], %s648
        %s650 = sand.u32 %s170, 1
        %s651 = smul.addr %s650, 256
        %s652 = scalar_lea.vmem [#allocation12], %s651
        // Predicated region
        $region93: #{tpu_custom_call.1} parent=71 // pred_check
          %p653 = pneg %p183
        $region94: #{tpu_custom_call.1} parent=71 // pred_check_branch
          %655 = sbr.rel (%p653) target = $region96
        $region95: #{tpu_custom_call.1} parent=71 // pred_region
          %656 = dma.done %s649, 4096
        $region96: #{tpu_custom_call.1} parent=71 // pred_fallthru
          _
        %s657 = sand.u32 %s30, 1
        %s658 = scalar_lea.sflag [#allocation5], %s657
        %s659 = sand.u32 %s196, 1
        %s660 = smul.addr %s659, 256
        %s661 = scalar_lea.vmem [#allocation13], %s660
        // Predicated region
        $region97: #{tpu_custom_call.1} parent=71 // pred_check
          %p662 = pneg %p209
        $region98: #{tpu_custom_call.1} parent=71 // pred_check_branch
          %664 = sbr.rel (%p662) target = $region100
        $region99: #{tpu_custom_call.1} parent=71 // pred_region
          %665 = dma.done %s658, 4096
        $region100: #{tpu_custom_call.1} parent=71 // pred_fallthru
          _
        %s666 = sand.u32 %s30, 1
        %s667 = scalar_lea.sflag [#allocation5], %s666
        %s668 = sand.u32 %s222, 1
        %s669 = smul.addr %s668, 256
        %s670 = scalar_lea.vmem [#allocation14], %s669
        // Predicated region
        $region101: #{tpu_custom_call.1} parent=71 // pred_check
          %p671 = pneg %p235
        $region102: #{tpu_custom_call.1} parent=71 // pred_check_branch
          %673 = sbr.rel (%p671) target = $region104
        $region103: #{tpu_custom_call.1} parent=71 // pred_region
          %674 = dma.done %s667, 4096
        $region104: #{tpu_custom_call.1} parent=71 // pred_fallthru
          _
        %s675 = sand.u32 %s30, 1
        %s676 = scalar_lea.sflag [#allocation5], %s675
        %s677 = sand.u32 %s248, 1
        %s678 = smul.addr %s677, 512
        %s679 = scalar_lea.vmem [#allocation15], %s678
        // Predicated region
        $region105: #{tpu_custom_call.1} parent=71 // pred_check
          %p680 = pneg %p261
        $region106: #{tpu_custom_call.1} parent=71 // pred_check_branch
          %682 = sbr.rel (%p680) target = $region108
        $region107: #{tpu_custom_call.1} parent=71 // pred_region
          %683 = dma.done %s676, 8192
        $region108: #{tpu_custom_call.1} parent=71 // pred_fallthru
          _
        %s684 = sand.u32 %s30, 1
        %s685 = scalar_lea.sflag [#allocation5], %s684
        %s686 = sand.u32 %s274, 1
        %s687 = smul.addr %s686, 256
        %s688 = scalar_lea.vmem [#allocation16], %s687
        // Predicated region
        $region109: #{tpu_custom_call.1} parent=71 // pred_check
          %p689 = pneg %p287
        $region110: #{tpu_custom_call.1} parent=71 // pred_check_branch
          %691 = sbr.rel (%p689) target = $region112
        $region111: #{tpu_custom_call.1} parent=71 // pred_region
          %692 = dma.done %s685, 4096
        $region112: #{tpu_custom_call.1} parent=71 // pred_fallthru
          _
        // Predicated region
        $region113: #{tpu_custom_call.1} parent=71 // pred_check
          %p693 = pneg %p329
        $region114: #{tpu_custom_call.1} parent=71 // pred_check_branch
          %695 = sbr.rel (%p693) target = $region116
        $region115: #{tpu_custom_call.1} parent=71 // pred_region
          %696 = dma.done [#allocation8], 2048
        $region116: #{tpu_custom_call.1} parent=71 // pred_fallthru
          _
        %p697 = pneg %p58
        %p698 = pneg %p55
        %p699 = pneg %p79
        %p700 = pneg %p76
        %s701 = sand.u32 %s30, 1
        %s702 = scalar_lea.sflag [#allocation5], %s701
        %s703 = sand.u32 %s92, 1
        %s704 = smul.addr %s703, 16
        %s705 = scalar_lea.vmem [#allocation9], %s704
        %p706 = pneg %p105
        %p707 = pneg %p102
        %s708 = sand.u32 %s30, 1
        %s709 = scalar_lea.sflag [#allocation5], %s708
        %s710 = sand.u32 %s118, 1
        %s711 = smul.addr %s710, 256
        %s712 = scalar_lea.vmem [#allocation10], %s711
        %p713 = pneg %p131
        %p714 = pneg %p128
        %s715 = sand.u32 %s30, 1
        %s716 = scalar_lea.sflag [#allocation5], %s715
        %s717 = sand.u32 %s144, 1
        %s718 = smul.addr %s717, 256
        %s719 = scalar_lea.vmem [#allocation11], %s718
        %p720 = pneg %p157
        %p721 = pneg %p154
        %s722 = sand.u32 %s30, 1
        %s723 = scalar_lea.sflag [#allocation5], %s722
        %s724 = sand.u32 %s170, 1
        %s725 = smul.addr %s724, 256
        %s726 = scalar_lea.vmem [#allocation12], %s725
        %p727 = pneg %p183
        %p728 = pneg %p180
        %s729 = sand.u32 %s30, 1
        %s730 = scalar_lea.sflag [#allocation5], %s729
        %s731 = sand.u32 %s196, 1
        %s732 = smul.addr %s731, 256
        %s733 = scalar_lea.vmem [#allocation13], %s732
        %p734 = pneg %p209
        %p735 = pneg %p206
        %s736 = sand.u32 %s30, 1
        %s737 = scalar_lea.sflag [#allocation5], %s736
        %s738 = sand.u32 %s222, 1
        %s739 = smul.addr %s738, 256
        %s740 = scalar_lea.vmem [#allocation14], %s739
        %p741 = pneg %p235
        %p742 = pneg %p232
        %s743 = sand.u32 %s30, 1
        %s744 = scalar_lea.sflag [#allocation5], %s743
        %s745 = sand.u32 %s248, 1
        %s746 = smul.addr %s745, 512
        %s747 = scalar_lea.vmem [#allocation15], %s746
        %p748 = pneg %p261
        %p749 = pneg %p258
        %s750 = sand.u32 %s30, 1
        %s751 = scalar_lea.sflag [#allocation5], %s750
        %s752 = sand.u32 %s274, 1
        %s753 = smul.addr %s752, 256
        %s754 = scalar_lea.vmem [#allocation16], %s753
        %p755 = pneg %p287
        %p756 = pneg %p284
        %p757 = pneg %p308
        %p758 = pneg %p305
        %p759 = pneg %p329
        %p760 = pneg %p326
        %p761 = pneg %p350
        %p762 = pneg %p347
        %p763 = pneg %p376
        %p764 = pneg %p373
        %s765 = sand.u32 %s363, 1
        %s766 = scalar_lea.sflag [#allocation6], %s765
        %s767 = sand.u32 %s363, 1
        %s768 = scalar_lea.vmem [#allocation18], %s767
        %p770 = scmp.eq.s32.totalorder %s35, 0
        // Predicated region
        $region117: #{tpu_custom_call.1} parent=71 // pred_check
          %p771 = pneg %p770
        $region118: #{tpu_custom_call.1} parent=71 // pred_check_branch
          %773 = sbr.rel (%p771) target = $region120
        $region119: #{tpu_custom_call.1} parent=71 // pred_region
          %s774 = smul.u32 %s34, 16
          %s775 = sshra.s32 %s774, 3
          %s776 = sand.u32 %s774, 7
          %s777 = smul.u32 %s775, 2
          %s778 = smul.addr %s777, 128
          %s779 = scalar_lea.hbm %s0, %s778
          // Predicated region
          $region121: #{tpu_custom_call.1} parent=119 // pred_check
            _
          $region122: #{tpu_custom_call.1} parent=119 // pred_check_branch
            %781 = sbr.rel target = $region124
          $region123: #{tpu_custom_call.1} parent=119 // pred_region
            %782 = sst [smem:[#allocation21]] [#allocation20]
            %783 = sst [smem:[#allocation22]] [#allocation19]
          $region124: #{tpu_custom_call.1} parent=119 // pred_fallthru
            _
          %785 = shalt.err (0)
          %s787 = sshll.u32 [#allocation2], 4
          %s788 = int_to_ptr.vmem [resolvable:$true] %s787
          %790 = dma.hbm_to_vmem [thread:$0]  %s779, 512, %s788, [#allocation3]
          %s791 = smul.u32 8, 2
          %s792 = smul.u32 %s791, 2
          %s793 = sshll.u32 %s792, 4
          %794 = dma.done [#allocation3], %s793
        $region120: #{tpu_custom_call.1} parent=71 // pred_fallthru
          _
        %v795 = vld [vmem:[#allocation2] sm:$0xff]
        %v796 = vld [vmem:[#allocation2 + $0x8] sm:$0xff]
        %v797 = vld [vmem:[#allocation2 + $0x10] sm:$0xff]
        %v798 = vld [vmem:[#allocation2 + $0x18] sm:$0xff]
        %v799 = vld [vmem:[#allocation4] sm:$0xff]
        %v800 = vld [vmem:[#allocation4 + $0x8] sm:$0xff]
        %v801 = vld [vmem:[#allocation7] sm:$0xff]
        %v802 = vld [vmem:[#allocation7 + $0x8] sm:$0xff]
        %v803 = vld [vmem:[%s625] sm:$0xff]
        %v804 = vld [vmem:[%s625 + $0x8] sm:$0xff]
        %v805 = vmul.f32 %v795, %v795
        %v806 = vmul.f32 %v796, %v796
        %v807 = vmul.f32 %v797, %v797
        %v808 = vmul.f32 %v798, %v798
        %v809 = vadd.f32 %v805, %v806
        %810 = vadd.xlane.f32.xlu0 %v809
        %v811 = vpop.xlane.xlu0 %810
        %v812 = vadd.f32 %v807, %v808
        %813 = vadd.xlane.f32.xlu0 %v812
        %v814 = vpop.xlane.xlu0 %813
        %v815 = vrcp.pop 256.0
        %v816 = vmul.f32 %v811, %v815
        %v817 = vmul.f32 %v814, %v815
        %v818 = vadd.f32 %v816, 1.1920929e-07
        %v819 = vadd.f32 %v817, 1.1920929e-07
        %v820 = vrsqrt.pop %v818
        %v821 = vrsqrt.pop %v819
        %v822 = vmul.f32 %v795, %v820
        %v823 = vmul.f32 %v796, %v820
        %v824 = vmul.f32 %v797, %v821
        %v825 = vmul.f32 %v798, %v821
        %v826 = vlaneseq
        %v827 = vshrl.u32 %v826, 7
        %v828 = vsub.s32 0, %v827
        %v829 = vrot.slane %v803, %v828
        %v830 = vlaneseq
        %v831 = vshrl.u32 %v830, 7
        %v832 = vsub.s32 0, %v831
        %v833 = vrot.slane %v804, %v832
        %v834 = vmul.f32 %v822, %v829
        %v835 = vmul.f32 %v823, %v833
        %v836 = vmul.f32 %v824, %v829
        %v837 = vmul.f32 %v825, %v833
        %v838 = vpack.c.bf16 %v836, %v834
        %v839 = vpack.c.bf16 %v837, %v835
        %v840 = vld [vmem:[%s634] sm:$0xff]
        %v841 = vld [vmem:[%s634 + $0x8] sm:$0xff]
        %v842 = vld [vmem:[%s634 + $0x10] sm:$0xff]
        %v843 = vld [vmem:[%s634 + $0x18] sm:$0xff]
        %v844 = vld [vmem:[%s634 + $0x20] sm:$0xff]
        %v845 = vld [vmem:[%s634 + $0x28] sm:$0xff]
        %v846 = vld [vmem:[%s634 + $0x30] sm:$0xff]
        %v847 = vld [vmem:[%s634 + $0x38] sm:$0xff]
        %v848 = vld [vmem:[%s634 + $0x40] sm:$0xff]
        %v849 = vld [vmem:[%s634 + $0x48] sm:$0xff]
        %v850 = vld [vmem:[%s634 + $0x50] sm:$0xff]
        %v851 = vld [vmem:[%s634 + $0x58] sm:$0xff]
        %v852 = vld [vmem:[%s634 + $0x60] sm:$0xff]
        %v853 = vld [vmem:[%s634 + $0x68] sm:$0xff]
        %v854 = vld [vmem:[%s634 + $0x70] sm:$0xff]
        %v855 = vld [vmem:[%s634 + $0x78] sm:$0xff]
        %v856 = vld [vmem:[%s634 + $0x80] sm:$0xff]
        %v857 = vld [vmem:[%s634 + $0x88] sm:$0xff]
        %v858 = vld [vmem:[%s634 + $0x90] sm:$0xff]
        %v859 = vld [vmem:[%s634 + $0x98] sm:$0xff]
        %v860 = vld [vmem:[%s634 + $0xa0] sm:$0xff]
        %v861 = vld [vmem:[%s634 + $0xa8] sm:$0xff]
        %v862 = vld [vmem:[%s634 + $0xb0] sm:$0xff]
        %v863 = vld [vmem:[%s634 + $0xb8] sm:$0xff]
        %v864 = vld [vmem:[%s634 + $0xc0] sm:$0xff]
        %v865 = vld [vmem:[%s634 + $0xc8] sm:$0xff]
        %v866 = vld [vmem:[%s634 + $0xd0] sm:$0xff]
        %v867 = vld [vmem:[%s634 + $0xd8] sm:$0xff]
        %v868 = vld [vmem:[%s634 + $0xe0] sm:$0xff]
        %v869 = vld [vmem:[%s634 + $0xe8] sm:$0xff]
        %v870 = vld [vmem:[%s634 + $0xf0] sm:$0xff]
        %v871 = vld [vmem:[%s634 + $0xf8] sm:$0xff]
        %v872 = vlaneseq
        %v873 = vshrl.u32 %v872, 7
        %v874 = vsub.s32 1, %v873
        %v875 = vrot.slane %v803, %v874
        %v876 = vlaneseq
        %v877 = vshrl.u32 %v876, 7
        %v878 = vsub.s32 1, %v877
        %v879 = vrot.slane %v804, %v878
        %v912 = vunpack.c.l.b16 %v840
        %v913 = vunpack.c.h.b16 %v840
        %v914 = vunpack.c.l.b16 %v841
        %v915 = vunpack.c.h.b16 %v841
        %v916 = vunpack.c.l.b16 %v842
        %v917 = vunpack.c.h.b16 %v842
        %v918 = vunpack.c.l.b16 %v843
        %v919 = vunpack.c.h.b16 %v843
        %v920 = vunpack.c.l.b16 %v844
        %v921 = vunpack.c.h.b16 %v844
        %v922 = vunpack.c.l.b16 %v845
        %v923 = vunpack.c.h.b16 %v845
        %v924 = vunpack.c.l.b16 %v846
        %v925 = vunpack.c.h.b16 %v846
        %v926 = vunpack.c.l.b16 %v847
        %v927 = vunpack.c.h.b16 %v847
        %v928 = vunpack.c.l.b16 %v848
        %v929 = vunpack.c.h.b16 %v848
        %v930 = vunpack.c.l.b16 %v849
        %v931 = vunpack.c.h.b16 %v849
        %v932 = vunpack.c.l.b16 %v850
        %v933 = vunpack.c.h.b16 %v850
        %v934 = vunpack.c.l.b16 %v851
        %v935 = vunpack.c.h.b16 %v851
        %v936 = vunpack.c.l.b16 %v852
        %v937 = vunpack.c.h.b16 %v852
        %v938 = vunpack.c.l.b16 %v853
        %v939 = vunpack.c.h.b16 %v853
        %v940 = vunpack.c.l.b16 %v854
        %v941 = vunpack.c.h.b16 %v854
        %v942 = vunpack.c.l.b16 %v855
        %v943 = vunpack.c.h.b16 %v855
        %v944 = vunpack.c.l.b16 %v856
        %v945 = vunpack.c.h.b16 %v856
        %v946 = vunpack.c.l.b16 %v857
        %v947 = vunpack.c.h.b16 %v857
        %v948 = vunpack.c.l.b16 %v858
        %v949 = vunpack.c.h.b16 %v858
        %v950 = vunpack.c.l.b16 %v859
        %v951 = vunpack.c.h.b16 %v859
        %v952 = vunpack.c.l.b16 %v860
        %v953 = vunpack.c.h.b16 %v860
        %v954 = vunpack.c.l.b16 %v861
        %v955 = vunpack.c.h.b16 %v861
        %v956 = vunpack.c.l.b16 %v862
        %v957 = vunpack.c.h.b16 %v862
        %v958 = vunpack.c.l.b16 %v863
        %v959 = vunpack.c.h.b16 %v863
        %v960 = vunpack.c.l.b16 %v864
        %v961 = vunpack.c.h.b16 %v864
        %v962 = vunpack.c.l.b16 %v865
        %v963 = vunpack.c.h.b16 %v865
        %v964 = vunpack.c.l.b16 %v866
        %v965 = vunpack.c.h.b16 %v866
        %v966 = vunpack.c.l.b16 %v867
        %v967 = vunpack.c.h.b16 %v867
        %v968 = vunpack.c.l.b16 %v868
        %v969 = vunpack.c.h.b16 %v868
        %v970 = vunpack.c.l.b16 %v869
        %v971 = vunpack.c.h.b16 %v869
        %v972 = vunpack.c.l.b16 %v870
        %v973 = vunpack.c.h.b16 %v870
        %v974 = vunpack.c.l.b16 %v871
        %v975 = vunpack.c.h.b16 %v871
        %v976 = vpack.c.b16 %v914, %v912
        %v977 = vpack.c.b16 %v915, %v913
        %v978 = vpack.c.b16 %v918, %v916
        %v979 = vpack.c.b16 %v919, %v917
        %v980 = vpack.c.b16 %v922, %v920
        %v981 = vpack.c.b16 %v923, %v921
        %v982 = vpack.c.b16 %v926, %v924
        %v983 = vpack.c.b16 %v927, %v925
        %v984 = vpack.c.b16 %v930, %v928
        %v985 = vpack.c.b16 %v931, %v929
        %v986 = vpack.c.b16 %v934, %v932
        %v987 = vpack.c.b16 %v935, %v933
        %v988 = vpack.c.b16 %v938, %v936
        %v989 = vpack.c.b16 %v939, %v937
        %v990 = vpack.c.b16 %v942, %v940
        %v991 = vpack.c.b16 %v943, %v941
        %v992 = vpack.c.b16 %v946, %v944
        %v993 = vpack.c.b16 %v947, %v945
        %v994 = vpack.c.b16 %v950, %v948
        %v995 = vpack.c.b16 %v951, %v949
        %v996 = vpack.c.b16 %v954, %v952
        %v997 = vpack.c.b16 %v955, %v953
        %v998 = vpack.c.b16 %v958, %v956
        %v999 = vpack.c.b16 %v959, %v957
        %v1000 = vpack.c.b16 %v962, %v960
        %v1001 = vpack.c.b16 %v963, %v961
        %v1002 = vpack.c.b16 %v966, %v964
        %v1003 = vpack.c.b16 %v967, %v965
        %v1004 = vpack.c.b16 %v970, %v968
        %v1005 = vpack.c.b16 %v971, %v969
        %v1006 = vpack.c.b16 %v974, %v972
        %v1007 = vpack.c.b16 %v975, %v973
        %1040 = vmatprep.subr.bf16.mxu0 %v991
        %1041 = vmatpush1.bf16.msra.mxu0 %v990
        %1042 = vmatprep.subr.bf16.mxu0 %v989
        %1043 = vmatpush1.bf16.msra.mxu0 %v988
        %1044 = vmatprep.subr.bf16.mxu0 %v987
        %1045 = vmatpush1.bf16.msra.mxu0 %v986
        %1046 = vmatprep.subr.bf16.mxu0 %v985
        %1047 = vmatpush1.bf16.msra.mxu0 %v984
        %1048 = vmatprep.subr.bf16.mxu0 %v983
        %1049 = vmatpush1.bf16.msra.mxu0 %v982
        %1050 = vmatprep.subr.bf16.mxu0 %v981
        %1051 = vmatpush1.bf16.msra.mxu0 %v980
        %1052 = vmatprep.subr.bf16.mxu0 %v979
        %1053 = vmatpush1.bf16.msra.mxu0 %v978
        %1054 = vmatprep.subr.bf16.mxu0 %v977
        %1055 = vmatpush1.bf16.msra.mxu0 %v976
        %1056 = vmatprep.subr.bf16.mxu0 %v1007
        %1057 = vmatpush2.bf16.msra.mxu0 %v1006
        %1058 = vmatprep.subr.bf16.mxu0 %v1005
        %1059 = vmatpush2.bf16.msra.mxu0 %v1004
        %1060 = vmatprep.subr.bf16.mxu0 %v1003
        %1061 = vmatpush2.bf16.msra.mxu0 %v1002
        %1062 = vmatprep.subr.bf16.mxu0 %v1001
        %1063 = vmatpush2.bf16.msra.mxu0 %v1000
        %1064 = vmatprep.subr.bf16.mxu0 %v999
        %1065 = vmatpush2.bf16.msra.mxu0 %v998
        %1066 = vmatprep.subr.bf16.mxu0 %v997
        %1067 = vmatpush2.bf16.msra.mxu0 %v996
        %1068 = vmatprep.subr.bf16.mxu0 %v995
        %1069 = vmatpush2.bf16.msra.mxu0 %v994
        %1070 = vmatprep.subr.bf16.mxu0 %v993
        %1071 = vmatpush2.bf16.msra.mxu0 %v992
        %1072 = vmatprep.mubr.bf16.mxu0 %v839
        %1073 = vmatmul.mubr.bf16.gmra.mxu0 %v838
        %v1074 = vpop.f32.mrf.mxu0
        %v1075 = vadd.f32 %v875, %v1074
        %v1076 = vpop.f32.mrf.mxu0
        %v1077 = vadd.f32 %v879, %v1076
        %v1078 = vpop.f32.mrf.mxu0
        %v1079 = vadd.f32 %v875, %v1078
        %v1080 = vpop.f32.mrf.mxu0
        %v1081 = vadd.f32 %v879, %v1080
        %1082 = vdwg.mxu0
        %v1083 = vld [vmem:[%s643] sm:$0xff]
        %v1084 = vld [vmem:[%s643 + $0x8] sm:$0xff]
        %v1085 = vld [vmem:[%s643 + $0x10] sm:$0xff]
        %v1086 = vld [vmem:[%s643 + $0x18] sm:$0xff]
        %v1087 = vld [vmem:[%s643 + $0x20] sm:$0xff]
        %v1088 = vld [vmem:[%s643 + $0x28] sm:$0xff]
        %v1089 = vld [vmem:[%s643 + $0x30] sm:$0xff]
        %v1090 = vld [vmem:[%s643 + $0x38] sm:$0xff]
        %v1091 = vld [vmem:[%s643 + $0x40] sm:$0xff]
        %v1092 = vld [vmem:[%s643 + $0x48] sm:$0xff]
        %v1093 = vld [vmem:[%s643 + $0x50] sm:$0xff]
        %v1094 = vld [vmem:[%s643 + $0x58] sm:$0xff]
        %v1095 = vld [vmem:[%s643 + $0x60] sm:$0xff]
        %v1096 = vld [vmem:[%s643 + $0x68] sm:$0xff]
        %v1097 = vld [vmem:[%s643 + $0x70] sm:$0xff]
        %v1098 = vld [vmem:[%s643 + $0x78] sm:$0xff]
        %v1099 = vld [vmem:[%s643 + $0x80] sm:$0xff]
        %v1100 = vld [vmem:[%s643 + $0x88] sm:$0xff]
        %v1101 = vld [vmem:[%s643 + $0x90] sm:$0xff]
        %v1102 = vld [vmem:[%s643 + $0x98] sm:$0xff]
        %v1103 = vld [vmem:[%s643 + $0xa0] sm:$0xff]
        %v1104 = vld [vmem:[%s643 + $0xa8] sm:$0xff]
        %v1105 = vld [vmem:[%s643 + $0xb0] sm:$0xff]
        %v1106 = vld [vmem:[%s643 + $0xb8] sm:$0xff]
        %v1107 = vld [vmem:[%s643 + $0xc0] sm:$0xff]
        %v1108 = vld [vmem:[%s643 + $0xc8] sm:$0xff]
        %v1109 = vld [vmem:[%s643 + $0xd0] sm:$0xff]
        %v1110 = vld [vmem:[%s643 + $0xd8] sm:$0xff]
        %v1111 = vld [vmem:[%s643 + $0xe0] sm:$0xff]
        %v1112 = vld [vmem:[%s643 + $0xe8] sm:$0xff]
        %v1113 = vld [vmem:[%s643 + $0xf0] sm:$0xff]
        %v1114 = vld [vmem:[%s643 + $0xf8] sm:$0xff]
        %v1115 = vlaneseq
        %v1116 = vshrl.u32 %v1115, 7
        %v1117 = vsub.s32 2, %v1116
        %v1118 = vrot.slane %v803, %v1117
        %v1119 = vlaneseq
        %v1120 = vshrl.u32 %v1119, 7
        %v1121 = vsub.s32 2, %v1120
        %v1122 = vrot.slane %v804, %v1121
        %v1155 = vunpack.c.l.b16 %v1083
        %v1156 = vunpack.c.h.b16 %v1083
        %v1157 = vunpack.c.l.b16 %v1084
        %v1158 = vunpack.c.h.b16 %v1084
        %v1159 = vunpack.c.l.b16 %v1085
        %v1160 = vunpack.c.h.b16 %v1085
        %v1161 = vunpack.c.l.b16 %v1086
        %v1162 = vunpack.c.h.b16 %v1086
        %v1163 = vunpack.c.l.b16 %v1087
        %v1164 = vunpack.c.h.b16 %v1087
        %v1165 = vunpack.c.l.b16 %v1088
        %v1166 = vunpack.c.h.b16 %v1088
        %v1167 = vunpack.c.l.b16 %v1089
        %v1168 = vunpack.c.h.b16 %v1089
        %v1169 = vunpack.c.l.b16 %v1090
        %v1170 = vunpack.c.h.b16 %v1090
        %v1171 = vunpack.c.l.b16 %v1091
        %v1172 = vunpack.c.h.b16 %v1091
        %v1173 = vunpack.c.l.b16 %v1092
        %v1174 = vunpack.c.h.b16 %v1092
        %v1175 = vunpack.c.l.b16 %v1093
        %v1176 = vunpack.c.h.b16 %v1093
        %v1177 = vunpack.c.l.b16 %v1094
        %v1178 = vunpack.c.h.b16 %v1094
        %v1179 = vunpack.c.l.b16 %v1095
        %v1180 = vunpack.c.h.b16 %v1095
        %v1181 = vunpack.c.l.b16 %v1096
        %v1182 = vunpack.c.h.b16 %v1096
        %v1183 = vunpack.c.l.b16 %v1097
        %v1184 = vunpack.c.h.b16 %v1097
        %v1185 = vunpack.c.l.b16 %v1098
        %v1186 = vunpack.c.h.b16 %v1098
        %v1187 = vunpack.c.l.b16 %v1099
        %v1188 = vunpack.c.h.b16 %v1099
        %v1189 = vunpack.c.l.b16 %v1100
        %v1190 = vunpack.c.h.b16 %v1100
        %v1191 = vunpack.c.l.b16 %v1101
        %v1192 = vunpack.c.h.b16 %v1101
        %v1193 = vunpack.c.l.b16 %v1102
        %v1194 = vunpack.c.h.b16 %v1102
        %v1195 = vunpack.c.l.b16 %v1103
        %v1196 = vunpack.c.h.b16 %v1103
        %v1197 = vunpack.c.l.b16 %v1104
        %v1198 = vunpack.c.h.b16 %v1104
        %v1199 = vunpack.c.l.b16 %v1105
        %v1200 = vunpack.c.h.b16 %v1105
        %v1201 = vunpack.c.l.b16 %v1106
        %v1202 = vunpack.c.h.b16 %v1106
        %v1203 = vunpack.c.l.b16 %v1107
        %v1204 = vunpack.c.h.b16 %v1107
        %v1205 = vunpack.c.l.b16 %v1108
        %v1206 = vunpack.c.h.b16 %v1108
        %v1207 = vunpack.c.l.b16 %v1109
        %v1208 = vunpack.c.h.b16 %v1109
        %v1209 = vunpack.c.l.b16 %v1110
        %v1210 = vunpack.c.h.b16 %v1110
        %v1211 = vunpack.c.l.b16 %v1111
        %v1212 = vunpack.c.h.b16 %v1111
        %v1213 = vunpack.c.l.b16 %v1112
        %v1214 = vunpack.c.h.b16 %v1112
        %v1215 = vunpack.c.l.b16 %v1113
        %v1216 = vunpack.c.h.b16 %v1113
        %v1217 = vunpack.c.l.b16 %v1114
        %v1218 = vunpack.c.h.b16 %v1114
        %v1219 = vpack.c.b16 %v1157, %v1155
        %v1220 = vpack.c.b16 %v1158, %v1156
        %v1221 = vpack.c.b16 %v1161, %v1159
        %v1222 = vpack.c.b16 %v1162, %v1160
        %v1223 = vpack.c.b16 %v1165, %v1163
        %v1224 = vpack.c.b16 %v1166, %v1164
        %v1225 = vpack.c.b16 %v1169, %v1167
        %v1226 = vpack.c.b16 %v1170, %v1168
        %v1227 = vpack.c.b16 %v1173, %v1171
        %v1228 = vpack.c.b16 %v1174, %v1172
        %v1229 = vpack.c.b16 %v1177, %v1175
        %v1230 = vpack.c.b16 %v1178, %v1176
        %v1231 = vpack.c.b16 %v1181, %v1179
        %v1232 = vpack.c.b16 %v1182, %v1180
        %v1233 = vpack.c.b16 %v1185, %v1183
        %v1234 = vpack.c.b16 %v1186, %v1184
        %v1235 = vpack.c.b16 %v1189, %v1187
        %v1236 = vpack.c.b16 %v1190, %v1188
        %v1237 = vpack.c.b16 %v1193, %v1191
        %v1238 = vpack.c.b16 %v1194, %v1192
        %v1239 = vpack.c.b16 %v1197, %v1195
        %v1240 = vpack.c.b16 %v1198, %v1196
        %v1241 = vpack.c.b16 %v1201, %v1199
        %v1242 = vpack.c.b16 %v1202, %v1200
        %v1243 = vpack.c.b16 %v1205, %v1203
        %v1244 = vpack.c.b16 %v1206, %v1204
        %v1245 = vpack.c.b16 %v1209, %v1207
        %v1246 = vpack.c.b16 %v1210, %v1208
        %v1247 = vpack.c.b16 %v1213, %v1211
        %v1248 = vpack.c.b16 %v1214, %v1212
        %v1249 = vpack.c.b16 %v1217, %v1215
        %v1250 = vpack.c.b16 %v1218, %v1216
        %1283 = vmatprep.subr.bf16.mxu0 %v1234
        %1284 = vmatpush1.bf16.msra.mxu0 %v1233
        %1285 = vmatprep.subr.bf16.mxu0 %v1232
        %1286 = vmatpush1.bf16.msra.mxu0 %v1231
        %1287 = vmatprep.subr.bf16.mxu0 %v1230
        %1288 = vmatpush1.bf16.msra.mxu0 %v1229
        %1289 = vmatprep.subr.bf16.mxu0 %v1228
        %1290 = vmatpush1.bf16.msra.mxu0 %v1227
        %1291 = vmatprep.subr.bf16.mxu0 %v1226
        %1292 = vmatpush1.bf16.msra.mxu0 %v1225
        %1293 = vmatprep.subr.bf16.mxu0 %v1224
        %1294 = vmatpush1.bf16.msra.mxu0 %v1223
        %1295 = vmatprep.subr.bf16.mxu0 %v1222
        %1296 = vmatpush1.bf16.msra.mxu0 %v1221
        %1297 = vmatprep.subr.bf16.mxu0 %v1220
        %1298 = vmatpush1.bf16.msra.mxu0 %v1219
        %1299 = vmatprep.subr.bf16.mxu0 %v1250
        %1300 = vmatpush2.bf16.msra.mxu0 %v1249
        %1301 = vmatprep.subr.bf16.mxu0 %v1248
        %1302 = vmatpush2.bf16.msra.mxu0 %v1247
        %1303 = vmatprep.subr.bf16.mxu0 %v1246
        %1304 = vmatpush2.bf16.msra.mxu0 %v1245
        %1305 = vmatprep.subr.bf16.mxu0 %v1244
        %1306 = vmatpush2.bf16.msra.mxu0 %v1243
        %1307 = vmatprep.subr.bf16.mxu0 %v1242
        %1308 = vmatpush2.bf16.msra.mxu0 %v1241
        %1309 = vmatprep.subr.bf16.mxu0 %v1240
        %1310 = vmatpush2.bf16.msra.mxu0 %v1239
        %1311 = vmatprep.subr.bf16.mxu0 %v1238
        %1312 = vmatpush2.bf16.msra.mxu0 %v1237
        %1313 = vmatprep.subr.bf16.mxu0 %v1236
        %1314 = vmatpush2.bf16.msra.mxu0 %v1235
        %1315 = vmatprep.mubr.bf16.mxu0 %v839
        %1316 = vmatmul.mubr.bf16.gmra.mxu0 %v838
        %v1317 = vpop.f32.mrf.mxu0
        %v1318 = vadd.f32 %v1118, %v1317
        %v1319 = vpop.f32.mrf.mxu0
        %v1320 = vadd.f32 %v1122, %v1319
        %v1321 = vpop.f32.mrf.mxu0
        %v1322 = vadd.f32 %v1118, %v1321
        %v1323 = vpop.f32.mrf.mxu0
        %v1324 = vadd.f32 %v1122, %v1323
        %1325 = vdwg.mxu0
        %v1326 = vld [vmem:[%s652] sm:$0xff]
        %v1327 = vld [vmem:[%s652 + $0x8] sm:$0xff]
        %v1328 = vld [vmem:[%s652 + $0x10] sm:$0xff]
        %v1329 = vld [vmem:[%s652 + $0x18] sm:$0xff]
        %v1330 = vld [vmem:[%s652 + $0x20] sm:$0xff]
        %v1331 = vld [vmem:[%s652 + $0x28] sm:$0xff]
        %v1332 = vld [vmem:[%s652 + $0x30] sm:$0xff]
        %v1333 = vld [vmem:[%s652 + $0x38] sm:$0xff]
        %v1334 = vld [vmem:[%s652 + $0x40] sm:$0xff]
        %v1335 = vld [vmem:[%s652 + $0x48] sm:$0xff]
        %v1336 = vld [vmem:[%s652 + $0x50] sm:$0xff]
        %v1337 = vld [vmem:[%s652 + $0x58] sm:$0xff]
        %v1338 = vld [vmem:[%s652 + $0x60] sm:$0xff]
        %v1339 = vld [vmem:[%s652 + $0x68] sm:$0xff]
        %v1340 = vld [vmem:[%s652 + $0x70] sm:$0xff]
        %v1341 = vld [vmem:[%s652 + $0x78] sm:$0xff]
        %v1342 = vld [vmem:[%s652 + $0x80] sm:$0xff]
        %v1343 = vld [vmem:[%s652 + $0x88] sm:$0xff]
        %v1344 = vld [vmem:[%s652 + $0x90] sm:$0xff]
        %v1345 = vld [vmem:[%s652 + $0x98] sm:$0xff]
        %v1346 = vld [vmem:[%s652 + $0xa0] sm:$0xff]
        %v1347 = vld [vmem:[%s652 + $0xa8] sm:$0xff]
        %v1348 = vld [vmem:[%s652 + $0xb0] sm:$0xff]
        %v1349 = vld [vmem:[%s652 + $0xb8] sm:$0xff]
        %v1350 = vld [vmem:[%s652 + $0xc0] sm:$0xff]
        %v1351 = vld [vmem:[%s652 + $0xc8] sm:$0xff]
        %v1352 = vld [vmem:[%s652 + $0xd0] sm:$0xff]
        %v1353 = vld [vmem:[%s652 + $0xd8] sm:$0xff]
        %v1354 = vld [vmem:[%s652 + $0xe0] sm:$0xff]
        %v1355 = vld [vmem:[%s652 + $0xe8] sm:$0xff]
        %v1356 = vld [vmem:[%s652 + $0xf0] sm:$0xff]
        %v1357 = vld [vmem:[%s652 + $0xf8] sm:$0xff]
        %v1358 = vlaneseq
        %v1359 = vshrl.u32 %v1358, 7
        %v1360 = vsub.s32 3, %v1359
        %v1361 = vrot.slane %v803, %v1360
        %v1362 = vlaneseq
        %v1363 = vshrl.u32 %v1362, 7
        %v1364 = vsub.s32 3, %v1363
        %v1365 = vrot.slane %v804, %v1364
        %v1398 = vunpack.c.l.b16 %v1326
        %v1399 = vunpack.c.h.b16 %v1326
        %v1400 = vunpack.c.l.b16 %v1327
        %v1401 = vunpack.c.h.b16 %v1327
        %v1402 = vunpack.c.l.b16 %v1328
        %v1403 = vunpack.c.h.b16 %v1328
        %v1404 = vunpack.c.l.b16 %v1329
        %v1405 = vunpack.c.h.b16 %v1329
        %v1406 = vunpack.c.l.b16 %v1330
        %v1407 = vunpack.c.h.b16 %v1330
        %v1408 = vunpack.c.l.b16 %v1331
        %v1409 = vunpack.c.h.b16 %v1331
        %v1410 = vunpack.c.l.b16 %v1332
        %v1411 = vunpack.c.h.b16 %v1332
        %v1412 = vunpack.c.l.b16 %v1333
        %v1413 = vunpack.c.h.b16 %v1333
        %v1414 = vunpack.c.l.b16 %v1334
        %v1415 = vunpack.c.h.b16 %v1334
        %v1416 = vunpack.c.l.b16 %v1335
        %v1417 = vunpack.c.h.b16 %v1335
        %v1418 = vunpack.c.l.b16 %v1336
        %v1419 = vunpack.c.h.b16 %v1336
        %v1420 = vunpack.c.l.b16 %v1337
        %v1421 = vunpack.c.h.b16 %v1337
        %v1422 = vunpack.c.l.b16 %v1338
        %v1423 = vunpack.c.h.b16 %v1338
        %v1424 = vunpack.c.l.b16 %v1339
        %v1425 = vunpack.c.h.b16 %v1339
        %v1426 = vunpack.c.l.b16 %v1340
        %v1427 = vunpack.c.h.b16 %v1340
        %v1428 = vunpack.c.l.b16 %v1341
        %v1429 = vunpack.c.h.b16 %v1341
        %v1430 = vunpack.c.l.b16 %v1342
        %v1431 = vunpack.c.h.b16 %v1342
        %v1432 = vunpack.c.l.b16 %v1343
        %v1433 = vunpack.c.h.b16 %v1343
        %v1434 = vunpack.c.l.b16 %v1344
        %v1435 = vunpack.c.h.b16 %v1344
        %v1436 = vunpack.c.l.b16 %v1345
        %v1437 = vunpack.c.h.b16 %v1345
        %v1438 = vunpack.c.l.b16 %v1346
        %v1439 = vunpack.c.h.b16 %v1346
        %v1440 = vunpack.c.l.b16 %v1347
        %v1441 = vunpack.c.h.b16 %v1347
        %v1442 = vunpack.c.l.b16 %v1348
        %v1443 = vunpack.c.h.b16 %v1348
        %v1444 = vunpack.c.l.b16 %v1349
        %v1445 = vunpack.c.h.b16 %v1349
        %v1446 = vunpack.c.l.b16 %v1350
        %v1447 = vunpack.c.h.b16 %v1350
        %v1448 = vunpack.c.l.b16 %v1351
        %v1449 = vunpack.c.h.b16 %v1351
        %v1450 = vunpack.c.l.b16 %v1352
        %v1451 = vunpack.c.h.b16 %v1352
        %v1452 = vunpack.c.l.b16 %v1353
        %v1453 = vunpack.c.h.b16 %v1353
        %v1454 = vunpack.c.l.b16 %v1354
        %v1455 = vunpack.c.h.b16 %v1354
        %v1456 = vunpack.c.l.b16 %v1355
        %v1457 = vunpack.c.h.b16 %v1355
        %v1458 = vunpack.c.l.b16 %v1356
        %v1459 = vunpack.c.h.b16 %v1356
        %v1460 = vunpack.c.l.b16 %v1357
        %v1461 = vunpack.c.h.b16 %v1357
        %v1462 = vpack.c.b16 %v1400, %v1398
        %v1463 = vpack.c.b16 %v1401, %v1399
        %v1464 = vpack.c.b16 %v1404, %v1402
        %v1465 = vpack.c.b16 %v1405, %v1403
        %v1466 = vpack.c.b16 %v1408, %v1406
        %v1467 = vpack.c.b16 %v1409, %v1407
        %v1468 = vpack.c.b16 %v1412, %v1410
        %v1469 = vpack.c.b16 %v1413, %v1411
        %v1470 = vpack.c.b16 %v1416, %v1414
        %v1471 = vpack.c.b16 %v1417, %v1415
        %v1472 = vpack.c.b16 %v1420, %v1418
        %v1473 = vpack.c.b16 %v1421, %v1419
        %v1474 = vpack.c.b16 %v1424, %v1422
        %v1475 = vpack.c.b16 %v1425, %v1423
        %v1476 = vpack.c.b16 %v1428, %v1426
        %v1477 = vpack.c.b16 %v1429, %v1427
        %v1478 = vpack.c.b16 %v1432, %v1430
        %v1479 = vpack.c.b16 %v1433, %v1431
        %v1480 = vpack.c.b16 %v1436, %v1434
        %v1481 = vpack.c.b16 %v1437, %v1435
        %v1482 = vpack.c.b16 %v1440, %v1438
        %v1483 = vpack.c.b16 %v1441, %v1439
        %v1484 = vpack.c.b16 %v1444, %v1442
        %v1485 = vpack.c.b16 %v1445, %v1443
        %v1486 = vpack.c.b16 %v1448, %v1446
        %v1487 = vpack.c.b16 %v1449, %v1447
        %v1488 = vpack.c.b16 %v1452, %v1450
        %v1489 = vpack.c.b16 %v1453, %v1451
        %v1490 = vpack.c.b16 %v1456, %v1454
        %v1491 = vpack.c.b16 %v1457, %v1455
        %v1492 = vpack.c.b16 %v1460, %v1458
        %v1493 = vpack.c.b16 %v1461, %v1459
        %1526 = vmatprep.subr.bf16.mxu0 %v1477
        %1527 = vmatpush1.bf16.msra.mxu0 %v1476
        %1528 = vmatprep.subr.bf16.mxu0 %v1475
        %1529 = vmatpush1.bf16.msra.mxu0 %v1474
        %1530 = vmatprep.subr.bf16.mxu0 %v1473
        %1531 = vmatpush1.bf16.msra.mxu0 %v1472
        %1532 = vmatprep.subr.bf16.mxu0 %v1471
        %1533 = vmatpush1.bf16.msra.mxu0 %v1470
        %1534 = vmatprep.subr.bf16.mxu0 %v1469
        %1535 = vmatpush1.bf16.msra.mxu0 %v1468
        %1536 = vmatprep.subr.bf16.mxu0 %v1467
        %1537 = vmatpush1.bf16.msra.mxu0 %v1466
        %1538 = vmatprep.subr.bf16.mxu0 %v1465
        %1539 = vmatpush1.bf16.msra.mxu0 %v1464
        %1540 = vmatprep.subr.bf16.mxu0 %v1463
        %1541 = vmatpush1.bf16.msra.mxu0 %v1462
        %1542 = vmatprep.subr.bf16.mxu0 %v1493
        %1543 = vmatpush2.bf16.msra.mxu0 %v1492
        %1544 = vmatprep.subr.bf16.mxu0 %v1491
        %1545 = vmatpush2.bf16.msra.mxu0 %v1490
        %1546 = vmatprep.subr.bf16.mxu0 %v1489
        %1547 = vmatpush2.bf16.msra.mxu0 %v1488
        %1548 = vmatprep.subr.bf16.mxu0 %v1487
        %1549 = vmatpush2.bf16.msra.mxu0 %v1486
        %1550 = vmatprep.subr.bf16.mxu0 %v1485
        %1551 = vmatpush2.bf16.msra.mxu0 %v1484
        %1552 = vmatprep.subr.bf16.mxu0 %v1483
        %1553 = vmatpush2.bf16.msra.mxu0 %v1482
        %1554 = vmatprep.subr.bf16.mxu0 %v1481
        %1555 = vmatpush2.bf16.msra.mxu0 %v1480
        %1556 = vmatprep.subr.bf16.mxu0 %v1479
        %1557 = vmatpush2.bf16.msra.mxu0 %v1478
        %1558 = vmatprep.mubr.bf16.mxu0 %v839
        %1559 = vmatmul.mubr.bf16.gmra.mxu0 %v838
        %v1560 = vpop.f32.mrf.mxu0
        %v1561 = vadd.f32 %v1361, %v1560
        %v1562 = vpop.f32.mrf.mxu0
        %v1563 = vadd.f32 %v1365, %v1562
        %v1564 = vpop.f32.mrf.mxu0
        %v1565 = vadd.f32 %v1361, %v1564
        %v1566 = vpop.f32.mrf.mxu0
        %v1567 = vadd.f32 %v1365, %v1566
        %1568 = vdwg.mxu0
        %v1569 = vsub.f32 0.0, %v1075
        %v1570 = vsub.f32 0.0, %v1079
        %v1571 = vsub.f32 0.0, %v1077
        %v1572 = vsub.f32 0.0, %v1081
        %1577 = vrot.lane.b32.xlu0 %v1569, 64
        %v1578 = vpop.permute.xlu0 %1577
        %1579 = vrot.lane.b32.xlu0 %v1570, 64
        %v1580 = vpop.permute.xlu0 %1579
        %1581 = vrot.lane.b32.xlu0 %v1571, 64
        %v1582 = vpop.permute.xlu0 %1581
        %1583 = vrot.lane.b32.xlu0 %v1572, 64
        %v1584 = vpop.permute.xlu0 %1583
        %1593 = vrot.lane.b32.xlu0 %v1075, 64
        %v1594 = vpop.permute.xlu0 %1593
        %1595 = vrot.lane.b32.xlu0 %v1079, 64
        %v1596 = vpop.permute.xlu0 %1595
        %1597 = vrot.lane.b32.xlu0 %v1077, 64
        %v1598 = vpop.permute.xlu0 %1597
        %1599 = vrot.lane.b32.xlu0 %v1081, 64
        %v1600 = vpop.permute.xlu0 %1599
        %vm1605 = vcmask 523264
        %v1606 = vsel %vm1605, %v1578, %v1594
        %v1607 = vsel %vm1605, %v1580, %v1596
        %v1608 = vsel %vm1605, %v1582, %v1598
        %v1609 = vsel %vm1605, %v1584, %v1600
        %v1610 = vmul.f32 %v1075, %v799
        %v1611 = vmul.f32 %v1079, %v800
        %v1612 = vmul.f32 %v1077, %v799
        %v1613 = vmul.f32 %v1081, %v800
        %v1614 = vmul.f32 %v1606, %v801
        %v1615 = vmul.f32 %v1607, %v802
        %v1616 = vmul.f32 %v1608, %v801
        %v1617 = vmul.f32 %v1609, %v802
        %v1618 = vadd.f32 %v1610, %v1614
        %v1619 = vadd.f32 %v1611, %v1615
        %v1620 = vadd.f32 %v1612, %v1616
        %v1621 = vadd.f32 %v1613, %v1617
        %v1622 = vmul.f32 %v1618, 0.088388346
        %v1623 = vmul.f32 %v1619, 0.088388346
        %v1624 = vmul.f32 %v1620, 0.088388346
        %v1625 = vmul.f32 %v1621, 0.088388346
        %v1626 = vpack.c.bf16 %v1623, %v1622
        %v1627 = vpack.c.bf16 %v1625, %v1624
        %v1628 = vsub.f32 0.0, %v1318
        %v1629 = vsub.f32 0.0, %v1322
        %v1630 = vsub.f32 0.0, %v1320
        %v1631 = vsub.f32 0.0, %v1324
        %1636 = vrot.lane.b32.xlu0 %v1628, 64
        %v1637 = vpop.permute.xlu0 %1636
        %1638 = vrot.lane.b32.xlu0 %v1629, 64
        %v1639 = vpop.permute.xlu0 %1638
        %1640 = vrot.lane.b32.xlu0 %v1630, 64
        %v1641 = vpop.permute.xlu0 %1640
        %1642 = vrot.lane.b32.xlu0 %v1631, 64
        %v1643 = vpop.permute.xlu0 %1642
        %1652 = vrot.lane.b32.xlu0 %v1318, 64
        %v1653 = vpop.permute.xlu0 %1652
        %1654 = vrot.lane.b32.xlu0 %v1322, 64
        %v1655 = vpop.permute.xlu0 %1654
        %1656 = vrot.lane.b32.xlu0 %v1320, 64
        %v1657 = vpop.permute.xlu0 %1656
        %1658 = vrot.lane.b32.xlu0 %v1324, 64
        %v1659 = vpop.permute.xlu0 %1658
        %v1664 = vsel %vm1605, %v1637, %v1653
        %v1665 = vsel %vm1605, %v1639, %v1655
        %v1666 = vsel %vm1605, %v1641, %v1657
        %v1667 = vsel %vm1605, %v1643, %v1659
        %v1668 = vmul.f32 %v1318, %v799
        %v1669 = vmul.f32 %v1322, %v800
        %v1670 = vmul.f32 %v1320, %v799
        %v1671 = vmul.f32 %v1324, %v800
        %v1672 = vmul.f32 %v1664, %v801
        %v1673 = vmul.f32 %v1665, %v802
        %v1674 = vmul.f32 %v1666, %v801
        %v1675 = vmul.f32 %v1667, %v802
        %v1676 = vadd.f32 %v1668, %v1672
        %v1677 = vadd.f32 %v1669, %v1673
        %v1678 = vadd.f32 %v1670, %v1674
        %v1679 = vadd.f32 %v1671, %v1675
        %v1680 = vpack.c.bf16 %v1677, %v1676
        %v1681 = vpack.c.bf16 %v1679, %v1678
        %v1682 = vpack.c.bf16 %v1565, %v1561
        %v1683 = vpack.c.bf16 %v1567, %v1563
        %1684 = vmatprep.subr.bf16.mxu0 0
        %1685 = vmatpush1.bf16.xpose.msra.mxu0 0
        %1686 = vmatprep.subr.bf16.mxu0 0
        %1687 = vmatpush1.bf16.xpose.msra.mxu0 0
        %1688 = vmatprep.subr.bf16.mxu0 0
        %1689 = vmatpush1.bf16.xpose.msra.mxu0 0
        %1690 = vmatprep.subr.bf16.mxu0 0
        %1691 = vmatpush1.bf16.xpose.msra.mxu0 0
        %1692 = vmatprep.subr.bf16.mxu0 0
        %1693 = vmatpush1.bf16.xpose.msra.mxu0 0
        %1694 = vmatprep.subr.bf16.mxu0 0
        %1695 = vmatpush1.bf16.xpose.msra.mxu0 0
        %1696 = vmatprep.subr.bf16.mxu0 0
        %1697 = vmatpush1.bf16.xpose.msra.mxu0 0
        %1698 = vmatprep.subr.bf16.mxu0 0
        %1699 = vmatpush1.bf16.xpose.msra.mxu0 %v1680
        %1700 = vmatprep.subr.bf16.mxu0 0
        %1701 = vmatpush2.bf16.xpose.msra.mxu0 0
        %1702 = vmatprep.subr.bf16.mxu0 0
        %1703 = vmatpush2.bf16.xpose.msra.mxu0 0
        %1704 = vmatprep.subr.bf16.mxu0 0
        %1705 = vmatpush2.bf16.xpose.msra.mxu0 0
        %1706 = vmatprep.subr.bf16.mxu0 0
        %1707 = vmatpush2.bf16.xpose.msra.mxu0 0
        %1708 = vmatprep.subr.bf16.mxu0 0
        %1709 = vmatpush2.bf16.xpose.msra.mxu0 0
        %1710 = vmatprep.subr.bf16.mxu0 0
        %1711 = vmatpush2.bf16.xpose.msra.mxu0 0
        %1712 = vmatprep.subr.bf16.mxu0 0
        %1713 = vmatpush2.bf16.xpose.msra.mxu0 0
        %1714 = vmatprep.subr.bf16.mxu0 0
        %1715 = vmatpush2.bf16.xpose.msra.mxu0 0
        %1716 = vmatprep.mubr.bf16.mxu0 0
        %1717 = vmatmul.mubr.bf16.gmra.mxu0 %v1626
        %v1718 = vpop.f32.mrf.mxu0
        %v1719 = vadd.f32 0.0, %v1718
        %v1720 = vpop.f32.mrf.mxu0
        %v1721 = vpop.f32.mrf.mxu0
        %v1722 = vadd.f32 0.0, %v1721
        %v1723 = vpop.f32.mrf.mxu0
        %1724 = vdwg.mxu0
        %1725 = vmatprep.subr.bf16.mxu0 0
        %1726 = vmatpush1.bf16.xpose.msra.mxu0 0
        %1727 = vmatprep.subr.bf16.mxu0 0
        %1728 = vmatpush1.bf16.xpose.msra.mxu0 0
        %1729 = vmatprep.subr.bf16.mxu0 0
        %1730 = vmatpush1.bf16.xpose.msra.mxu0 0
        %1731 = vmatprep.subr.bf16.mxu0 0
        %1732 = vmatpush1.bf16.xpose.msra.mxu0 0
        %1733 = vmatprep.subr.bf16.mxu0 0
        %1734 = vmatpush1.bf16.xpose.msra.mxu0 0
        %1735 = vmatprep.subr.bf16.mxu0 0
        %1736 = vmatpush1.bf16.xpose.msra.mxu0 0
        %1737 = vmatprep.subr.bf16.mxu0 0
        %1738 = vmatpush1.bf16.xpose.msra.mxu0 0
        %1739 = vmatprep.subr.bf16.mxu0 0
        %1740 = vmatpush1.bf16.xpose.msra.mxu0 %v1681
        %1741 = vmatprep.subr.bf16.mxu0 0
        %1742 = vmatpush2.bf16.xpose.msra.mxu0 0
        %1743 = vmatprep.subr.bf16.mxu0 0
        %1744 = vmatpush2.bf16.xpose.msra.mxu0 0
        %1745 = vmatprep.subr.bf16.mxu0 0
        %1746 = vmatpush2.bf16.xpose.msra.mxu0 0
        %1747 = vmatprep.subr.bf16.mxu0 0
        %1748 = vmatpush2.bf16.xpose.msra.mxu0 0
        %1749 = vmatprep.subr.bf16.mxu0 0
        %1750 = vmatpush2.bf16.xpose.msra.mxu0 0
        %1751 = vmatprep.subr.bf16.mxu0 0
        %1752 = vmatpush2.bf16.xpose.msra.mxu0 0
        %1753 = vmatprep.subr.bf16.mxu0 0
        %1754 = vmatpush2.bf16.xpose.msra.mxu0 0
        %1755 = vmatprep.subr.bf16.mxu0 0
        %1756 = vmatpush2.bf16.xpose.msra.mxu0 0
        %1757 = vmatprep.mubr.bf16.mxu0 0
        %1758 = vmatmul.mubr.bf16.gmra.mxu0 %v1627
        %v1759 = vpop.f32.mrf.mxu0
        %v1760 = vadd.f32 0.0, %v1759
        %v1761 = vpop.f32.mrf.mxu0
        %v1762 = vpop.f32.mrf.mxu0
        %v1763 = vadd.f32 0.0, %v1762
        %v1764 = vpop.f32.mrf.mxu0
        %1765 = vdwg.mxu0
        %vm1766 = vcmask 130048
        %v1767 = vsel %vm1766, %v1719, -inf
        %1768 = vmax.xlane.f32.xlu0 %v1767
        %v1769 = vpop.xlane.xlu0 %1768
        %v1770 = vsel %vm1766, %v1722, -inf
        %1771 = vmax.xlane.f32.xlu0 %v1770
        %v1772 = vpop.xlane.xlu0 %1771
        %v1773 = vsel %vm1766, %v1760, -inf
        %1774 = vmax.xlane.f32.xlu0 %v1773
        %v1775 = vpop.xlane.xlu0 %1774
        %v1776 = vsel %vm1766, %v1763, -inf
        %1777 = vmax.xlane.f32.xlu0 %v1776
        %v1778 = vpop.xlane.xlu0 %1777
        %v1779 = vsub.f32 %v1719, %v1769
        %v1780 = vsub.f32 %v1722, %v1772
        %v1781 = vsub.f32 %v1760, %v1775
        %v1782 = vsub.f32 %v1763, %v1778
        %v1783 = vmul.f32 %v1779, 1.442695
        %v1784 = vpow.pop %v1783
        %v1785 = vmul.f32 %v1780, 1.442695
        %v1786 = vpow.pop %v1785
        %v1787 = vmul.f32 %v1781, 1.442695
        %v1788 = vpow.pop %v1787
        %v1789 = vmul.f32 %v1782, 1.442695
        %v1790 = vpow.pop %v1789
        %v1791 = vsel %vm1766, %v1784, 0.0
        %1792 = vadd.xlane.f32.xlu0 %v1791
        %v1793 = vpop.xlane.xlu0 %1792
        %v1794 = vsel %vm1766, %v1786, 0.0
        %1795 = vadd.xlane.f32.xlu0 %v1794
        %v1796 = vpop.xlane.xlu0 %1795
        %v1797 = vsel %vm1766, %v1788, 0.0
        %1798 = vadd.xlane.f32.xlu0 %v1797
        %v1799 = vpop.xlane.xlu0 %1798
        %v1800 = vsel %vm1766, %v1790, 0.0
        %1801 = vadd.xlane.f32.xlu0 %v1800
        %v1802 = vpop.xlane.xlu0 %1801
        %v1803 = vrcp.pop %v1793
        %v1804 = vrcp.pop %v1796
        %v1805 = vrcp.pop %v1799
        %v1806 = vrcp.pop %v1802
        %v1807 = vmul.f32 %v1784, %v1803
        %v1808 = vmul.f32 %v1786, %v1804
        %v1809 = vmul.f32 %v1788, %v1805
        %v1810 = vmul.f32 %v1790, %v1806
        %v1811 = vpack.c.bf16 %v1808, %v1807
        %v1812 = vpack.c.bf16 %v1810, %v1809
        %v1814 = vsel %vm1766, %v1811, 0
        %1816 = vmatprep.subr.bf16.mxu0 0
        %1817 = vmatpush1.bf16.msra.mxu0 0
        %1818 = vmatprep.subr.bf16.mxu0 0
        %1819 = vmatpush1.bf16.msra.mxu0 0
        %1820 = vmatprep.subr.bf16.mxu0 0
        %1821 = vmatpush1.bf16.msra.mxu0 0
        %1822 = vmatprep.subr.bf16.mxu0 0
        %1823 = vmatpush1.bf16.msra.mxu0 0
        %1824 = vmatprep.subr.bf16.mxu0 0
        %1825 = vmatpush1.bf16.msra.mxu0 0
        %1826 = vmatprep.subr.bf16.mxu0 0
        %1827 = vmatpush1.bf16.msra.mxu0 0
        %1828 = vmatprep.subr.bf16.mxu0 0
        %1829 = vmatpush1.bf16.msra.mxu0 0
        %1830 = vmatprep.subr.bf16.mxu0 0
        %1831 = vmatpush1.bf16.msra.mxu0 %v1682
        %1832 = vmatprep.subr.bf16.mxu0 0
        %1833 = vmatpush2.bf16.msra.mxu0 0
        %1834 = vmatprep.subr.bf16.mxu0 0
        %1835 = vmatpush2.bf16.msra.mxu0 0
        %1836 = vmatprep.subr.bf16.mxu0 0
        %1837 = vmatpush2.bf16.msra.mxu0 0
        %1838 = vmatprep.subr.bf16.mxu0 0
        %1839 = vmatpush2.bf16.msra.mxu0 0
        %1840 = vmatprep.subr.bf16.mxu0 0
        %1841 = vmatpush2.bf16.msra.mxu0 0
        %1842 = vmatprep.subr.bf16.mxu0 0
        %1843 = vmatpush2.bf16.msra.mxu0 0
        %1844 = vmatprep.subr.bf16.mxu0 0
        %1845 = vmatpush2.bf16.msra.mxu0 0
        %1846 = vmatprep.subr.bf16.mxu0 0
        %1847 = vmatpush2.bf16.msra.mxu0 0
        %1848 = vmatprep.mubr.bf16.mxu0 0
        %1849 = vmatmul.mubr.bf16.gmra.mxu0 %v1814
        %v1850 = vpop.f32.mrf.mxu0
        %v1851 = vadd.f32 0.0, %v1850
        %v1852 = vpop.f32.mrf.mxu0
        %v1853 = vpop.f32.mrf.mxu0
        %v1854 = vadd.f32 0.0, %v1853
        %v1855 = vpop.f32.mrf.mxu0
        %1856 = vdwg.mxu0
        %v1858 = vsel %vm1766, %v1812, 0
        %1860 = vmatprep.subr.bf16.mxu0 0
        %1861 = vmatpush1.bf16.msra.mxu0 0
        %1862 = vmatprep.subr.bf16.mxu0 0
        %1863 = vmatpush1.bf16.msra.mxu0 0
        %1864 = vmatprep.subr.bf16.mxu0 0
        %1865 = vmatpush1.bf16.msra.mxu0 0
        %1866 = vmatprep.subr.bf16.mxu0 0
        %1867 = vmatpush1.bf16.msra.mxu0 0
        %1868 = vmatprep.subr.bf16.mxu0 0
        %1869 = vmatpush1.bf16.msra.mxu0 0
        %1870 = vmatprep.subr.bf16.mxu0 0
        %1871 = vmatpush1.bf16.msra.mxu0 0
        %1872 = vmatprep.subr.bf16.mxu0 0
        %1873 = vmatpush1.bf16.msra.mxu0 0
        %1874 = vmatprep.subr.bf16.mxu0 0
        %1875 = vmatpush1.bf16.msra.mxu0 %v1683
        %1876 = vmatprep.subr.bf16.mxu0 0
        %1877 = vmatpush2.bf16.msra.mxu0 0
        %1878 = vmatprep.subr.bf16.mxu0 0
        %1879 = vmatpush2.bf16.msra.mxu0 0
        %1880 = vmatprep.subr.bf16.mxu0 0
        %1881 = vmatpush2.bf16.msra.mxu0 0
        %1882 = vmatprep.subr.bf16.mxu0 0
        %1883 = vmatpush2.bf16.msra.mxu0 0
        %1884 = vmatprep.subr.bf16.mxu0 0
        %1885 = vmatpush2.bf16.msra.mxu0 0
        %1886 = vmatprep.subr.bf16.mxu0 0
        %1887 = vmatpush2.bf16.msra.mxu0 0
        %1888 = vmatprep.subr.bf16.mxu0 0
        %1889 = vmatpush2.bf16.msra.mxu0 0
        %1890 = vmatprep.subr.bf16.mxu0 0
        %1891 = vmatpush2.bf16.msra.mxu0 0
        %1892 = vmatprep.mubr.bf16.mxu0 0
        %1893 = vmatmul.mubr.bf16.gmra.mxu0 %v1858
        %v1894 = vpop.f32.mrf.mxu0
        %v1895 = vadd.f32 0.0, %v1894
        %v1896 = vpop.f32.mrf.mxu0
        %v1897 = vpop.f32.mrf.mxu0
        %v1898 = vadd.f32 0.0, %v1897
        %v1899 = vpop.f32.mrf.mxu0
        %1900 = vdwg.mxu0
        %v1901 = vpack.c.bf16 %v1854, %v1851
        %v1902 = vpack.c.bf16 %v1898, %v1895
        %v1903 = vld [vmem:[%s661] sm:$0xff]
        %v1904 = vld [vmem:[%s661 + $0x8] sm:$0xff]
        %v1905 = vld [vmem:[%s661 + $0x10] sm:$0xff]
        %v1906 = vld [vmem:[%s661 + $0x18] sm:$0xff]
        %v1907 = vld [vmem:[%s661 + $0x20] sm:$0xff]
        %v1908 = vld [vmem:[%s661 + $0x28] sm:$0xff]
        %v1909 = vld [vmem:[%s661 + $0x30] sm:$0xff]
        %v1910 = vld [vmem:[%s661 + $0x38] sm:$0xff]
        %v1911 = vld [vmem:[%s661 + $0x40] sm:$0xff]
        %v1912 = vld [vmem:[%s661 + $0x48] sm:$0xff]
        %v1913 = vld [vmem:[%s661 + $0x50] sm:$0xff]
        %v1914 = vld [vmem:[%s661 + $0x58] sm:$0xff]
        %v1915 = vld [vmem:[%s661 + $0x60] sm:$0xff]
        %v1916 = vld [vmem:[%s661 + $0x68] sm:$0xff]
        %v1917 = vld [vmem:[%s661 + $0x70] sm:$0xff]
        %v1918 = vld [vmem:[%s661 + $0x78] sm:$0xff]
        %v1919 = vld [vmem:[%s661 + $0x80] sm:$0xff]
        %v1920 = vld [vmem:[%s661 + $0x88] sm:$0xff]
        %v1921 = vld [vmem:[%s661 + $0x90] sm:$0xff]
        %v1922 = vld [vmem:[%s661 + $0x98] sm:$0xff]
        %v1923 = vld [vmem:[%s661 + $0xa0] sm:$0xff]
        %v1924 = vld [vmem:[%s661 + $0xa8] sm:$0xff]
        %v1925 = vld [vmem:[%s661 + $0xb0] sm:$0xff]
        %v1926 = vld [vmem:[%s661 + $0xb8] sm:$0xff]
        %v1927 = vld [vmem:[%s661 + $0xc0] sm:$0xff]
        %v1928 = vld [vmem:[%s661 + $0xc8] sm:$0xff]
        %v1929 = vld [vmem:[%s661 + $0xd0] sm:$0xff]
        %v1930 = vld [vmem:[%s661 + $0xd8] sm:$0xff]
        %v1931 = vld [vmem:[%s661 + $0xe0] sm:$0xff]
        %v1932 = vld [vmem:[%s661 + $0xe8] sm:$0xff]
        %v1933 = vld [vmem:[%s661 + $0xf0] sm:$0xff]
        %v1934 = vld [vmem:[%s661 + $0xf8] sm:$0xff]
        %v1935 = vlaneseq
        %v1936 = vshrl.u32 %v1935, 7
        %v1937 = vsub.s32 4, %v1936
        %v1938 = vrot.slane %v803, %v1937
        %v1939 = vlaneseq
        %v1940 = vshrl.u32 %v1939, 7
        %v1941 = vsub.s32 4, %v1940
        %v1942 = vrot.slane %v804, %v1941
        %v1975 = vunpack.c.l.b16 %v1903
        %v1976 = vunpack.c.h.b16 %v1903
        %v1977 = vunpack.c.l.b16 %v1904
        %v1978 = vunpack.c.h.b16 %v1904
        %v1979 = vunpack.c.l.b16 %v1905
        %v1980 = vunpack.c.h.b16 %v1905
        %v1981 = vunpack.c.l.b16 %v1906
        %v1982 = vunpack.c.h.b16 %v1906
        %v1983 = vunpack.c.l.b16 %v1907
        %v1984 = vunpack.c.h.b16 %v1907
        %v1985 = vunpack.c.l.b16 %v1908
        %v1986 = vunpack.c.h.b16 %v1908
        %v1987 = vunpack.c.l.b16 %v1909
        %v1988 = vunpack.c.h.b16 %v1909
        %v1989 = vunpack.c.l.b16 %v1910
        %v1990 = vunpack.c.h.b16 %v1910
        %v1991 = vunpack.c.l.b16 %v1911
        %v1992 = vunpack.c.h.b16 %v1911
        %v1993 = vunpack.c.l.b16 %v1912
        %v1994 = vunpack.c.h.b16 %v1912
        %v1995 = vunpack.c.l.b16 %v1913
        %v1996 = vunpack.c.h.b16 %v1913
        %v1997 = vunpack.c.l.b16 %v1914
        %v1998 = vunpack.c.h.b16 %v1914
        %v1999 = vunpack.c.l.b16 %v1915
        %v2000 = vunpack.c.h.b16 %v1915
        %v2001 = vunpack.c.l.b16 %v1916
        %v2002 = vunpack.c.h.b16 %v1916
        %v2003 = vunpack.c.l.b16 %v1917
        %v2004 = vunpack.c.h.b16 %v1917
        %v2005 = vunpack.c.l.b16 %v1918
        %v2006 = vunpack.c.h.b16 %v1918
        %v2007 = vunpack.c.l.b16 %v1919
        %v2008 = vunpack.c.h.b16 %v1919
        %v2009 = vunpack.c.l.b16 %v1920
        %v2010 = vunpack.c.h.b16 %v1920
        %v2011 = vunpack.c.l.b16 %v1921
        %v2012 = vunpack.c.h.b16 %v1921
        %v2013 = vunpack.c.l.b16 %v1922
        %v2014 = vunpack.c.h.b16 %v1922
        %v2015 = vunpack.c.l.b16 %v1923
        %v2016 = vunpack.c.h.b16 %v1923
        %v2017 = vunpack.c.l.b16 %v1924
        %v2018 = vunpack.c.h.b16 %v1924
        %v2019 = vunpack.c.l.b16 %v1925
        %v2020 = vunpack.c.h.b16 %v1925
        %v2021 = vunpack.c.l.b16 %v1926
        %v2022 = vunpack.c.h.b16 %v1926
        %v2023 = vunpack.c.l.b16 %v1927
        %v2024 = vunpack.c.h.b16 %v1927
        %v2025 = vunpack.c.l.b16 %v1928
        %v2026 = vunpack.c.h.b16 %v1928
        %v2027 = vunpack.c.l.b16 %v1929
        %v2028 = vunpack.c.h.b16 %v1929
        %v2029 = vunpack.c.l.b16 %v1930
        %v2030 = vunpack.c.h.b16 %v1930
        %v2031 = vunpack.c.l.b16 %v1931
        %v2032 = vunpack.c.h.b16 %v1931
        %v2033 = vunpack.c.l.b16 %v1932
        %v2034 = vunpack.c.h.b16 %v1932
        %v2035 = vunpack.c.l.b16 %v1933
        %v2036 = vunpack.c.h.b16 %v1933
        %v2037 = vunpack.c.l.b16 %v1934
        %v2038 = vunpack.c.h.b16 %v1934
        %v2039 = vpack.c.b16 %v1977, %v1975
        %v2040 = vpack.c.b16 %v1978, %v1976
        %v2041 = vpack.c.b16 %v1981, %v1979
        %v2042 = vpack.c.b16 %v1982, %v1980
        %v2043 = vpack.c.b16 %v1985, %v1983
        %v2044 = vpack.c.b16 %v1986, %v1984
        %v2045 = vpack.c.b16 %v1989, %v1987
        %v2046 = vpack.c.b16 %v1990, %v1988
        %v2047 = vpack.c.b16 %v1993, %v1991
        %v2048 = vpack.c.b16 %v1994, %v1992
        %v2049 = vpack.c.b16 %v1997, %v1995
        %v2050 = vpack.c.b16 %v1998, %v1996
        %v2051 = vpack.c.b16 %v2001, %v1999
        %v2052 = vpack.c.b16 %v2002, %v2000
        %v2053 = vpack.c.b16 %v2005, %v2003
        %v2054 = vpack.c.b16 %v2006, %v2004
        %v2055 = vpack.c.b16 %v2009, %v2007
        %v2056 = vpack.c.b16 %v2010, %v2008
        %v2057 = vpack.c.b16 %v2013, %v2011
        %v2058 = vpack.c.b16 %v2014, %v2012
        %v2059 = vpack.c.b16 %v2017, %v2015
        %v2060 = vpack.c.b16 %v2018, %v2016
        %v2061 = vpack.c.b16 %v2021, %v2019
        %v2062 = vpack.c.b16 %v2022, %v2020
        %v2063 = vpack.c.b16 %v2025, %v2023
        %v2064 = vpack.c.b16 %v2026, %v2024
        %v2065 = vpack.c.b16 %v2029, %v2027
        %v2066 = vpack.c.b16 %v2030, %v2028
        %v2067 = vpack.c.b16 %v2033, %v2031
        %v2068 = vpack.c.b16 %v2034, %v2032
        %v2069 = vpack.c.b16 %v2037, %v2035
        %v2070 = vpack.c.b16 %v2038, %v2036
        %2103 = vmatprep.subr.bf16.mxu0 %v2054
        %2104 = vmatpush1.bf16.msra.mxu0 %v2053
        %2105 = vmatprep.subr.bf16.mxu0 %v2052
        %2106 = vmatpush1.bf16.msra.mxu0 %v2051
        %2107 = vmatprep.subr.bf16.mxu0 %v2050
        %2108 = vmatpush1.bf16.msra.mxu0 %v2049
        %2109 = vmatprep.subr.bf16.mxu0 %v2048
        %2110 = vmatpush1.bf16.msra.mxu0 %v2047
        %2111 = vmatprep.subr.bf16.mxu0 %v2046
        %2112 = vmatpush1.bf16.msra.mxu0 %v2045
        %2113 = vmatprep.subr.bf16.mxu0 %v2044
        %2114 = vmatpush1.bf16.msra.mxu0 %v2043
        %2115 = vmatprep.subr.bf16.mxu0 %v2042
        %2116 = vmatpush1.bf16.msra.mxu0 %v2041
        %2117 = vmatprep.subr.bf16.mxu0 %v2040
        %2118 = vmatpush1.bf16.msra.mxu0 %v2039
        %2119 = vmatprep.subr.bf16.mxu0 %v2070
        %2120 = vmatpush2.bf16.msra.mxu0 %v2069
        %2121 = vmatprep.subr.bf16.mxu0 %v2068
        %2122 = vmatpush2.bf16.msra.mxu0 %v2067
        %2123 = vmatprep.subr.bf16.mxu0 %v2066
        %2124 = vmatpush2.bf16.msra.mxu0 %v2065
        %2125 = vmatprep.subr.bf16.mxu0 %v2064
        %2126 = vmatpush2.bf16.msra.mxu0 %v2063
        %2127 = vmatprep.subr.bf16.mxu0 %v2062
        %2128 = vmatpush2.bf16.msra.mxu0 %v2061
        %2129 = vmatprep.subr.bf16.mxu0 %v2060
        %2130 = vmatpush2.bf16.msra.mxu0 %v2059
        %2131 = vmatprep.subr.bf16.mxu0 %v2058
        %2132 = vmatpush2.bf16.msra.mxu0 %v2057
        %2133 = vmatprep.subr.bf16.mxu0 %v2056
        %2134 = vmatpush2.bf16.msra.mxu0 %v2055
        %2135 = vmatprep.mubr.bf16.mxu0 %v1902
        %2136 = vmatmul.mubr.bf16.gmra.mxu0 %v1901
        %v2137 = vpop.f32.mrf.mxu0
        %v2138 = vadd.f32 %v1938, %v2137
        %v2139 = vpop.f32.mrf.mxu0
        %v2140 = vadd.f32 %v1942, %v2139
        %v2141 = vpop.f32.mrf.mxu0
        %v2142 = vadd.f32 %v1938, %v2141
        %v2143 = vpop.f32.mrf.mxu0
        %v2144 = vadd.f32 %v1942, %v2143
        %2145 = vdwg.mxu0
        %v2146 = vadd.f32 %v795, %v2138
        %v2147 = vadd.f32 %v796, %v2140
        %v2148 = vadd.f32 %v797, %v2142
        %v2149 = vadd.f32 %v798, %v2144
        %v2150 = vmul.f32 %v2146, %v2146
        %v2151 = vmul.f32 %v2147, %v2147
        %v2152 = vmul.f32 %v2148, %v2148
        %v2153 = vmul.f32 %v2149, %v2149
        %v2154 = vadd.f32 %v2150, %v2151
        %2155 = vadd.xlane.f32.xlu0 %v2154
        %v2156 = vpop.xlane.xlu0 %2155
        %v2157 = vadd.f32 %v2152, %v2153
        %2158 = vadd.xlane.f32.xlu0 %v2157
        %v2159 = vpop.xlane.xlu0 %2158
        %v2160 = vmul.f32 %v2156, %v815
        %v2161 = vmul.f32 %v2159, %v815
        %v2162 = vadd.f32 %v2160, 1.1920929e-07
        %v2163 = vadd.f32 %v2161, 1.1920929e-07
        %v2164 = vrsqrt.pop %v2162
        %v2165 = vrsqrt.pop %v2163
        %v2166 = vmul.f32 %v2146, %v2164
        %v2167 = vmul.f32 %v2147, %v2164
        %v2168 = vmul.f32 %v2148, %v2165
        %v2169 = vmul.f32 %v2149, %v2165
        %v2170 = vlaneseq
        %v2171 = vshrl.u32 %v2170, 7
        %v2172 = vsub.s32 5, %v2171
        %v2173 = vrot.slane %v803, %v2172
        %v2174 = vlaneseq
        %v2175 = vshrl.u32 %v2174, 7
        %v2176 = vsub.s32 5, %v2175
        %v2177 = vrot.slane %v804, %v2176
        %v2178 = vmul.f32 %v2166, %v2173
        %v2179 = vmul.f32 %v2167, %v2177
        %v2180 = vmul.f32 %v2168, %v2173
        %v2181 = vmul.f32 %v2169, %v2177
        %v2182 = vpack.c.bf16 %v2180, %v2178
        %v2183 = vpack.c.bf16 %v2181, %v2179
        %v2184 = vld [vmem:[%s670] sm:$0xff]
        %v2185 = vld [vmem:[%s670 + $0x8] sm:$0xff]
        %v2186 = vld [vmem:[%s670 + $0x10] sm:$0xff]
        %v2187 = vld [vmem:[%s670 + $0x18] sm:$0xff]
        %v2188 = vld [vmem:[%s670 + $0x20] sm:$0xff]
        %v2189 = vld [vmem:[%s670 + $0x28] sm:$0xff]
        %v2190 = vld [vmem:[%s670 + $0x30] sm:$0xff]
        %v2191 = vld [vmem:[%s670 + $0x38] sm:$0xff]
        %v2192 = vld [vmem:[%s670 + $0x40] sm:$0xff]
        %v2193 = vld [vmem:[%s670 + $0x48] sm:$0xff]
        %v2194 = vld [vmem:[%s670 + $0x50] sm:$0xff]
        %v2195 = vld [vmem:[%s670 + $0x58] sm:$0xff]
        %v2196 = vld [vmem:[%s670 + $0x60] sm:$0xff]
        %v2197 = vld [vmem:[%s670 + $0x68] sm:$0xff]
        %v2198 = vld [vmem:[%s670 + $0x70] sm:$0xff]
        %v2199 = vld [vmem:[%s670 + $0x78] sm:$0xff]
        %v2200 = vld [vmem:[%s670 + $0x80] sm:$0xff]
        %v2201 = vld [vmem:[%s670 + $0x88] sm:$0xff]
        %v2202 = vld [vmem:[%s670 + $0x90] sm:$0xff]
        %v2203 = vld [vmem:[%s670 + $0x98] sm:$0xff]
        %v2204 = vld [vmem:[%s670 + $0xa0] sm:$0xff]
        %v2205 = vld [vmem:[%s670 + $0xa8] sm:$0xff]
        %v2206 = vld [vmem:[%s670 + $0xb0] sm:$0xff]
        %v2207 = vld [vmem:[%s670 + $0xb8] sm:$0xff]
        %v2208 = vld [vmem:[%s670 + $0xc0] sm:$0xff]
        %v2209 = vld [vmem:[%s670 + $0xc8] sm:$0xff]
        %v2210 = vld [vmem:[%s670 + $0xd0] sm:$0xff]
        %v2211 = vld [vmem:[%s670 + $0xd8] sm:$0xff]
        %v2212 = vld [vmem:[%s670 + $0xe0] sm:$0xff]
        %v2213 = vld [vmem:[%s670 + $0xe8] sm:$0xff]
        %v2214 = vld [vmem:[%s670 + $0xf0] sm:$0xff]
        %v2215 = vld [vmem:[%s670 + $0xf8] sm:$0xff]
        %v2216 = vlaneseq
        %v2217 = vshrl.u32 %v2216, 7
        %v2218 = vsub.s32 6, %v2217
        %v2219 = vrot.slane %v803, %v2218
        %v2220 = vlaneseq
        %v2221 = vshrl.u32 %v2220, 7
        %v2222 = vsub.s32 6, %v2221
        %v2223 = vrot.slane %v804, %v2222
        %v2256 = vunpack.c.l.b16 %v2184
        %v2257 = vunpack.c.h.b16 %v2184
        %v2258 = vunpack.c.l.b16 %v2185
        %v2259 = vunpack.c.h.b16 %v2185
        %v2260 = vunpack.c.l.b16 %v2186
        %v2261 = vunpack.c.h.b16 %v2186
        %v2262 = vunpack.c.l.b16 %v2187
        %v2263 = vunpack.c.h.b16 %v2187
        %v2264 = vunpack.c.l.b16 %v2188
        %v2265 = vunpack.c.h.b16 %v2188
        %v2266 = vunpack.c.l.b16 %v2189
        %v2267 = vunpack.c.h.b16 %v2189
        %v2268 = vunpack.c.l.b16 %v2190
        %v2269 = vunpack.c.h.b16 %v2190
        %v2270 = vunpack.c.l.b16 %v2191
        %v2271 = vunpack.c.h.b16 %v2191
        %v2272 = vunpack.c.l.b16 %v2192
        %v2273 = vunpack.c.h.b16 %v2192
        %v2274 = vunpack.c.l.b16 %v2193
        %v2275 = vunpack.c.h.b16 %v2193
        %v2276 = vunpack.c.l.b16 %v2194
        %v2277 = vunpack.c.h.b16 %v2194
        %v2278 = vunpack.c.l.b16 %v2195
        %v2279 = vunpack.c.h.b16 %v2195
        %v2280 = vunpack.c.l.b16 %v2196
        %v2281 = vunpack.c.h.b16 %v2196
        %v2282 = vunpack.c.l.b16 %v2197
        %v2283 = vunpack.c.h.b16 %v2197
        %v2284 = vunpack.c.l.b16 %v2198
        %v2285 = vunpack.c.h.b16 %v2198
        %v2286 = vunpack.c.l.b16 %v2199
        %v2287 = vunpack.c.h.b16 %v2199
        %v2288 = vunpack.c.l.b16 %v2200
        %v2289 = vunpack.c.h.b16 %v2200
        %v2290 = vunpack.c.l.b16 %v2201
        %v2291 = vunpack.c.h.b16 %v2201
        %v2292 = vunpack.c.l.b16 %v2202
        %v2293 = vunpack.c.h.b16 %v2202
        %v2294 = vunpack.c.l.b16 %v2203
        %v2295 = vunpack.c.h.b16 %v2203
        %v2296 = vunpack.c.l.b16 %v2204
        %v2297 = vunpack.c.h.b16 %v2204
        %v2298 = vunpack.c.l.b16 %v2205
        %v2299 = vunpack.c.h.b16 %v2205
        %v2300 = vunpack.c.l.b16 %v2206
        %v2301 = vunpack.c.h.b16 %v2206
        %v2302 = vunpack.c.l.b16 %v2207
        %v2303 = vunpack.c.h.b16 %v2207
        %v2304 = vunpack.c.l.b16 %v2208
        %v2305 = vunpack.c.h.b16 %v2208
        %v2306 = vunpack.c.l.b16 %v2209
        %v2307 = vunpack.c.h.b16 %v2209
        %v2308 = vunpack.c.l.b16 %v2210
        %v2309 = vunpack.c.h.b16 %v2210
        %v2310 = vunpack.c.l.b16 %v2211
        %v2311 = vunpack.c.h.b16 %v2211
        %v2312 = vunpack.c.l.b16 %v2212
        %v2313 = vunpack.c.h.b16 %v2212
        %v2314 = vunpack.c.l.b16 %v2213
        %v2315 = vunpack.c.h.b16 %v2213
        %v2316 = vunpack.c.l.b16 %v2214
        %v2317 = vunpack.c.h.b16 %v2214
        %v2318 = vunpack.c.l.b16 %v2215
        %v2319 = vunpack.c.h.b16 %v2215
        %v2320 = vpack.c.b16 %v2258, %v2256
        %v2321 = vpack.c.b16 %v2259, %v2257
        %v2322 = vpack.c.b16 %v2262, %v2260
        %v2323 = vpack.c.b16 %v2263, %v2261
        %v2324 = vpack.c.b16 %v2266, %v2264
        %v2325 = vpack.c.b16 %v2267, %v2265
        %v2326 = vpack.c.b16 %v2270, %v2268
        %v2327 = vpack.c.b16 %v2271, %v2269
        %v2328 = vpack.c.b16 %v2274, %v2272
        %v2329 = vpack.c.b16 %v2275, %v2273
        %v2330 = vpack.c.b16 %v2278, %v2276
        %v2331 = vpack.c.b16 %v2279, %v2277
        %v2332 = vpack.c.b16 %v2282, %v2280
        %v2333 = vpack.c.b16 %v2283, %v2281
        %v2334 = vpack.c.b16 %v2286, %v2284
        %v2335 = vpack.c.b16 %v2287, %v2285
        %v2336 = vpack.c.b16 %v2290, %v2288
        %v2337 = vpack.c.b16 %v2291, %v2289
        %v2338 = vpack.c.b16 %v2294, %v2292
        %v2339 = vpack.c.b16 %v2295, %v2293
        %v2340 = vpack.c.b16 %v2298, %v2296
        %v2341 = vpack.c.b16 %v2299, %v2297
        %v2342 = vpack.c.b16 %v2302, %v2300
        %v2343 = vpack.c.b16 %v2303, %v2301
        %v2344 = vpack.c.b16 %v2306, %v2304
        %v2345 = vpack.c.b16 %v2307, %v2305
        %v2346 = vpack.c.b16 %v2310, %v2308
        %v2347 = vpack.c.b16 %v2311, %v2309
        %v2348 = vpack.c.b16 %v2314, %v2312
        %v2349 = vpack.c.b16 %v2315, %v2313
        %v2350 = vpack.c.b16 %v2318, %v2316
        %v2351 = vpack.c.b16 %v2319, %v2317
        %2384 = vmatprep.subr.bf16.mxu0 %v2335
        %2385 = vmatpush1.bf16.msra.mxu0 %v2334
        %2386 = vmatprep.subr.bf16.mxu0 %v2333
        %2387 = vmatpush1.bf16.msra.mxu0 %v2332
        %2388 = vmatprep.subr.bf16.mxu0 %v2331
        %2389 = vmatpush1.bf16.msra.mxu0 %v2330
        %2390 = vmatprep.subr.bf16.mxu0 %v2329
        %2391 = vmatpush1.bf16.msra.mxu0 %v2328
        %2392 = vmatprep.subr.bf16.mxu0 %v2327
        %2393 = vmatpush1.bf16.msra.mxu0 %v2326
        %2394 = vmatprep.subr.bf16.mxu0 %v2325
        %2395 = vmatpush1.bf16.msra.mxu0 %v2324
        %2396 = vmatprep.subr.bf16.mxu0 %v2323
        %2397 = vmatpush1.bf16.msra.mxu0 %v2322
        %2398 = vmatprep.subr.bf16.mxu0 %v2321
        %2399 = vmatpush1.bf16.msra.mxu0 %v2320
        %2400 = vmatprep.subr.bf16.mxu0 %v2351
        %2401 = vmatpush2.bf16.msra.mxu0 %v2350
        %2402 = vmatprep.subr.bf16.mxu0 %v2349
        %2403 = vmatpush2.bf16.msra.mxu0 %v2348
        %2404 = vmatprep.subr.bf16.mxu0 %v2347
        %2405 = vmatpush2.bf16.msra.mxu0 %v2346
        %2406 = vmatprep.subr.bf16.mxu0 %v2345
        %2407 = vmatpush2.bf16.msra.mxu0 %v2344
        %2408 = vmatprep.subr.bf16.mxu0 %v2343
        %2409 = vmatpush2.bf16.msra.mxu0 %v2342
        %2410 = vmatprep.subr.bf16.mxu0 %v2341
        %2411 = vmatpush2.bf16.msra.mxu0 %v2340
        %2412 = vmatprep.subr.bf16.mxu0 %v2339
        %2413 = vmatpush2.bf16.msra.mxu0 %v2338
        %2414 = vmatprep.subr.bf16.mxu0 %v2337
        %2415 = vmatpush2.bf16.msra.mxu0 %v2336
        %2416 = vmatprep.mubr.bf16.mxu0 %v2183
        %2417 = vmatmul.mubr.bf16.gmra.mxu0 %v2182
        %v2418 = vpop.f32.mrf.mxu0
        %v2419 = vadd.f32 %v2219, %v2418
        %v2420 = vpop.f32.mrf.mxu0
        %v2421 = vadd.f32 %v2223, %v2420
        %v2422 = vpop.f32.mrf.mxu0
        %v2423 = vadd.f32 %v2219, %v2422
        %v2424 = vpop.f32.mrf.mxu0
        %v2425 = vadd.f32 %v2223, %v2424
        %2426 = vdwg.mxu0
        %v2427 = vpack.c.bf16 %v2423, %v2419
        %v2428 = vpack.c.bf16 %v2425, %v2421
        %v2429 = vld [vmem:[%s679] sm:$0xff]
        %v2430 = vld [vmem:[%s679 + $0x8] sm:$0xff]
        %v2431 = vld [vmem:[%s679 + $0x10] sm:$0xff]
        %v2432 = vld [vmem:[%s679 + $0x18] sm:$0xff]
        %v2433 = vld [vmem:[%s679 + $0x20] sm:$0xff]
        %v2434 = vld [vmem:[%s679 + $0x28] sm:$0xff]
        %v2435 = vld [vmem:[%s679 + $0x30] sm:$0xff]
        %v2436 = vld [vmem:[%s679 + $0x38] sm:$0xff]
        %v2437 = vld [vmem:[%s679 + $0x40] sm:$0xff]
        %v2438 = vld [vmem:[%s679 + $0x48] sm:$0xff]
        %v2439 = vld [vmem:[%s679 + $0x50] sm:$0xff]
        %v2440 = vld [vmem:[%s679 + $0x58] sm:$0xff]
        %v2441 = vld [vmem:[%s679 + $0x60] sm:$0xff]
        %v2442 = vld [vmem:[%s679 + $0x68] sm:$0xff]
        %v2443 = vld [vmem:[%s679 + $0x70] sm:$0xff]
        %v2444 = vld [vmem:[%s679 + $0x78] sm:$0xff]
        %v2445 = vld [vmem:[%s679 + $0x80] sm:$0xff]
        %v2446 = vld [vmem:[%s679 + $0x88] sm:$0xff]
        %v2447 = vld [vmem:[%s679 + $0x90] sm:$0xff]
        %v2448 = vld [vmem:[%s679 + $0x98] sm:$0xff]
        %v2449 = vld [vmem:[%s679 + $0xa0] sm:$0xff]
        %v2450 = vld [vmem:[%s679 + $0xa8] sm:$0xff]
        %v2451 = vld [vmem:[%s679 + $0xb0] sm:$0xff]
        %v2452 = vld [vmem:[%s679 + $0xb8] sm:$0xff]
        %v2453 = vld [vmem:[%s679 + $0xc0] sm:$0xff]
        %v2454 = vld [vmem:[%s679 + $0xc8] sm:$0xff]
        %v2455 = vld [vmem:[%s679 + $0xd0] sm:$0xff]
        %v2456 = vld [vmem:[%s679 + $0xd8] sm:$0xff]
        %v2457 = vld [vmem:[%s679 + $0xe0] sm:$0xff]
        %v2458 = vld [vmem:[%s679 + $0xe8] sm:$0xff]
        %v2459 = vld [vmem:[%s679 + $0xf0] sm:$0xff]
        %v2460 = vld [vmem:[%s679 + $0xf8] sm:$0xff]
        %v2461 = vld [vmem:[%s679 + $0x100] sm:$0xff]
        %v2462 = vld [vmem:[%s679 + $0x108] sm:$0xff]
        %v2463 = vld [vmem:[%s679 + $0x110] sm:$0xff]
        %v2464 = vld [vmem:[%s679 + $0x118] sm:$0xff]
        %v2465 = vld [vmem:[%s679 + $0x120] sm:$0xff]
        %v2466 = vld [vmem:[%s679 + $0x128] sm:$0xff]
        %v2467 = vld [vmem:[%s679 + $0x130] sm:$0xff]
        %v2468 = vld [vmem:[%s679 + $0x138] sm:$0xff]
        %v2469 = vld [vmem:[%s679 + $0x140] sm:$0xff]
        %v2470 = vld [vmem:[%s679 + $0x148] sm:$0xff]
        %v2471 = vld [vmem:[%s679 + $0x150] sm:$0xff]
        %v2472 = vld [vmem:[%s679 + $0x158] sm:$0xff]
        %v2473 = vld [vmem:[%s679 + $0x160] sm:$0xff]
        %v2474 = vld [vmem:[%s679 + $0x168] sm:$0xff]
        %v2475 = vld [vmem:[%s679 + $0x170] sm:$0xff]
        %v2476 = vld [vmem:[%s679 + $0x178] sm:$0xff]
        %v2477 = vld [vmem:[%s679 + $0x180] sm:$0xff]
        %v2478 = vld [vmem:[%s679 + $0x188] sm:$0xff]
        %v2479 = vld [vmem:[%s679 + $0x190] sm:$0xff]
        %v2480 = vld [vmem:[%s679 + $0x198] sm:$0xff]
        %v2481 = vld [vmem:[%s679 + $0x1a0] sm:$0xff]
        %v2482 = vld [vmem:[%s679 + $0x1a8] sm:$0xff]
        %v2483 = vld [vmem:[%s679 + $0x1b0] sm:$0xff]
        %v2484 = vld [vmem:[%s679 + $0x1b8] sm:$0xff]
        %v2485 = vld [vmem:[%s679 + $0x1c0] sm:$0xff]
        %v2486 = vld [vmem:[%s679 + $0x1c8] sm:$0xff]
        %v2487 = vld [vmem:[%s679 + $0x1d0] sm:$0xff]
        %v2488 = vld [vmem:[%s679 + $0x1d8] sm:$0xff]
        %v2489 = vld [vmem:[%s679 + $0x1e0] sm:$0xff]
        %v2490 = vld [vmem:[%s679 + $0x1e8] sm:$0xff]
        %v2491 = vld [vmem:[%s679 + $0x1f0] sm:$0xff]
        %v2492 = vld [vmem:[%s679 + $0x1f8] sm:$0xff]
        %v2557 = vunpack.c.l.b16 %v2429
        %v2558 = vunpack.c.h.b16 %v2429
        %v2559 = vunpack.c.l.b16 %v2430
        %v2560 = vunpack.c.h.b16 %v2430
        %v2561 = vunpack.c.l.b16 %v2431
        %v2562 = vunpack.c.h.b16 %v2431
        %v2563 = vunpack.c.l.b16 %v2432
        %v2564 = vunpack.c.h.b16 %v2432
        %v2565 = vunpack.c.l.b16 %v2433
        %v2566 = vunpack.c.h.b16 %v2433
        %v2567 = vunpack.c.l.b16 %v2434
        %v2568 = vunpack.c.h.b16 %v2434
        %v2569 = vunpack.c.l.b16 %v2435
        %v2570 = vunpack.c.h.b16 %v2435
        %v2571 = vunpack.c.l.b16 %v2436
        %v2572 = vunpack.c.h.b16 %v2436
        %v2573 = vunpack.c.l.b16 %v2437
        %v2574 = vunpack.c.h.b16 %v2437
        %v2575 = vunpack.c.l.b16 %v2438
        %v2576 = vunpack.c.h.b16 %v2438
        %v2577 = vunpack.c.l.b16 %v2439
        %v2578 = vunpack.c.h.b16 %v2439
        %v2579 = vunpack.c.l.b16 %v2440
        %v2580 = vunpack.c.h.b16 %v2440
        %v2581 = vunpack.c.l.b16 %v2441
        %v2582 = vunpack.c.h.b16 %v2441
        %v2583 = vunpack.c.l.b16 %v2442
        %v2584 = vunpack.c.h.b16 %v2442
        %v2585 = vunpack.c.l.b16 %v2443
        %v2586 = vunpack.c.h.b16 %v2443
        %v2587 = vunpack.c.l.b16 %v2444
        %v2588 = vunpack.c.h.b16 %v2444
        %v2589 = vunpack.c.l.b16 %v2445
        %v2590 = vunpack.c.h.b16 %v2445
        %v2591 = vunpack.c.l.b16 %v2446
        %v2592 = vunpack.c.h.b16 %v2446
        %v2593 = vunpack.c.l.b16 %v2447
        %v2594 = vunpack.c.h.b16 %v2447
        %v2595 = vunpack.c.l.b16 %v2448
        %v2596 = vunpack.c.h.b16 %v2448
        %v2597 = vunpack.c.l.b16 %v2449
        %v2598 = vunpack.c.h.b16 %v2449
        %v2599 = vunpack.c.l.b16 %v2450
        %v2600 = vunpack.c.h.b16 %v2450
        %v2601 = vunpack.c.l.b16 %v2451
        %v2602 = vunpack.c.h.b16 %v2451
        %v2603 = vunpack.c.l.b16 %v2452
        %v2604 = vunpack.c.h.b16 %v2452
        %v2605 = vunpack.c.l.b16 %v2453
        %v2606 = vunpack.c.h.b16 %v2453
        %v2607 = vunpack.c.l.b16 %v2454
        %v2608 = vunpack.c.h.b16 %v2454
        %v2609 = vunpack.c.l.b16 %v2455
        %v2610 = vunpack.c.h.b16 %v2455
        %v2611 = vunpack.c.l.b16 %v2456
        %v2612 = vunpack.c.h.b16 %v2456
        %v2613 = vunpack.c.l.b16 %v2457
        %v2614 = vunpack.c.h.b16 %v2457
        %v2615 = vunpack.c.l.b16 %v2458
        %v2616 = vunpack.c.h.b16 %v2458
        %v2617 = vunpack.c.l.b16 %v2459
        %v2618 = vunpack.c.h.b16 %v2459
        %v2619 = vunpack.c.l.b16 %v2460
        %v2620 = vunpack.c.h.b16 %v2460
        %v2621 = vunpack.c.l.b16 %v2461
        %v2622 = vunpack.c.h.b16 %v2461
        %v2623 = vunpack.c.l.b16 %v2462
        %v2624 = vunpack.c.h.b16 %v2462
        %v2625 = vunpack.c.l.b16 %v2463
        %v2626 = vunpack.c.h.b16 %v2463
        %v2627 = vunpack.c.l.b16 %v2464
        %v2628 = vunpack.c.h.b16 %v2464
        %v2629 = vunpack.c.l.b16 %v2465
        %v2630 = vunpack.c.h.b16 %v2465
        %v2631 = vunpack.c.l.b16 %v2466
        %v2632 = vunpack.c.h.b16 %v2466
        %v2633 = vunpack.c.l.b16 %v2467
        %v2634 = vunpack.c.h.b16 %v2467
        %v2635 = vunpack.c.l.b16 %v2468
        %v2636 = vunpack.c.h.b16 %v2468
        %v2637 = vunpack.c.l.b16 %v2469
        %v2638 = vunpack.c.h.b16 %v2469
        %v2639 = vunpack.c.l.b16 %v2470
        %v2640 = vunpack.c.h.b16 %v2470
        %v2641 = vunpack.c.l.b16 %v2471
        %v2642 = vunpack.c.h.b16 %v2471
        %v2643 = vunpack.c.l.b16 %v2472
        %v2644 = vunpack.c.h.b16 %v2472
        %v2645 = vunpack.c.l.b16 %v2473
        %v2646 = vunpack.c.h.b16 %v2473
        %v2647 = vunpack.c.l.b16 %v2474
        %v2648 = vunpack.c.h.b16 %v2474
        %v2649 = vunpack.c.l.b16 %v2475
        %v2650 = vunpack.c.h.b16 %v2475
        %v2651 = vunpack.c.l.b16 %v2476
        %v2652 = vunpack.c.h.b16 %v2476
        %v2653 = vunpack.c.l.b16 %v2477
        %v2654 = vunpack.c.h.b16 %v2477
        %v2655 = vunpack.c.l.b16 %v2478
        %v2656 = vunpack.c.h.b16 %v2478
        %v2657 = vunpack.c.l.b16 %v2479
        %v2658 = vunpack.c.h.b16 %v2479
        %v2659 = vunpack.c.l.b16 %v2480
        %v2660 = vunpack.c.h.b16 %v2480
        %v2661 = vunpack.c.l.b16 %v2481
        %v2662 = vunpack.c.h.b16 %v2481
        %v2663 = vunpack.c.l.b16 %v2482
        %v2664 = vunpack.c.h.b16 %v2482
        %v2665 = vunpack.c.l.b16 %v2483
        %v2666 = vunpack.c.h.b16 %v2483
        %v2667 = vunpack.c.l.b16 %v2484
        %v2668 = vunpack.c.h.b16 %v2484
        %v2669 = vunpack.c.l.b16 %v2485
        %v2670 = vunpack.c.h.b16 %v2485
        %v2671 = vunpack.c.l.b16 %v2486
        %v2672 = vunpack.c.h.b16 %v2486
        %v2673 = vunpack.c.l.b16 %v2487
        %v2674 = vunpack.c.h.b16 %v2487
        %v2675 = vunpack.c.l.b16 %v2488
        %v2676 = vunpack.c.h.b16 %v2488
        %v2677 = vunpack.c.l.b16 %v2489
        %v2678 = vunpack.c.h.b16 %v2489
        %v2679 = vunpack.c.l.b16 %v2490
        %v2680 = vunpack.c.h.b16 %v2490
        %v2681 = vunpack.c.l.b16 %v2491
        %v2682 = vunpack.c.h.b16 %v2491
        %v2683 = vunpack.c.l.b16 %v2492
        %v2684 = vunpack.c.h.b16 %v2492
        %v2685 = vpack.c.b16 %v2561, %v2557
        %v2686 = vpack.c.b16 %v2562, %v2558
        %v2687 = vpack.c.b16 %v2563, %v2559
        %v2688 = vpack.c.b16 %v2564, %v2560
        %v2689 = vpack.c.b16 %v2569, %v2565
        %v2690 = vpack.c.b16 %v2570, %v2566
        %v2691 = vpack.c.b16 %v2571, %v2567
        %v2692 = vpack.c.b16 %v2572, %v2568
        %v2693 = vpack.c.b16 %v2577, %v2573
        %v2694 = vpack.c.b16 %v2578, %v2574
        %v2695 = vpack.c.b16 %v2579, %v2575
        %v2696 = vpack.c.b16 %v2580, %v2576
        %v2697 = vpack.c.b16 %v2585, %v2581
        %v2698 = vpack.c.b16 %v2586, %v2582
        %v2699 = vpack.c.b16 %v2587, %v2583
        %v2700 = vpack.c.b16 %v2588, %v2584
        %v2701 = vpack.c.b16 %v2593, %v2589
        %v2702 = vpack.c.b16 %v2594, %v2590
        %v2703 = vpack.c.b16 %v2595, %v2591
        %v2704 = vpack.c.b16 %v2596, %v2592
        %v2705 = vpack.c.b16 %v2601, %v2597
        %v2706 = vpack.c.b16 %v2602, %v2598
        %v2707 = vpack.c.b16 %v2603, %v2599
        %v2708 = vpack.c.b16 %v2604, %v2600
        %v2709 = vpack.c.b16 %v2609, %v2605
        %v2710 = vpack.c.b16 %v2610, %v2606
        %v2711 = vpack.c.b16 %v2611, %v2607
        %v2712 = vpack.c.b16 %v2612, %v2608
        %v2713 = vpack.c.b16 %v2617, %v2613
        %v2714 = vpack.c.b16 %v2618, %v2614
        %v2715 = vpack.c.b16 %v2619, %v2615
        %v2716 = vpack.c.b16 %v2620, %v2616
        %v2717 = vpack.c.b16 %v2625, %v2621
        %v2718 = vpack.c.b16 %v2626, %v2622
        %v2719 = vpack.c.b16 %v2627, %v2623
        %v2720 = vpack.c.b16 %v2628, %v2624
        %v2721 = vpack.c.b16 %v2633, %v2629
        %v2722 = vpack.c.b16 %v2634, %v2630
        %v2723 = vpack.c.b16 %v2635, %v2631
        %v2724 = vpack.c.b16 %v2636, %v2632
        %v2725 = vpack.c.b16 %v2641, %v2637
        %v2726 = vpack.c.b16 %v2642, %v2638
        %v2727 = vpack.c.b16 %v2643, %v2639
        %v2728 = vpack.c.b16 %v2644, %v2640
        %v2729 = vpack.c.b16 %v2649, %v2645
        %v2730 = vpack.c.b16 %v2650, %v2646
        %v2731 = vpack.c.b16 %v2651, %v2647
        %v2732 = vpack.c.b16 %v2652, %v2648
        %v2733 = vpack.c.b16 %v2657, %v2653
        %v2734 = vpack.c.b16 %v2658, %v2654
        %v2735 = vpack.c.b16 %v2659, %v2655
        %v2736 = vpack.c.b16 %v2660, %v2656
        %v2737 = vpack.c.b16 %v2665, %v2661
        %v2738 = vpack.c.b16 %v2666, %v2662
        %v2739 = vpack.c.b16 %v2667, %v2663
        %v2740 = vpack.c.b16 %v2668, %v2664
        %v2741 = vpack.c.b16 %v2673, %v2669
        %v2742 = vpack.c.b16 %v2674, %v2670
        %v2743 = vpack.c.b16 %v2675, %v2671
        %v2744 = vpack.c.b16 %v2676, %v2672
        %v2745 = vpack.c.b16 %v2681, %v2677
        %v2746 = vpack.c.b16 %v2682, %v2678
        %v2747 = vpack.c.b16 %v2683, %v2679
        %v2748 = vpack.c.b16 %v2684, %v2680
        %2813 = vmatprep.subr.bf16.mxu0 %v2714
        %2814 = vmatpush1.bf16.msra.mxu0 %v2713
        %2815 = vmatprep.subr.bf16.mxu0 %v2710
        %2816 = vmatpush1.bf16.msra.mxu0 %v2709
        %2817 = vmatprep.subr.bf16.mxu0 %v2706
        %2818 = vmatpush1.bf16.msra.mxu0 %v2705
        %2819 = vmatprep.subr.bf16.mxu0 %v2702
        %2820 = vmatpush1.bf16.msra.mxu0 %v2701
        %2821 = vmatprep.subr.bf16.mxu0 %v2698
        %2822 = vmatpush1.bf16.msra.mxu0 %v2697
        %2823 = vmatprep.subr.bf16.mxu0 %v2694
        %2824 = vmatpush1.bf16.msra.mxu0 %v2693
        %2825 = vmatprep.subr.bf16.mxu0 %v2690
        %2826 = vmatpush1.bf16.msra.mxu0 %v2689
        %2827 = vmatprep.subr.bf16.mxu0 %v2686
        %2828 = vmatpush1.bf16.msra.mxu0 %v2685
        %2829 = vmatprep.subr.bf16.mxu0 %v2746
        %2830 = vmatpush2.bf16.msra.mxu0 %v2745
        %2831 = vmatprep.subr.bf16.mxu0 %v2742
        %2832 = vmatpush2.bf16.msra.mxu0 %v2741
        %2833 = vmatprep.subr.bf16.mxu0 %v2738
        %2834 = vmatpush2.bf16.msra.mxu0 %v2737
        %2835 = vmatprep.subr.bf16.mxu0 %v2734
        %2836 = vmatpush2.bf16.msra.mxu0 %v2733
        %2837 = vmatprep.subr.bf16.mxu0 %v2730
        %2838 = vmatpush2.bf16.msra.mxu0 %v2729
        %2839 = vmatprep.subr.bf16.mxu0 %v2726
        %2840 = vmatpush2.bf16.msra.mxu0 %v2725
        %2841 = vmatprep.subr.bf16.mxu0 %v2722
        %2842 = vmatpush2.bf16.msra.mxu0 %v2721
        %2843 = vmatprep.subr.bf16.mxu0 %v2718
        %2844 = vmatpush2.bf16.msra.mxu0 %v2717
        %2845 = vmatprep.mubr.bf16.mxu0 %v2428
        %2846 = vmatmul.mubr.bf16.gmra.mxu0 %v2427
        %v2847 = vpop.f32.mrf.mxu0
        %v2848 = vadd.f32 0.0, %v2847
        %v2849 = vpop.f32.mrf.mxu0
        %v2850 = vadd.f32 0.0, %v2849
        %v2851 = vpop.f32.mrf.mxu0
        %v2852 = vadd.f32 0.0, %v2851
        %v2853 = vpop.f32.mrf.mxu0
        %v2854 = vadd.f32 0.0, %v2853
        %2855 = vdwg.mxu0
        %2856 = vmatprep.subr.bf16.mxu0 %v2716
        %2857 = vmatpush1.bf16.msra.mxu0 %v2715
        %2858 = vmatprep.subr.bf16.mxu0 %v2712
        %2859 = vmatpush1.bf16.msra.mxu0 %v2711
        %2860 = vmatprep.subr.bf16.mxu0 %v2708
        %2861 = vmatpush1.bf16.msra.mxu0 %v2707
        %2862 = vmatprep.subr.bf16.mxu0 %v2704
        %2863 = vmatpush1.bf16.msra.mxu0 %v2703
        %2864 = vmatprep.subr.bf16.mxu0 %v2700
        %2865 = vmatpush1.bf16.msra.mxu0 %v2699
        %2866 = vmatprep.subr.bf16.mxu0 %v2696
        %2867 = vmatpush1.bf16.msra.mxu0 %v2695
        %2868 = vmatprep.subr.bf16.mxu0 %v2692
        %2869 = vmatpush1.bf16.msra.mxu0 %v2691
        %2870 = vmatprep.subr.bf16.mxu0 %v2688
        %2871 = vmatpush1.bf16.msra.mxu0 %v2687
        %2872 = vmatprep.subr.bf16.mxu0 %v2748
        %2873 = vmatpush2.bf16.msra.mxu0 %v2747
        %2874 = vmatprep.subr.bf16.mxu0 %v2744
        %2875 = vmatpush2.bf16.msra.mxu0 %v2743
        %2876 = vmatprep.subr.bf16.mxu0 %v2740
        %2877 = vmatpush2.bf16.msra.mxu0 %v2739
        %2878 = vmatprep.subr.bf16.mxu0 %v2736
        %2879 = vmatpush2.bf16.msra.mxu0 %v2735
        %2880 = vmatprep.subr.bf16.mxu0 %v2732
        %2881 = vmatpush2.bf16.msra.mxu0 %v2731
        %2882 = vmatprep.subr.bf16.mxu0 %v2728
        %2883 = vmatpush2.bf16.msra.mxu0 %v2727
        %2884 = vmatprep.subr.bf16.mxu0 %v2724
        %2885 = vmatpush2.bf16.msra.mxu0 %v2723
        %2886 = vmatprep.subr.bf16.mxu0 %v2720
        %2887 = vmatpush2.bf16.msra.mxu0 %v2719
        %2888 = vmatprep.mubr.bf16.mxu0 %v2428
        %2889 = vmatmul.mubr.bf16.gmra.mxu0 %v2427
        %v2890 = vpop.f32.mrf.mxu0
        %v2891 = vadd.f32 0.0, %v2890
        %v2892 = vpop.f32.mrf.mxu0
        %v2893 = vadd.f32 0.0, %v2892
        %v2894 = vpop.f32.mrf.mxu0
        %v2895 = vadd.f32 0.0, %v2894
        %v2896 = vpop.f32.mrf.mxu0
        %v2897 = vadd.f32 0.0, %v2896
        %2898 = vdwg.mxu0
        %v2899 = vmul.f32 %v2848, %v2891
        %v2900 = vmul.f32 %v2850, %v2893
        %v2901 = vmul.f32 %v2852, %v2895
        %v2902 = vmul.f32 %v2854, %v2897
        %v2903 = vxor.u32 %v2891, 2147483648
        %v2904 = vxor.u32 %v2893, 2147483648
        %v2905 = vxor.u32 %v2895, 2147483648
        %v2906 = vxor.u32 %v2897, 2147483648
        %v2907 = vmul.f32 %v2903, 1.442695
        %v2908 = vpow.pop %v2907
        %v2909 = vmul.f32 %v2904, 1.442695
        %v2910 = vpow.pop %v2909
        %v2911 = vmul.f32 %v2905, 1.442695
        %v2912 = vpow.pop %v2911
        %v2913 = vmul.f32 %v2906, 1.442695
        %v2914 = vpow.pop %v2913
        %v2915 = vadd.f32 %v2908, 1.0
        %v2916 = vadd.f32 %v2910, 1.0
        %v2917 = vadd.f32 %v2912, 1.0
        %v2918 = vadd.f32 %v2914, 1.0
        %v2919 = vrcp.pop %v2915
        %v2920 = vmul.f32 1.0, %v2919
        %v2921 = vrcp.pop %v2916
        %v2922 = vmul.f32 1.0, %v2921
        %v2923 = vrcp.pop %v2917
        %v2924 = vmul.f32 1.0, %v2923
        %v2925 = vrcp.pop %v2918
        %v2926 = vmul.f32 1.0, %v2925
        %v2927 = vmul.f32 %v2899, %v2920
        %v2928 = vmul.f32 %v2900, %v2922
        %v2929 = vmul.f32 %v2901, %v2924
        %v2930 = vmul.f32 %v2902, %v2926
        %v2931 = vpack.c.bf16 %v2929, %v2927
        %v2932 = vpack.c.bf16 %v2930, %v2928
        %v2933 = vld [vmem:[%s688] sm:$0xff]
        %v2934 = vld [vmem:[%s688 + $0x8] sm:$0xff]
        %v2935 = vld [vmem:[%s688 + $0x10] sm:$0xff]
        %v2936 = vld [vmem:[%s688 + $0x18] sm:$0xff]
        %v2937 = vld [vmem:[%s688 + $0x20] sm:$0xff]
        %v2938 = vld [vmem:[%s688 + $0x28] sm:$0xff]
        %v2939 = vld [vmem:[%s688 + $0x30] sm:$0xff]
        %v2940 = vld [vmem:[%s688 + $0x38] sm:$0xff]
        %v2941 = vld [vmem:[%s688 + $0x40] sm:$0xff]
        %v2942 = vld [vmem:[%s688 + $0x48] sm:$0xff]
        %v2943 = vld [vmem:[%s688 + $0x50] sm:$0xff]
        %v2944 = vld [vmem:[%s688 + $0x58] sm:$0xff]
        %v2945 = vld [vmem:[%s688 + $0x60] sm:$0xff]
        %v2946 = vld [vmem:[%s688 + $0x68] sm:$0xff]
        %v2947 = vld [vmem:[%s688 + $0x70] sm:$0xff]
        %v2948 = vld [vmem:[%s688 + $0x78] sm:$0xff]
        %v2949 = vld [vmem:[%s688 + $0x80] sm:$0xff]
        %v2950 = vld [vmem:[%s688 + $0x88] sm:$0xff]
        %v2951 = vld [vmem:[%s688 + $0x90] sm:$0xff]
        %v2952 = vld [vmem:[%s688 + $0x98] sm:$0xff]
        %v2953 = vld [vmem:[%s688 + $0xa0] sm:$0xff]
        %v2954 = vld [vmem:[%s688 + $0xa8] sm:$0xff]
        %v2955 = vld [vmem:[%s688 + $0xb0] sm:$0xff]
        %v2956 = vld [vmem:[%s688 + $0xb8] sm:$0xff]
        %v2957 = vld [vmem:[%s688 + $0xc0] sm:$0xff]
        %v2958 = vld [vmem:[%s688 + $0xc8] sm:$0xff]
        %v2959 = vld [vmem:[%s688 + $0xd0] sm:$0xff]
        %v2960 = vld [vmem:[%s688 + $0xd8] sm:$0xff]
        %v2961 = vld [vmem:[%s688 + $0xe0] sm:$0xff]
        %v2962 = vld [vmem:[%s688 + $0xe8] sm:$0xff]
        %v2963 = vld [vmem:[%s688 + $0xf0] sm:$0xff]
        %v2964 = vld [vmem:[%s688 + $0xf8] sm:$0xff]
        %v2965 = vlaneseq
        %v2966 = vshrl.u32 %v2965, 7
        %v2967 = vsub.s32 7, %v2966
        %v2968 = vrot.slane %v803, %v2967
        %v2969 = vlaneseq
        %v2970 = vshrl.u32 %v2969, 7
        %v2971 = vsub.s32 7, %v2970
        %v2972 = vrot.slane %v804, %v2971
        %v3005 = vunpack.c.l.b16 %v2933
        %v3006 = vunpack.c.h.b16 %v2933
        %v3007 = vunpack.c.l.b16 %v2934
        %v3008 = vunpack.c.h.b16 %v2934
        %v3009 = vunpack.c.l.b16 %v2935
        %v3010 = vunpack.c.h.b16 %v2935
        %v3011 = vunpack.c.l.b16 %v2936
        %v3012 = vunpack.c.h.b16 %v2936
        %v3013 = vunpack.c.l.b16 %v2937
        %v3014 = vunpack.c.h.b16 %v2937
        %v3015 = vunpack.c.l.b16 %v2938
        %v3016 = vunpack.c.h.b16 %v2938
        %v3017 = vunpack.c.l.b16 %v2939
        %v3018 = vunpack.c.h.b16 %v2939
        %v3019 = vunpack.c.l.b16 %v2940
        %v3020 = vunpack.c.h.b16 %v2940
        %v3021 = vunpack.c.l.b16 %v2941
        %v3022 = vunpack.c.h.b16 %v2941
        %v3023 = vunpack.c.l.b16 %v2942
        %v3024 = vunpack.c.h.b16 %v2942
        %v3025 = vunpack.c.l.b16 %v2943
        %v3026 = vunpack.c.h.b16 %v2943
        %v3027 = vunpack.c.l.b16 %v2944
        %v3028 = vunpack.c.h.b16 %v2944
        %v3029 = vunpack.c.l.b16 %v2945
        %v3030 = vunpack.c.h.b16 %v2945
        %v3031 = vunpack.c.l.b16 %v2946
        %v3032 = vunpack.c.h.b16 %v2946
        %v3033 = vunpack.c.l.b16 %v2947
        %v3034 = vunpack.c.h.b16 %v2947
        %v3035 = vunpack.c.l.b16 %v2948
        %v3036 = vunpack.c.h.b16 %v2948
        %v3037 = vunpack.c.l.b16 %v2949
        %v3038 = vunpack.c.h.b16 %v2949
        %v3039 = vunpack.c.l.b16 %v2950
        %v3040 = vunpack.c.h.b16 %v2950
        %v3041 = vunpack.c.l.b16 %v2951
        %v3042 = vunpack.c.h.b16 %v2951
        %v3043 = vunpack.c.l.b16 %v2952
        %v3044 = vunpack.c.h.b16 %v2952
        %v3045 = vunpack.c.l.b16 %v2953
        %v3046 = vunpack.c.h.b16 %v2953
        %v3047 = vunpack.c.l.b16 %v2954
        %v3048 = vunpack.c.h.b16 %v2954
        %v3049 = vunpack.c.l.b16 %v2955
        %v3050 = vunpack.c.h.b16 %v2955
        %v3051 = vunpack.c.l.b16 %v2956
        %v3052 = vunpack.c.h.b16 %v2956
        %v3053 = vunpack.c.l.b16 %v2957
        %v3054 = vunpack.c.h.b16 %v2957
        %v3055 = vunpack.c.l.b16 %v2958
        %v3056 = vunpack.c.h.b16 %v2958
        %v3057 = vunpack.c.l.b16 %v2959
        %v3058 = vunpack.c.h.b16 %v2959
        %v3059 = vunpack.c.l.b16 %v2960
        %v3060 = vunpack.c.h.b16 %v2960
        %v3061 = vunpack.c.l.b16 %v2961
        %v3062 = vunpack.c.h.b16 %v2961
        %v3063 = vunpack.c.l.b16 %v2962
        %v3064 = vunpack.c.h.b16 %v2962
        %v3065 = vunpack.c.l.b16 %v2963
        %v3066 = vunpack.c.h.b16 %v2963
        %v3067 = vunpack.c.l.b16 %v2964
        %v3068 = vunpack.c.h.b16 %v2964
        %v3069 = vpack.c.b16 %v3007, %v3005
        %v3070 = vpack.c.b16 %v3008, %v3006
        %v3071 = vpack.c.b16 %v3011, %v3009
        %v3072 = vpack.c.b16 %v3012, %v3010
        %v3073 = vpack.c.b16 %v3015, %v3013
        %v3074 = vpack.c.b16 %v3016, %v3014
        %v3075 = vpack.c.b16 %v3019, %v3017
        %v3076 = vpack.c.b16 %v3020, %v3018
        %v3077 = vpack.c.b16 %v3023, %v3021
        %v3078 = vpack.c.b16 %v3024, %v3022
        %v3079 = vpack.c.b16 %v3027, %v3025
        %v3080 = vpack.c.b16 %v3028, %v3026
        %v3081 = vpack.c.b16 %v3031, %v3029
        %v3082 = vpack.c.b16 %v3032, %v3030
        %v3083 = vpack.c.b16 %v3035, %v3033
        %v3084 = vpack.c.b16 %v3036, %v3034
        %v3085 = vpack.c.b16 %v3039, %v3037
        %v3086 = vpack.c.b16 %v3040, %v3038
        %v3087 = vpack.c.b16 %v3043, %v3041
        %v3088 = vpack.c.b16 %v3044, %v3042
        %v3089 = vpack.c.b16 %v3047, %v3045
        %v3090 = vpack.c.b16 %v3048, %v3046
        %v3091 = vpack.c.b16 %v3051, %v3049
        %v3092 = vpack.c.b16 %v3052, %v3050
        %v3093 = vpack.c.b16 %v3055, %v3053
        %v3094 = vpack.c.b16 %v3056, %v3054
        %v3095 = vpack.c.b16 %v3059, %v3057
        %v3096 = vpack.c.b16 %v3060, %v3058
        %v3097 = vpack.c.b16 %v3063, %v3061
        %v3098 = vpack.c.b16 %v3064, %v3062
        %v3099 = vpack.c.b16 %v3067, %v3065
        %v3100 = vpack.c.b16 %v3068, %v3066
        %3133 = vmatprep.subr.bf16.mxu0 %v3084
        %3134 = vmatpush1.bf16.msra.mxu0 %v3083
        %3135 = vmatprep.subr.bf16.mxu0 %v3082
        %3136 = vmatpush1.bf16.msra.mxu0 %v3081
        %3137 = vmatprep.subr.bf16.mxu0 %v3080
        %3138 = vmatpush1.bf16.msra.mxu0 %v3079
        %3139 = vmatprep.subr.bf16.mxu0 %v3078
        %3140 = vmatpush1.bf16.msra.mxu0 %v3077
        %3141 = vmatprep.subr.bf16.mxu0 %v3076
        %3142 = vmatpush1.bf16.msra.mxu0 %v3075
        %3143 = vmatprep.subr.bf16.mxu0 %v3074
        %3144 = vmatpush1.bf16.msra.mxu0 %v3073
        %3145 = vmatprep.subr.bf16.mxu0 %v3072
        %3146 = vmatpush1.bf16.msra.mxu0 %v3071
        %3147 = vmatprep.subr.bf16.mxu0 %v3070
        %3148 = vmatpush1.bf16.msra.mxu0 %v3069
        %3149 = vmatprep.subr.bf16.mxu0 %v3100
        %3150 = vmatpush2.bf16.msra.mxu0 %v3099
        %3151 = vmatprep.subr.bf16.mxu0 %v3098
        %3152 = vmatpush2.bf16.msra.mxu0 %v3097
        %3153 = vmatprep.subr.bf16.mxu0 %v3096
        %3154 = vmatpush2.bf16.msra.mxu0 %v3095
        %3155 = vmatprep.subr.bf16.mxu0 %v3094
        %3156 = vmatpush2.bf16.msra.mxu0 %v3093
        %3157 = vmatprep.subr.bf16.mxu0 %v3092
        %3158 = vmatpush2.bf16.msra.mxu0 %v3091
        %3159 = vmatprep.subr.bf16.mxu0 %v3090
        %3160 = vmatpush2.bf16.msra.mxu0 %v3089
        %3161 = vmatprep.subr.bf16.mxu0 %v3088
        %3162 = vmatpush2.bf16.msra.mxu0 %v3087
        %3163 = vmatprep.subr.bf16.mxu0 %v3086
        %3164 = vmatpush2.bf16.msra.mxu0 %v3085
        %3165 = vmatprep.mubr.bf16.mxu0 %v2932
        %3166 = vmatmul.mubr.bf16.gmra.mxu0 %v2931
        %v3167 = vpop.f32.mrf.mxu0
        %v3168 = vadd.f32 %v2968, %v3167
        %v3169 = vpop.f32.mrf.mxu0
        %v3170 = vadd.f32 %v2972, %v3169
        %v3171 = vpop.f32.mrf.mxu0
        %v3172 = vadd.f32 %v2968, %v3171
        %v3173 = vpop.f32.mrf.mxu0
        %v3174 = vadd.f32 %v2972, %v3173
        %3175 = vdwg.mxu0
        %v3176 = vadd.f32 %v2178, %v3168
        %v3177 = vadd.f32 %v2179, %v3170
        %v3178 = vadd.f32 %v2180, %v3172
        %v3179 = vadd.f32 %v2181, %v3174
        %3180 = vst [vmem:[#allocation2] sm:$0xff] %v3176
        %3181 = vst [vmem:[#allocation2 + $0x8] sm:$0xff] %v3177
        %3182 = vst [vmem:[#allocation2 + $0x10] sm:$0xff] %v3178
        %3183 = vst [vmem:[#allocation2 + $0x18] sm:$0xff] %v3179
        %p3184 = scmp.eq.s32.totalorder %s35, 1
        // Predicated region
        $region125: #{tpu_custom_call.1} parent=71 // pred_check
          %p3185 = pneg %p3184
        $region126: #{tpu_custom_call.1} parent=71 // pred_check_branch
          %3187 = sbr.rel (%p3185) target = $region128
        $region127: #{tpu_custom_call.1} parent=71 // pred_region
          %v3188 = vld [vmem:[#allocation2] sm:$0xff]
          %v3189 = vld [vmem:[#allocation2 + $0x8] sm:$0xff]
          %v3190 = vld [vmem:[#allocation2 + $0x10] sm:$0xff]
          %v3191 = vld [vmem:[#allocation2 + $0x18] sm:$0xff]
          %v3192 = vld [vmem:[%s11] sm:$0x3]
          %v3193 = vmul.f32 %v3188, %v3188
          %v3194 = vmul.f32 %v3189, %v3189
          %v3195 = vmul.f32 %v3190, %v3190
          %v3196 = vmul.f32 %v3191, %v3191
          %v3197 = vadd.f32 %v3193, %v3194
          %3198 = vadd.xlane.f32.xlu0 %v3197
          %v3199 = vpop.xlane.xlu0 %3198
          %v3200 = vadd.f32 %v3195, %v3196
          %3201 = vadd.xlane.f32.xlu0 %v3200
          %v3202 = vpop.xlane.xlu0 %3201
          %v3203 = vmul.f32 %v3199, %v815
          %v3204 = vmul.f32 %v3202, %v815
          %v3205 = vadd.f32 %v3203, 1.1920929e-07
          %v3206 = vadd.f32 %v3204, 1.1920929e-07
          %v3207 = vrsqrt.pop %v3205
          %v3208 = vrsqrt.pop %v3206
          %v3209 = vmul.f32 %v3188, %v3207
          %v3210 = vmul.f32 %v3189, %v3207
          %v3211 = vmul.f32 %v3190, %v3208
          %v3212 = vmul.f32 %v3191, %v3208
          %v3214 = vlaneseq
          %v3215 = vshrl.u32 %v3214, 7
          %v3216 = vsub.s32 0, %v3215
          %v3217 = vrot.slane %v3192, %v3216
          %v3218 = vlaneseq
          %v3219 = vshrl.u32 %v3218, 7
          %v3220 = vsub.s32 1, %v3219
          %v3221 = vrot.slane %v3192, %v3220
          %v3224 = vmul.f32 %v3209, %v3217
          %v3225 = vmul.f32 %v3210, %v3221
          %v3226 = vmul.f32 %v3211, %v3217
          %v3227 = vmul.f32 %v3212, %v3221
          %v3228 = vadd.f32 %v3224, %v3226
          %v3229 = vrot.slane %v3228, 4
          %v3230 = vadd.f32 %v3228, %v3229
          %v3231 = vrot.slane %v3230, 2
          %v3232 = vadd.f32 %v3230, %v3231
          %v3233 = vrot.slane %v3232, 1
          %v3234 = vadd.f32 %v3232, %v3233
          %v3235 = vadd.f32 %v3225, %v3227
          %v3236 = vrot.slane %v3235, 4
          %v3237 = vadd.f32 %v3235, %v3236
          %v3238 = vrot.slane %v3237, 2
          %v3239 = vadd.f32 %v3237, %v3238
          %v3240 = vrot.slane %v3239, 1
          %v3241 = vadd.f32 %v3239, %v3240
          %v3242 = vrcp.pop 16.0
          %v3243 = vmul.f32 %v3234, %v3242
          %v3244 = vmul.f32 %v3241, %v3242
          %v3245 = vpack.c.bf16 %v3243, %v3243
          %v3246 = vpack.c.bf16 %v3244, %v3244
          %v3247 = vld [vmem:[#allocation17] sm:$0xf]
          %v3248 = vld [vmem:[#allocation17 + $0x4] sm:$0xf]
          %v3249 = vld [vmem:[#allocation17 + $0x8] sm:$0xf]
          %v3250 = vld [vmem:[#allocation17 + $0xc] sm:$0xf]
          %v3251 = vld [vmem:[#allocation17 + $0x10] sm:$0xf]
          %v3252 = vld [vmem:[#allocation17 + $0x14] sm:$0xf]
          %v3253 = vld [vmem:[#allocation17 + $0x18] sm:$0xf]
          %v3254 = vld [vmem:[#allocation17 + $0x1c] sm:$0xf]
          %v3255 = vld [vmem:[#allocation17 + $0x20] sm:$0xf]
          %v3256 = vld [vmem:[#allocation17 + $0x24] sm:$0xf]
          %v3257 = vld [vmem:[#allocation17 + $0x28] sm:$0xf]
          %v3258 = vld [vmem:[#allocation17 + $0x2c] sm:$0xf]
          %v3259 = vld [vmem:[#allocation17 + $0x30] sm:$0xf]
          %v3260 = vld [vmem:[#allocation17 + $0x34] sm:$0xf]
          %v3261 = vld [vmem:[#allocation17 + $0x38] sm:$0xf]
          %v3262 = vld [vmem:[#allocation17 + $0x3c] sm:$0xf]
          %v3263 = vld [vmem:[#allocation17 + $0x40] sm:$0xf]
          %v3264 = vld [vmem:[#allocation17 + $0x44] sm:$0xf]
          %v3265 = vld [vmem:[#allocation17 + $0x48] sm:$0xf]
          %v3266 = vld [vmem:[#allocation17 + $0x4c] sm:$0xf]
          %v3267 = vld [vmem:[#allocation17 + $0x50] sm:$0xf]
          %v3268 = vld [vmem:[#allocation17 + $0x54] sm:$0xf]
          %v3269 = vld [vmem:[#allocation17 + $0x58] sm:$0xf]
          %v3270 = vld [vmem:[#allocation17 + $0x5c] sm:$0xf]
          %v3271 = vld [vmem:[#allocation17 + $0x60] sm:$0xf]
          %v3272 = vld [vmem:[#allocation17 + $0x64] sm:$0xf]
          %v3273 = vld [vmem:[#allocation17 + $0x68] sm:$0xf]
          %v3274 = vld [vmem:[#allocation17 + $0x6c] sm:$0xf]
          %v3275 = vld [vmem:[#allocation17 + $0x70] sm:$0xf]
          %v3276 = vld [vmem:[#allocation17 + $0x74] sm:$0xf]
          %v3277 = vld [vmem:[#allocation17 + $0x78] sm:$0xf]
          %v3278 = vld [vmem:[#allocation17 + $0x7c] sm:$0xf]
          %v3279 = vld [vmem:[%s13] sm:$0x1]
          %v3312 = vunpack.c.l.b16 %v3247
          %v3313 = vunpack.c.l.b16 %v3248
          %v3314 = vunpack.c.l.b16 %v3249
          %v3315 = vunpack.c.l.b16 %v3250
          %v3316 = vunpack.c.l.b16 %v3251
          %v3317 = vunpack.c.l.b16 %v3252
          %v3318 = vunpack.c.l.b16 %v3253
          %v3319 = vunpack.c.l.b16 %v3254
          %v3320 = vunpack.c.l.b16 %v3255
          %v3321 = vunpack.c.l.b16 %v3256
          %v3322 = vunpack.c.l.b16 %v3257
          %v3323 = vunpack.c.l.b16 %v3258
          %v3324 = vunpack.c.l.b16 %v3259
          %v3325 = vunpack.c.l.b16 %v3260
          %v3326 = vunpack.c.l.b16 %v3261
          %v3327 = vunpack.c.l.b16 %v3262
          %v3328 = vunpack.c.l.b16 %v3263
          %v3329 = vunpack.c.l.b16 %v3264
          %v3330 = vunpack.c.l.b16 %v3265
          %v3331 = vunpack.c.l.b16 %v3266
          %v3332 = vunpack.c.l.b16 %v3267
          %v3333 = vunpack.c.l.b16 %v3268
          %v3334 = vunpack.c.l.b16 %v3269
          %v3335 = vunpack.c.l.b16 %v3270
          %v3336 = vunpack.c.l.b16 %v3271
          %v3337 = vunpack.c.l.b16 %v3272
          %v3338 = vunpack.c.l.b16 %v3273
          %v3339 = vunpack.c.l.b16 %v3274
          %v3340 = vunpack.c.l.b16 %v3275
          %v3341 = vunpack.c.l.b16 %v3276
          %v3342 = vunpack.c.l.b16 %v3277
          %v3343 = vunpack.c.l.b16 %v3278
          %v3344 = vpack.c.b16 %v3313, %v3312
          %v3345 = vpack.c.b16 %v3315, %v3314
          %v3346 = vpack.c.b16 %v3317, %v3316
          %v3347 = vpack.c.b16 %v3319, %v3318
          %v3348 = vpack.c.b16 %v3321, %v3320
          %v3349 = vpack.c.b16 %v3323, %v3322
          %v3350 = vpack.c.b16 %v3325, %v3324
          %v3351 = vpack.c.b16 %v3327, %v3326
          %v3352 = vpack.c.b16 %v3329, %v3328
          %v3353 = vpack.c.b16 %v3331, %v3330
          %v3354 = vpack.c.b16 %v3333, %v3332
          %v3355 = vpack.c.b16 %v3335, %v3334
          %v3356 = vpack.c.b16 %v3337, %v3336
          %v3357 = vpack.c.b16 %v3339, %v3338
          %v3358 = vpack.c.b16 %v3341, %v3340
          %v3359 = vpack.c.b16 %v3343, %v3342
          %3376 = vmatprep.subr.bf16.mxu0 0
          %3377 = vmatpush1.bf16.msra.mxu0 %v3351
          %3378 = vmatprep.subr.bf16.mxu0 0
          %3379 = vmatpush1.bf16.msra.mxu0 %v3350
          %3380 = vmatprep.subr.bf16.mxu0 0
          %3381 = vmatpush1.bf16.msra.mxu0 %v3349
          %3382 = vmatprep.subr.bf16.mxu0 0
          %3383 = vmatpush1.bf16.msra.mxu0 %v3348
          %3384 = vmatprep.subr.bf16.mxu0 0
          %3385 = vmatpush1.bf16.msra.mxu0 %v3347
          %3386 = vmatprep.subr.bf16.mxu0 0
          %3387 = vmatpush1.bf16.msra.mxu0 %v3346
          %3388 = vmatprep.subr.bf16.mxu0 0
          %3389 = vmatpush1.bf16.msra.mxu0 %v3345
          %3390 = vmatprep.subr.bf16.mxu0 0
          %3391 = vmatpush1.bf16.msra.mxu0 %v3344
          %3392 = vmatprep.subr.bf16.mxu0 0
          %3393 = vmatpush2.bf16.msra.mxu0 %v3359
          %3394 = vmatprep.subr.bf16.mxu0 0
          %3395 = vmatpush2.bf16.msra.mxu0 %v3358
          %3396 = vmatprep.subr.bf16.mxu0 0
          %3397 = vmatpush2.bf16.msra.mxu0 %v3357
          %3398 = vmatprep.subr.bf16.mxu0 0
          %3399 = vmatpush2.bf16.msra.mxu0 %v3356
          %3400 = vmatprep.subr.bf16.mxu0 0
          %3401 = vmatpush2.bf16.msra.mxu0 %v3355
          %3402 = vmatprep.subr.bf16.mxu0 0
          %3403 = vmatpush2.bf16.msra.mxu0 %v3354
          %3404 = vmatprep.subr.bf16.mxu0 0
          %3405 = vmatpush2.bf16.msra.mxu0 %v3353
          %3406 = vmatprep.subr.bf16.mxu0 0
          %3407 = vmatpush2.bf16.msra.mxu0 %v3352
          %3408 = vmatprep.mubr.bf16.mxu0 %v3246
          %3409 = vmatmul.mubr.bf16.gmra.mxu0 %v3245
          %v3410 = vpop.f32.mrf.mxu0
          %v3411 = vadd.f32 %v3279, %v3410
          %v3412 = vpop.f32.mrf.mxu0
          %v3413 = vpop.f32.mrf.mxu0
          %v3414 = vpop.f32.mrf.mxu0
          %3415 = vdwg.mxu0
          %3416 = vst [vmem:[%s768] sm:$0x1] %v3411
        $region128: #{tpu_custom_call.1} parent=71 // pred_fallthru
          _
        %s3417 = sand.u32 %s363, 1
        %s3418 = scalar_lea.sflag [#allocation6], %s3417
        %s3419 = sand.u32 %s363, 1
        %s3420 = scalar_lea.vmem [#allocation18], %s3419
        // Predicated region
        $region129: #{tpu_custom_call.1} parent=71 // pred_check
          %p3421 = pneg %p373
        $region130: #{tpu_custom_call.1} parent=71 // pred_check_branch
          %3423 = sbr.rel (%p3421) target = $region132
        $region131: #{tpu_custom_call.1} parent=71 // pred_region
          %s3425 = ssub.s32 16, 16
          %3426 = vsyncadd %s3418, %s3425
          %s3427 = smul.addr %s34, 16
          %s3428 = scalar_lea.hbm %s14, %s3427
          %s3430 = sshll.u32 %s3420, 4
          %s3431 = int_to_ptr.vmem [resolvable:$true] %s3430
          %3433 = dma.vmem_to_hbm [thread:$0]  %s3431, 16, %s3428, %s3418
        $region132: #{tpu_custom_call.1} parent=71 // pred_fallthru
          _
      $region72: #{tpu_custom_call.1} parent=5 // pred_fallthru
        _
      %p3434 = scmp.le.s32.totalorder 2, %s25
      // Predicated region
      $region133: #{tpu_custom_call.1} parent=5 // pred_check
        %p3435 = pneg %p3434
      $region134: #{tpu_custom_call.1} parent=5 // pred_check_branch
        %3437 = sbr.rel (%p3435) target = $region136
      $region135: #{tpu_custom_call.1} parent=5 // pred_region
        %s3438 = ssub.s32 %s25, 2
        // Predicated region
        $region137: #{tpu_custom_call.1} parent=135 // pred_check
          %p3439 = pneg %p379
        $region138: #{tpu_custom_call.1} parent=135 // pred_check_branch
          %3441 = sbr.rel (%p3439) target = $region140
        $region139: #{tpu_custom_call.1} parent=135 // pred_region
          %s3442 = sand.u32 %s364, 1
          %s3443 = scalar_lea.sflag [#allocation6], %s3442
          %s3444 = sand.u32 %s364, 1
          %s3445 = scalar_lea.vmem [#allocation18], %s3444
          %3446 = dma.done %s3443, 16
        $region140: #{tpu_custom_call.1} parent=135 // pred_fallthru
          _
      $region136: #{tpu_custom_call.1} parent=5 // pred_fallthru
        _
    $region6: #{tpu_custom_call.1} parent=1 // loop_footer
      %s29 = sadd.s32 1, %s25
    $region7: #{tpu_custom_call.1} parent=1 // loop_footer_branch
      %24 = sbr.rel target = $region3
    $region8: #{tpu_custom_call.1} parent=1 // loop_exit
      _
    %3447 = vsyncpa [#allocation5], 1
    %s3448 = scalar_lea.sflag [#allocation5], 1
    %3449 = vsyncpa %s3448, 1
    %3450 = vsyncpa [#allocation8], 1
    %3451 = vsyncpa [#allocation6], 1
    %s3452 = scalar_lea.sflag [#allocation6], 1
    %3453 = vsyncpa %s3452, 1
  %3454 = vsyncmov [#allocation3]
  %s3455 = vpop.sfrf %3454
  %p3456 = scmp.eq.s32.totalorder %s3455, 0
  %p3457 = pneg %p3456
  %3459 = shalt.err (%p3457)

</llo_original>
